<compile_context>
chip_gen: v7x
topology: tpu7x:2x2x1
jax: 0.10.0
libtpu: 0.0.40
codegen_flags: <defaults>
</compile_context>

<pallas_src>
import numpy as np
import jax
import jax.numpy as jnp
from jax.experimental import pallas as pl
from jax.experimental.pallas import tpu as pltpu

HEADS = 8
DIM_HEAD = 16
INNER = HEADS * DIM_HEAD          # 128
SCALE = DIM_HEAD ** (-0.5)
BN_EPS = 1e-5

INPUT_DIM = 20
FIRST_DIM = 30
SECOND_DIM = 20
ENCODING_DIM = 32


# ----------------------------------- kernel ------------------------------------------

def dense_block_kernel(x_ref,
                       w1_ref, ww_ref,
                       wq1_ref, wkr1_ref, wvr1_ref, wout1_ref,
                       wq2_ref, wkr2_ref, wvr2_ref, wout2_ref,
                       w3_ref, bias_ref,
                       out_ref):
    x = x_ref[...]                                                     # (TB, 20)
    bias = bias_ref[...]                                               # (8, 128) packed
    b1 = bias[0:1, :FIRST_DIM]
    bw = bias[1:2, :ENCODING_DIM]
    bo1 = bias[2:3, :SECOND_DIM]
    bo2 = bias[3:4, :32]
    b3 = bias[4:5, :ENCODING_DIM]

    # seq_1: Linear(20->30) + Tanh
    o = jnp.tanh(jnp.dot(x, w1_ref[...], preferred_element_type=jnp.float32) + b1)

    # wide path: Linear(30->32)
    o1 = jnp.dot(o, ww_ref[...], preferred_element_type=jnp.float32) + bw

    def attention(t, wq, wkr, wvr, wout, bo):
        # wq has the softmax scale pre-folded; wkr/wvr hold the 16 within-head-shifted
        # copies of the K / V projections side by side along the lane axis.
        q = jnp.dot(t, wq, preferred_element_type=jnp.float32)        # (TB, 128)
        kr = jnp.dot(t, wkr, preferred_element_type=jnp.float32)      # (TB, 16*128)
        vr = jnp.dot(t, wvr, preferred_element_type=jnp.float32)      # (TB, 16*128)

        # 128-aligned static lane slices (no relayout), 16-way softmax per lane.
        scores = [q * kr[:, s * INNER:(s + 1) * INNER] for s in range(DIM_HEAD)]
        m = scores[0]
        for s in range(1, DIM_HEAD):
            m = jnp.maximum(m, scores[s])
        num = jnp.zeros_like(q)
        den = jnp.zeros_like(q)
        for s in range(DIM_HEAD):
            e = jnp.exp(scores[s] - m)
            den = den + e
            num = num + e * vr[:, s * INNER:(s + 1) * INNER]
        # normalize after the weighted sum; accurate reciprocal keeps the 1e-5 check.
        av = num * pl.reciprocal(den)                                  # (TB, 128)
        return jnp.dot(av, wout, preferred_element_type=jnp.float32) + bo

    # deep_block_1: Attention(30->20) -> BN(folded) -> Tanh -> (Dropout = id)
    d1 = jnp.tanh(attention(o, wq1_ref[...], wkr1_ref[...], wvr1_ref[...],
                            wout1_ref[...], bo1))
    # deep_block_2: Attention(20->32) -> BN(folded) -> Tanh -> (Dropout = id)
    d2 = jnp.tanh(attention(d1, wq2_ref[...], wkr2_ref[...], wvr2_ref[...],
                            wout2_ref[...], bo2))
    # deep_block_3: BN(folded) -> (Dropout = id) -> Linear(32->32)
    o2 = jnp.dot(d2, w3_ref[...], preferred_element_type=jnp.float32) + b3

    out_ref[...] = (o1 + o2).astype(out_ref.dtype)


# -------------------------- wrapper-side parameter folding ---------------------------

def _head_shift_perm():
    """perm[s*128 + l] = head(l)*16 + (within(l) + s) % 16  -- within-head rotation."""
    lanes = np.arange(INNER)
    head = lanes // DIM_HEAD
    within = lanes % DIM_HEAD
    perm = np.stack(
        [head * DIM_HEAD + (within + s) % DIM_HEAD for s in range(DIM_HEAD)], axis=0)
    return perm.reshape(-1).astype(np.int32)                           # (16*128,)


def prepare_kernel_params(params):
    (w1, b1, ww, bw,
     wqkv1, wout1, bout1, g1, be1, m1, v1,
     wqkv2, wout2, bout2, g2, be2, m2, v2,
     g3, be3, m3, v3, w3, b3) = params

    perm = _head_shift_perm()

    def split_qkv(wqkv):
        wq = wqkv[:, 0 * INNER:1 * INNER] * SCALE      # fold softmax scale into Wq
        wk = wqkv[:, 1 * INNER:2 * INNER]
        wv = wqkv[:, 2 * INNER:3 * INNER]
        return wq, wk[:, perm], wv[:, perm]            # (in,128), (in,2048), (in,2048)

    wq1, wkr1, wvr1 = split_qkv(wqkv1)
    wq2, wkr2, wvr2 = split_qkv(wqkv2)

    def bn_scale_shift(g, be, m, v):
        s = g * jax.lax.rsqrt(v + BN_EPS)
        return s, be - m * s

    s1, c1 = bn_scale_shift(g1, be1, m1, v1)
    s2, c2 = bn_scale_shift(g2, be2, m2, v2)
    s3, c3 = bn_scale_shift(g3, be3, m3, v3)

    wout1_f = wout1 * s1                               # BN1 folded into attn1.to_out
    bout1_f = bout1 * s1 + c1
    wout2_f = wout2 * s2                               # BN2 folded into attn2.to_out
    bout2_f = bout2 * s2 + c2
    w3_f = w3 * s3.T                                   # BN3 folded into final Linear
    b3_f = c3 @ w3 + b3

    # pack the 5 remaining bias vectors into one sublane-aligned (8,128) array
    bias = jnp.zeros((8, INNER), jnp.float32)
    bias = bias.at[0, :FIRST_DIM].set(b1[0])
    bias = bias.at[1, :ENCODING_DIM].set(bw[0])
    bias = bias.at[2, :SECOND_DIM].set(bout1_f[0])
    bias = bias.at[3, :32].set(bout2_f[0])
    bias = bias.at[4, :ENCODING_DIM].set(b3_f[0])

    return (w1, ww, wq1, wkr1, wvr1, wout1_f, wq2, wkr2, wvr2, wout2_f, w3_f, bias)


def dense_block_forward(x, params, *, block_b=128):
    kparams = prepare_kernel_params(params)
    B = x.shape[0]
    TB = min(block_b, B)
    if TB != B and TB % 8 != 0:          # (8,128) constraint on the batch block dim
        TB = max(8, (TB // 8) * 8)
    grid = (pl.cdiv(B, TB),)

    in_specs = [pl.BlockSpec((TB, INPUT_DIM), lambda i: (i, 0))]
    # weights/biases: constant index_map -> resident in VMEM, fetched once
    in_specs += [pl.BlockSpec(p.shape, lambda i: (0, 0)) for p in kparams]

    return pl.pallas_call(
        dense_block_kernel,
        grid=grid,
        in_specs=in_specs,
        out_specs=pl.BlockSpec((TB, ENCODING_DIM), lambda i: (i, 0)),
        out_shape=jax.ShapeDtypeStruct((B, ENCODING_DIM), jnp.float32),
        compiler_params=pltpu.CompilerParams(
            dimension_semantics=("parallel",),      # batch tiles independent (v7x 2xTC)
        ),
    )(x, *kparams)


# ---------------- parameter init (deterministic, PyTorch-like uniform) ---------------

def _linear_init(key, fan_in, fan_out, bias=True):
    lim = 1.0 / np.sqrt(fan_in)
    kw, kb = jax.random.split(key)
    w = jax.random.uniform(kw, (fan_in, fan_out), jnp.float32, -lim, lim)  # stored (in, out)
    if bias:
        b = jax.random.uniform(kb, (1, fan_out), jnp.float32, -lim, lim)
        return w, b
    return (w,)


def _bn_init(dim):
    # PyTorch defaults: gamma=1, beta=0, running_mean=0, running_var=1
    return (jnp.ones((1, dim), jnp.float32), jnp.zeros((1, dim), jnp.float32),
            jnp.zeros((1, dim), jnp.float32), jnp.ones((1, dim), jnp.float32))


def init_params(key):
    ks = jax.random.split(key, 8)
    w1, b1 = _linear_init(ks[0], INPUT_DIM, FIRST_DIM)                 # seq_1 Linear
    ww, bw = _linear_init(ks[1], FIRST_DIM, ENCODING_DIM)              # wide_block_1
    (wqkv1,) = _linear_init(ks[2], FIRST_DIM, 3 * INNER, bias=False)   # attn1 to_qkv
    wout1, bout1 = _linear_init(ks[3], INNER, SECOND_DIM)              # attn1 to_out
    g1, be1, m1, v1 = _bn_init(SECOND_DIM)
    (wqkv2,) = _linear_init(ks[4], SECOND_DIM, 3 * INNER, bias=False)  # attn2 to_qkv
    wout2, bout2 = _linear_init(ks[5], INNER, 32)                      # attn2 to_out
    g2, be2, m2, v2 = _bn_init(32)
    g3, be3, m3, v3 = _bn_init(32)
    w3, b3 = _linear_init(ks[6], 32, ENCODING_DIM)                     # deep_block_3 Linear
    return (w1, b1, ww, bw,
            wqkv1, wout1, bout1, g1, be1, m1, v1,
            wqkv2, wout2, bout2, g2, be2, m2, v2,
            g3, be3, m3, v3, w3, b3)


# ----------------------------- pure-JAX reference ------------------------------------

def reference_forward(x, params):
    (w1, b1, ww, bw,
     wqkv1, wout1, bout1, g1, be1, m1, v1,
     wqkv2, wout2, bout2, g2, be2, m2, v2,
     g3, be3, m3, v3, w3, b3) = params

    def attention(t, wqkv, wout, bout):
        qkv = t @ wqkv
        q, k, v = jnp.split(qkv, 3, axis=-1)
        B = t.shape[0]
        q = q.reshape(B, HEADS, DIM_HEAD)
        k = k.reshape(B, HEADS, DIM_HEAD)
        v = v.reshape(B, HEADS, DIM_HEAD)
        sim = jnp.einsum('bhi,bhj->bhij', q, k) * SCALE
        attn = jax.nn.softmax(sim, axis=-1)
        out = jnp.einsum('bhij,bhj->bhi', attn, v).reshape(B, INNER)
        return out @ wout + bout

    def bn(t, g, be, m, v):
        return (t - m) * jax.lax.rsqrt(v + BN_EPS) * g + be

    o = jnp.tanh(x @ w1 + b1)
    o1 = o @ ww + bw
    d1 = jnp.tanh(bn(attention(o, wqkv1, wout1, bout1), g1, be1, m1, v1))
    d2 = jnp.tanh(bn(attention(d1, wqkv2, wout2, bout2), g2, be2, m2, v2))
    o2 = bn(d2, g3, be3, m3, v3) @ w3 + b3
    return o1 + o2


if __name__ == "__main__":
    key = jax.random.PRNGKey(0)
    kx, kp = jax.random.split(key)
    B = 64
    x = jax.random.normal(kx, (B, INPUT_DIM), jnp.float32)
    params = init_params(kp)

    # block_b=32 -> grid=(2,): exercises the batch pipeline with resident weights.
    out = dense_block_forward(x, params, block_b=32)
    out = jax.block_until_ready(out)

    ref = reference_forward(x, params)
    assert out.shape == (B, ENCODING_DIM)
    np.testing.assert_allclose(np.asarray(out), np.asarray(ref), rtol=1e-5, atol=2e-5)
    print("KERNEL_OK")
</pallas_src>

<mosaic_0001>
module attributes {stable_mosaic.version = 11 : i64} {
  func.func @dense_block_kernel(%arg0: i32, %arg1: memref<32x20xf32, #tpu.memory_space<vmem>>, %arg2: memref<20x30xf32, #tpu.memory_space<vmem>>, %arg3: memref<30x32xf32, #tpu.memory_space<vmem>>, %arg4: memref<30x128xf32, #tpu.memory_space<vmem>>, %arg5: memref<30x2048xf32, #tpu.memory_space<vmem>>, %arg6: memref<30x2048xf32, #tpu.memory_space<vmem>>, %arg7: memref<128x20xf32, #tpu.memory_space<vmem>>, %arg8: memref<20x128xf32, #tpu.memory_space<vmem>>, %arg9: memref<20x2048xf32, #tpu.memory_space<vmem>>, %arg10: memref<20x2048xf32, #tpu.memory_space<vmem>>, %arg11: memref<128x32xf32, #tpu.memory_space<vmem>>, %arg12: memref<32x32xf32, #tpu.memory_space<vmem>>, %arg13: memref<8x128xf32, #tpu.memory_space<vmem>>, %arg14: memref<32x32xf32, #tpu.memory_space<vmem>>) attributes {dimension_semantics = [#tpu.dimension_semantics<parallel>], iteration_bounds = array<i64: 2>, scalar_prefetch = 0 : i64, scratch_operands = 0 : i64, tpu.core_type = #tpu.core_type<tc>, window_params = [{transform_indices = @transform_0, window_bounds = array<i64: 32, 20>}, {pipeline_mode = #tpu.pipeline_mode<synchronous>, transform_indices = @transform_1, window_bounds = array<i64: 20, 30>}, {pipeline_mode = #tpu.pipeline_mode<synchronous>, transform_indices = @transform_2, window_bounds = array<i64: 30, 32>}, {pipeline_mode = #tpu.pipeline_mode<synchronous>, transform_indices = @transform_3, window_bounds = array<i64: 30, 128>}, {pipeline_mode = #tpu.pipeline_mode<synchronous>, transform_indices = @transform_4, window_bounds = array<i64: 30, 2048>}, {pipeline_mode = #tpu.pipeline_mode<synchronous>, transform_indices = @transform_5, window_bounds = array<i64: 30, 2048>}, {pipeline_mode = #tpu.pipeline_mode<synchronous>, transform_indices = @transform_6, window_bounds = array<i64: 128, 20>}, {pipeline_mode = #tpu.pipeline_mode<synchronous>, transform_indices = @transform_7, window_bounds = array<i64: 20, 128>}, {pipeline_mode = #tpu.pipeline_mode<synchronous>, transform_indices = @transform_8, window_bounds = array<i64: 20, 2048>}, {pipeline_mode = #tpu.pipeline_mode<synchronous>, transform_indices = @transform_9, window_bounds = array<i64: 20, 2048>}, {pipeline_mode = #tpu.pipeline_mode<synchronous>, transform_indices = @transform_10, window_bounds = array<i64: 128, 32>}, {pipeline_mode = #tpu.pipeline_mode<synchronous>, transform_indices = @transform_11, window_bounds = array<i64: 32, 32>}, {pipeline_mode = #tpu.pipeline_mode<synchronous>, transform_indices = @transform_12, window_bounds = array<i64: 8, 128>}, {transform_indices = @transform_13, window_bounds = array<i64: 32, 32>}]} {
    %c0 = arith.constant 0 : index
    %c0_0 = arith.constant 0 : index
    %0 = vector.load %arg1[%c0, %c0_0] : memref<32x20xf32, #tpu.memory_space<vmem>>, vector<32x20xf32>
    %c0_1 = arith.constant 0 : index
    %c0_2 = arith.constant 0 : index
    %1 = vector.load %arg13[%c0_1, %c0_2] : memref<8x128xf32, #tpu.memory_space<vmem>>, vector<8x128xf32>
    %2 = vector.extract_strided_slice %1 {offsets = [0, 0], sizes = [1, 30], strides = [1, 1]} : vector<8x128xf32> to vector<1x30xf32>
    %3 = vector.extract_strided_slice %1 {offsets = [1, 0], sizes = [1, 32], strides = [1, 1]} : vector<8x128xf32> to vector<1x32xf32>
    %4 = vector.extract_strided_slice %1 {offsets = [2, 0], sizes = [1, 20], strides = [1, 1]} : vector<8x128xf32> to vector<1x20xf32>
    %5 = vector.extract_strided_slice %1 {offsets = [3, 0], sizes = [1, 32], strides = [1, 1]} : vector<8x128xf32> to vector<1x32xf32>
    %6 = vector.extract_strided_slice %1 {offsets = [4, 0], sizes = [1, 32], strides = [1, 1]} : vector<8x128xf32> to vector<1x32xf32>
    %c0_3 = arith.constant 0 : index
    %c0_4 = arith.constant 0 : index
    %7 = vector.load %arg2[%c0_3, %c0_4] : memref<20x30xf32, #tpu.memory_space<vmem>>, vector<20x30xf32>
    %cst = arith.constant dense<0.000000e+00> : vector<32x30xf32>
    %8 = tpu.matmul %0, %7, %cst {dimension_numbers = #tpu.dot_dimension_numbers<[1], [0], [0], [1], [0, 0, 1, 1], [], []>} : vector<32x20xf32>, vector<20x30xf32>, vector<32x30xf32> -> vector<32x30xf32>
    %9 = vector.broadcast %2 : vector<1x30xf32> to vector<32x30xf32>
    %10 = arith.addf %8, %9 : vector<32x30xf32>
    %11 = math.tanh %10 : vector<32x30xf32>
    %c0_5 = arith.constant 0 : index
    %c0_6 = arith.constant 0 : index
    %12 = vector.load %arg3[%c0_5, %c0_6] : memref<30x32xf32, #tpu.memory_space<vmem>>, vector<30x32xf32>
    %cst_7 = arith.constant dense<0.000000e+00> : vector<32x32xf32>
    %13 = tpu.matmul %11, %12, %cst_7 {dimension_numbers = #tpu.dot_dimension_numbers<[1], [0], [0], [1], [0, 0, 1, 1], [], []>} : vector<32x30xf32>, vector<30x32xf32>, vector<32x32xf32> -> vector<32x32xf32>
    %14 = vector.broadcast %3 : vector<1x32xf32> to vector<32x32xf32>
    %15 = arith.addf %13, %14 : vector<32x32xf32>
    %c0_8 = arith.constant 0 : index
    %c0_9 = arith.constant 0 : index
    %16 = vector.load %arg4[%c0_8, %c0_9] : memref<30x128xf32, #tpu.memory_space<vmem>>, vector<30x128xf32>
    %c0_10 = arith.constant 0 : index
    %c0_11 = arith.constant 0 : index
    %17 = vector.load %arg5[%c0_10, %c0_11] : memref<30x2048xf32, #tpu.memory_space<vmem>>, vector<30x2048xf32>
    %c0_12 = arith.constant 0 : index
    %c0_13 = arith.constant 0 : index
    %18 = vector.load %arg6[%c0_12, %c0_13] : memref<30x2048xf32, #tpu.memory_space<vmem>>, vector<30x2048xf32>
    %c0_14 = arith.constant 0 : index
    %c0_15 = arith.constant 0 : index
    %19 = vector.load %arg7[%c0_14, %c0_15] : memref<128x20xf32, #tpu.memory_space<vmem>>, vector<128x20xf32>
    %cst_16 = arith.constant dense<0.000000e+00> : vector<32x128xf32>
    %20 = tpu.matmul %11, %16, %cst_16 {dimension_numbers = #tpu.dot_dimension_numbers<[1], [0], [0], [1], [0, 0, 1, 1], [], []>} : vector<32x30xf32>, vector<30x128xf32>, vector<32x128xf32> -> vector<32x128xf32>
    %cst_17 = arith.constant dense<0.000000e+00> : vector<32x2048xf32>
    %21 = tpu.matmul %11, %17, %cst_17 {dimension_numbers = #tpu.dot_dimension_numbers<[1], [0], [0], [1], [0, 0, 1, 1], [], []>} : vector<32x30xf32>, vector<30x2048xf32>, vector<32x2048xf32> -> vector<32x2048xf32>
    %cst_18 = arith.constant dense<0.000000e+00> : vector<32x2048xf32>
    %22 = tpu.matmul %11, %18, %cst_18 {dimension_numbers = #tpu.dot_dimension_numbers<[1], [0], [0], [1], [0, 0, 1, 1], [], []>} : vector<32x30xf32>, vector<30x2048xf32>, vector<32x2048xf32> -> vector<32x2048xf32>
    %23 = vector.extract_strided_slice %21 {offsets = [0, 0], sizes = [32, 128], strides = [1, 1]} : vector<32x2048xf32> to vector<32x128xf32>
    %24 = arith.mulf %20, %23 : vector<32x128xf32>
    %25 = vector.extract_strided_slice %21 {offsets = [0, 128], sizes = [32, 128], strides = [1, 1]} : vector<32x2048xf32> to vector<32x128xf32>
    %26 = arith.mulf %20, %25 : vector<32x128xf32>
    %27 = vector.extract_strided_slice %21 {offsets = [0, 256], sizes = [32, 128], strides = [1, 1]} : vector<32x2048xf32> to vector<32x128xf32>
    %28 = arith.mulf %20, %27 : vector<32x128xf32>
    %29 = vector.extract_strided_slice %21 {offsets = [0, 384], sizes = [32, 128], strides = [1, 1]} : vector<32x2048xf32> to vector<32x128xf32>
    %30 = arith.mulf %20, %29 : vector<32x128xf32>
    %31 = vector.extract_strided_slice %21 {offsets = [0, 512], sizes = [32, 128], strides = [1, 1]} : vector<32x2048xf32> to vector<32x128xf32>
    %32 = arith.mulf %20, %31 : vector<32x128xf32>
    %33 = vector.extract_strided_slice %21 {offsets = [0, 640], sizes = [32, 128], strides = [1, 1]} : vector<32x2048xf32> to vector<32x128xf32>
    %34 = arith.mulf %20, %33 : vector<32x128xf32>
    %35 = vector.extract_strided_slice %21 {offsets = [0, 768], sizes = [32, 128], strides = [1, 1]} : vector<32x2048xf32> to vector<32x128xf32>
    %36 = arith.mulf %20, %35 : vector<32x128xf32>
    %37 = vector.extract_strided_slice %21 {offsets = [0, 896], sizes = [32, 128], strides = [1, 1]} : vector<32x2048xf32> to vector<32x128xf32>
    %38 = arith.mulf %20, %37 : vector<32x128xf32>
    %39 = vector.extract_strided_slice %21 {offsets = [0, 1024], sizes = [32, 128], strides = [1, 1]} : vector<32x2048xf32> to vector<32x128xf32>
    %40 = arith.mulf %20, %39 : vector<32x128xf32>
    %41 = vector.extract_strided_slice %21 {offsets = [0, 1152], sizes = [32, 128], strides = [1, 1]} : vector<32x2048xf32> to vector<32x128xf32>
    %42 = arith.mulf %20, %41 : vector<32x128xf32>
    %43 = vector.extract_strided_slice %21 {offsets = [0, 1280], sizes = [32, 128], strides = [1, 1]} : vector<32x2048xf32> to vector<32x128xf32>
    %44 = arith.mulf %20, %43 : vector<32x128xf32>
    %45 = vector.extract_strided_slice %21 {offsets = [0, 1408], sizes = [32, 128], strides = [1, 1]} : vector<32x2048xf32> to vector<32x128xf32>
    %46 = arith.mulf %20, %45 : vector<32x128xf32>
    %47 = vector.extract_strided_slice %21 {offsets = [0, 1536], sizes = [32, 128], strides = [1, 1]} : vector<32x2048xf32> to vector<32x128xf32>
    %48 = arith.mulf %20, %47 : vector<32x128xf32>
    %49 = vector.extract_strided_slice %21 {offsets = [0, 1664], sizes = [32, 128], strides = [1, 1]} : vector<32x2048xf32> to vector<32x128xf32>
    %50 = arith.mulf %20, %49 : vector<32x128xf32>
    %51 = vector.extract_strided_slice %21 {offsets = [0, 1792], sizes = [32, 128], strides = [1, 1]} : vector<32x2048xf32> to vector<32x128xf32>
    %52 = arith.mulf %20, %51 : vector<32x128xf32>
    %53 = vector.extract_strided_slice %21 {offsets = [0, 1920], sizes = [32, 128], strides = [1, 1]} : vector<32x2048xf32> to vector<32x128xf32>
    %54 = arith.mulf %20, %53 : vector<32x128xf32>
    %55 = arith.maximumf %24, %26 : vector<32x128xf32>
    %56 = arith.maximumf %55, %28 : vector<32x128xf32>
    %57 = arith.maximumf %56, %30 : vector<32x128xf32>
    %58 = arith.maximumf %57, %32 : vector<32x128xf32>
    %59 = arith.maximumf %58, %34 : vector<32x128xf32>
    %60 = arith.maximumf %59, %36 : vector<32x128xf32>
    %61 = arith.maximumf %60, %38 : vector<32x128xf32>
    %62 = arith.maximumf %61, %40 : vector<32x128xf32>
    %63 = arith.maximumf %62, %42 : vector<32x128xf32>
    %64 = arith.maximumf %63, %44 : vector<32x128xf32>
    %65 = arith.maximumf %64, %46 : vector<32x128xf32>
    %66 = arith.maximumf %65, %48 : vector<32x128xf32>
    %67 = arith.maximumf %66, %50 : vector<32x128xf32>
    %68 = arith.maximumf %67, %52 : vector<32x128xf32>
    %69 = arith.maximumf %68, %54 : vector<32x128xf32>
    %cst_19 = arith.constant 0.000000e+00 : f32
    %70 = vector.broadcast %cst_19 : f32 to vector<32x128xf32>
    %cst_20 = arith.constant 0.000000e+00 : f32
    %71 = vector.broadcast %cst_20 : f32 to vector<32x128xf32>
    %72 = arith.subf %24, %69 : vector<32x128xf32>
    %73 = math.exp %72 : vector<32x128xf32>
    %74 = arith.addf %71, %73 : vector<32x128xf32>
    %75 = vector.extract_strided_slice %22 {offsets = [0, 0], sizes = [32, 128], strides = [1, 1]} : vector<32x2048xf32> to vector<32x128xf32>
    %76 = arith.mulf %73, %75 : vector<32x128xf32>
    %77 = arith.addf %70, %76 : vector<32x128xf32>
    %78 = arith.subf %26, %69 : vector<32x128xf32>
    %79 = math.exp %78 : vector<32x128xf32>
    %80 = arith.addf %74, %79 : vector<32x128xf32>
    %81 = vector.extract_strided_slice %22 {offsets = [0, 128], sizes = [32, 128], strides = [1, 1]} : vector<32x2048xf32> to vector<32x128xf32>
    %82 = arith.mulf %79, %81 : vector<32x128xf32>
    %83 = arith.addf %77, %82 : vector<32x128xf32>
    %84 = arith.subf %28, %69 : vector<32x128xf32>
    %85 = math.exp %84 : vector<32x128xf32>
    %86 = arith.addf %80, %85 : vector<32x128xf32>
    %87 = vector.extract_strided_slice %22 {offsets = [0, 256], sizes = [32, 128], strides = [1, 1]} : vector<32x2048xf32> to vector<32x128xf32>
    %88 = arith.mulf %85, %87 : vector<32x128xf32>
    %89 = arith.addf %83, %88 : vector<32x128xf32>
    %90 = arith.subf %30, %69 : vector<32x128xf32>
    %91 = math.exp %90 : vector<32x128xf32>
    %92 = arith.addf %86, %91 : vector<32x128xf32>
    %93 = vector.extract_strided_slice %22 {offsets = [0, 384], sizes = [32, 128], strides = [1, 1]} : vector<32x2048xf32> to vector<32x128xf32>
    %94 = arith.mulf %91, %93 : vector<32x128xf32>
    %95 = arith.addf %89, %94 : vector<32x128xf32>
    %96 = arith.subf %32, %69 : vector<32x128xf32>
    %97 = math.exp %96 : vector<32x128xf32>
    %98 = arith.addf %92, %97 : vector<32x128xf32>
    %99 = vector.extract_strided_slice %22 {offsets = [0, 512], sizes = [32, 128], strides = [1, 1]} : vector<32x2048xf32> to vector<32x128xf32>
    %100 = arith.mulf %97, %99 : vector<32x128xf32>
    %101 = arith.addf %95, %100 : vector<32x128xf32>
    %102 = arith.subf %34, %69 : vector<32x128xf32>
    %103 = math.exp %102 : vector<32x128xf32>
    %104 = arith.addf %98, %103 : vector<32x128xf32>
    %105 = vector.extract_strided_slice %22 {offsets = [0, 640], sizes = [32, 128], strides = [1, 1]} : vector<32x2048xf32> to vector<32x128xf32>
    %106 = arith.mulf %103, %105 : vector<32x128xf32>
    %107 = arith.addf %101, %106 : vector<32x128xf32>
    %108 = arith.subf %36, %69 : vector<32x128xf32>
    %109 = math.exp %108 : vector<32x128xf32>
    %110 = arith.addf %104, %109 : vector<32x128xf32>
    %111 = vector.extract_strided_slice %22 {offsets = [0, 768], sizes = [32, 128], strides = [1, 1]} : vector<32x2048xf32> to vector<32x128xf32>
    %112 = arith.mulf %109, %111 : vector<32x128xf32>
    %113 = arith.addf %107, %112 : vector<32x128xf32>
    %114 = arith.subf %38, %69 : vector<32x128xf32>
    %115 = math.exp %114 : vector<32x128xf32>
    %116 = arith.addf %110, %115 : vector<32x128xf32>
    %117 = vector.extract_strided_slice %22 {offsets = [0, 896], sizes = [32, 128], strides = [1, 1]} : vector<32x2048xf32> to vector<32x128xf32>
    %118 = arith.mulf %115, %117 : vector<32x128xf32>
    %119 = arith.addf %113, %118 : vector<32x128xf32>
    %120 = arith.subf %40, %69 : vector<32x128xf32>
    %121 = math.exp %120 : vector<32x128xf32>
    %122 = arith.addf %116, %121 : vector<32x128xf32>
    %123 = vector.extract_strided_slice %22 {offsets = [0, 1024], sizes = [32, 128], strides = [1, 1]} : vector<32x2048xf32> to vector<32x128xf32>
    %124 = arith.mulf %121, %123 : vector<32x128xf32>
    %125 = arith.addf %119, %124 : vector<32x128xf32>
    %126 = arith.subf %42, %69 : vector<32x128xf32>
    %127 = math.exp %126 : vector<32x128xf32>
    %128 = arith.addf %122, %127 : vector<32x128xf32>
    %129 = vector.extract_strided_slice %22 {offsets = [0, 1152], sizes = [32, 128], strides = [1, 1]} : vector<32x2048xf32> to vector<32x128xf32>
    %130 = arith.mulf %127, %129 : vector<32x128xf32>
    %131 = arith.addf %125, %130 : vector<32x128xf32>
    %132 = arith.subf %44, %69 : vector<32x128xf32>
    %133 = math.exp %132 : vector<32x128xf32>
    %134 = arith.addf %128, %133 : vector<32x128xf32>
    %135 = vector.extract_strided_slice %22 {offsets = [0, 1280], sizes = [32, 128], strides = [1, 1]} : vector<32x2048xf32> to vector<32x128xf32>
    %136 = arith.mulf %133, %135 : vector<32x128xf32>
    %137 = arith.addf %131, %136 : vector<32x128xf32>
    %138 = arith.subf %46, %69 : vector<32x128xf32>
    %139 = math.exp %138 : vector<32x128xf32>
    %140 = arith.addf %134, %139 : vector<32x128xf32>
    %141 = vector.extract_strided_slice %22 {offsets = [0, 1408], sizes = [32, 128], strides = [1, 1]} : vector<32x2048xf32> to vector<32x128xf32>
    %142 = arith.mulf %139, %141 : vector<32x128xf32>
    %143 = arith.addf %137, %142 : vector<32x128xf32>
    %144 = arith.subf %48, %69 : vector<32x128xf32>
    %145 = math.exp %144 : vector<32x128xf32>
    %146 = arith.addf %140, %145 : vector<32x128xf32>
    %147 = vector.extract_strided_slice %22 {offsets = [0, 1536], sizes = [32, 128], strides = [1, 1]} : vector<32x2048xf32> to vector<32x128xf32>
    %148 = arith.mulf %145, %147 : vector<32x128xf32>
    %149 = arith.addf %143, %148 : vector<32x128xf32>
    %150 = arith.subf %50, %69 : vector<32x128xf32>
    %151 = math.exp %150 : vector<32x128xf32>
    %152 = arith.addf %146, %151 : vector<32x128xf32>
    %153 = vector.extract_strided_slice %22 {offsets = [0, 1664], sizes = [32, 128], strides = [1, 1]} : vector<32x2048xf32> to vector<32x128xf32>
    %154 = arith.mulf %151, %153 : vector<32x128xf32>
    %155 = arith.addf %149, %154 : vector<32x128xf32>
    %156 = arith.subf %52, %69 : vector<32x128xf32>
    %157 = math.exp %156 : vector<32x128xf32>
    %158 = arith.addf %152, %157 : vector<32x128xf32>
    %159 = vector.extract_strided_slice %22 {offsets = [0, 1792], sizes = [32, 128], strides = [1, 1]} : vector<32x2048xf32> to vector<32x128xf32>
    %160 = arith.mulf %157, %159 : vector<32x128xf32>
    %161 = arith.addf %155, %160 : vector<32x128xf32>
    %162 = arith.subf %54, %69 : vector<32x128xf32>
    %163 = math.exp %162 : vector<32x128xf32>
    %164 = arith.addf %158, %163 : vector<32x128xf32>
    %165 = vector.extract_strided_slice %22 {offsets = [0, 1920], sizes = [32, 128], strides = [1, 1]} : vector<32x2048xf32> to vector<32x128xf32>
    %166 = arith.mulf %163, %165 : vector<32x128xf32>
    %167 = arith.addf %161, %166 : vector<32x128xf32>
    %168 = tpu.reciprocal %164 : vector<32x128xf32> -> vector<32x128xf32>
    %169 = arith.mulf %167, %168 : vector<32x128xf32>
    %cst_21 = arith.constant dense<0.000000e+00> : vector<32x20xf32>
    %170 = tpu.matmul %169, %19, %cst_21 {dimension_numbers = #tpu.dot_dimension_numbers<[1], [0], [0], [1], [0, 0, 1, 1], [], []>} : vector<32x128xf32>, vector<128x20xf32>, vector<32x20xf32> -> vector<32x20xf32>
    %171 = vector.broadcast %4 : vector<1x20xf32> to vector<32x20xf32>
    %172 = arith.addf %170, %171 : vector<32x20xf32>
    %173 = math.tanh %172 : vector<32x20xf32>
    %c0_22 = arith.constant 0 : index
    %c0_23 = arith.constant 0 : index
    %174 = vector.load %arg8[%c0_22, %c0_23] : memref<20x128xf32, #tpu.memory_space<vmem>>, vector<20x128xf32>
    %c0_24 = arith.constant 0 : index
    %c0_25 = arith.constant 0 : index
    %175 = vector.load %arg9[%c0_24, %c0_25] : memref<20x2048xf32, #tpu.memory_space<vmem>>, vector<20x2048xf32>
    %c0_26 = arith.constant 0 : index
    %c0_27 = arith.constant 0 : index
    %176 = vector.load %arg10[%c0_26, %c0_27] : memref<20x2048xf32, #tpu.memory_space<vmem>>, vector<20x2048xf32>
    %c0_28 = arith.constant 0 : index
    %c0_29 = arith.constant 0 : index
    %177 = vector.load %arg11[%c0_28, %c0_29] : memref<128x32xf32, #tpu.memory_space<vmem>>, vector<128x32xf32>
    %cst_30 = arith.constant dense<0.000000e+00> : vector<32x128xf32>
    %178 = tpu.matmul %173, %174, %cst_30 {dimension_numbers = #tpu.dot_dimension_numbers<[1], [0], [0], [1], [0, 0, 1, 1], [], []>} : vector<32x20xf32>, vector<20x128xf32>, vector<32x128xf32> -> vector<32x128xf32>
    %cst_31 = arith.constant dense<0.000000e+00> : vector<32x2048xf32>
    %179 = tpu.matmul %173, %175, %cst_31 {dimension_numbers = #tpu.dot_dimension_numbers<[1], [0], [0], [1], [0, 0, 1, 1], [], []>} : vector<32x20xf32>, vector<20x2048xf32>, vector<32x2048xf32> -> vector<32x2048xf32>
    %cst_32 = arith.constant dense<0.000000e+00> : vector<32x2048xf32>
    %180 = tpu.matmul %173, %176, %cst_32 {dimension_numbers = #tpu.dot_dimension_numbers<[1], [0], [0], [1], [0, 0, 1, 1], [], []>} : vector<32x20xf32>, vector<20x2048xf32>, vector<32x2048xf32> -> vector<32x2048xf32>
    %181 = vector.extract_strided_slice %179 {offsets = [0, 0], sizes = [32, 128], strides = [1, 1]} : vector<32x2048xf32> to vector<32x128xf32>
    %182 = arith.mulf %178, %181 : vector<32x128xf32>
    %183 = vector.extract_strided_slice %179 {offsets = [0, 128], sizes = [32, 128], strides = [1, 1]} : vector<32x2048xf32> to vector<32x128xf32>
    %184 = arith.mulf %178, %183 : vector<32x128xf32>
    %185 = vector.extract_strided_slice %179 {offsets = [0, 256], sizes = [32, 128], strides = [1, 1]} : vector<32x2048xf32> to vector<32x128xf32>
    %186 = arith.mulf %178, %185 : vector<32x128xf32>
    %187 = vector.extract_strided_slice %179 {offsets = [0, 384], sizes = [32, 128], strides = [1, 1]} : vector<32x2048xf32> to vector<32x128xf32>
    %188 = arith.mulf %178, %187 : vector<32x128xf32>
    %189 = vector.extract_strided_slice %179 {offsets = [0, 512], sizes = [32, 128], strides = [1, 1]} : vector<32x2048xf32> to vector<32x128xf32>
    %190 = arith.mulf %178, %189 : vector<32x128xf32>
    %191 = vector.extract_strided_slice %179 {offsets = [0, 640], sizes = [32, 128], strides = [1, 1]} : vector<32x2048xf32> to vector<32x128xf32>
    %192 = arith.mulf %178, %191 : vector<32x128xf32>
    %193 = vector.extract_strided_slice %179 {offsets = [0, 768], sizes = [32, 128], strides = [1, 1]} : vector<32x2048xf32> to vector<32x128xf32>
    %194 = arith.mulf %178, %193 : vector<32x128xf32>
    %195 = vector.extract_strided_slice %179 {offsets = [0, 896], sizes = [32, 128], strides = [1, 1]} : vector<32x2048xf32> to vector<32x128xf32>
    %196 = arith.mulf %178, %195 : vector<32x128xf32>
    %197 = vector.extract_strided_slice %179 {offsets = [0, 1024], sizes = [32, 128], strides = [1, 1]} : vector<32x2048xf32> to vector<32x128xf32>
    %198 = arith.mulf %178, %197 : vector<32x128xf32>
    %199 = vector.extract_strided_slice %179 {offsets = [0, 1152], sizes = [32, 128], strides = [1, 1]} : vector<32x2048xf32> to vector<32x128xf32>
    %200 = arith.mulf %178, %199 : vector<32x128xf32>
    %201 = vector.extract_strided_slice %179 {offsets = [0, 1280], sizes = [32, 128], strides = [1, 1]} : vector<32x2048xf32> to vector<32x128xf32>
    %202 = arith.mulf %178, %201 : vector<32x128xf32>
    %203 = vector.extract_strided_slice %179 {offsets = [0, 1408], sizes = [32, 128], strides = [1, 1]} : vector<32x2048xf32> to vector<32x128xf32>
    %204 = arith.mulf %178, %203 : vector<32x128xf32>
    %205 = vector.extract_strided_slice %179 {offsets = [0, 1536], sizes = [32, 128], strides = [1, 1]} : vector<32x2048xf32> to vector<32x128xf32>
    %206 = arith.mulf %178, %205 : vector<32x128xf32>
    %207 = vector.extract_strided_slice %179 {offsets = [0, 1664], sizes = [32, 128], strides = [1, 1]} : vector<32x2048xf32> to vector<32x128xf32>
    %208 = arith.mulf %178, %207 : vector<32x128xf32>
    %209 = vector.extract_strided_slice %179 {offsets = [0, 1792], sizes = [32, 128], strides = [1, 1]} : vector<32x2048xf32> to vector<32x128xf32>
    %210 = arith.mulf %178, %209 : vector<32x128xf32>
    %211 = vector.extract_strided_slice %179 {offsets = [0, 1920], sizes = [32, 128], strides = [1, 1]} : vector<32x2048xf32> to vector<32x128xf32>
    %212 = arith.mulf %178, %211 : vector<32x128xf32>
    %213 = arith.maximumf %182, %184 : vector<32x128xf32>
    %214 = arith.maximumf %213, %186 : vector<32x128xf32>
    %215 = arith.maximumf %214, %188 : vector<32x128xf32>
    %216 = arith.maximumf %215, %190 : vector<32x128xf32>
    %217 = arith.maximumf %216, %192 : vector<32x128xf32>
    %218 = arith.maximumf %217, %194 : vector<32x128xf32>
    %219 = arith.maximumf %218, %196 : vector<32x128xf32>
    %220 = arith.maximumf %219, %198 : vector<32x128xf32>
    %221 = arith.maximumf %220, %200 : vector<32x128xf32>
    %222 = arith.maximumf %221, %202 : vector<32x128xf32>
    %223 = arith.maximumf %222, %204 : vector<32x128xf32>
    %224 = arith.maximumf %223, %206 : vector<32x128xf32>
    %225 = arith.maximumf %224, %208 : vector<32x128xf32>
    %226 = arith.maximumf %225, %210 : vector<32x128xf32>
    %227 = arith.maximumf %226, %212 : vector<32x128xf32>
    %cst_33 = arith.constant 0.000000e+00 : f32
    %228 = vector.broadcast %cst_33 : f32 to vector<32x128xf32>
    %cst_34 = arith.constant 0.000000e+00 : f32
    %229 = vector.broadcast %cst_34 : f32 to vector<32x128xf32>
    %230 = arith.subf %182, %227 : vector<32x128xf32>
    %231 = math.exp %230 : vector<32x128xf32>
    %232 = arith.addf %229, %231 : vector<32x128xf32>
    %233 = vector.extract_strided_slice %180 {offsets = [0, 0], sizes = [32, 128], strides = [1, 1]} : vector<32x2048xf32> to vector<32x128xf32>
    %234 = arith.mulf %231, %233 : vector<32x128xf32>
    %235 = arith.addf %228, %234 : vector<32x128xf32>
    %236 = arith.subf %184, %227 : vector<32x128xf32>
    %237 = math.exp %236 : vector<32x128xf32>
    %238 = arith.addf %232, %237 : vector<32x128xf32>
    %239 = vector.extract_strided_slice %180 {offsets = [0, 128], sizes = [32, 128], strides = [1, 1]} : vector<32x2048xf32> to vector<32x128xf32>
    %240 = arith.mulf %237, %239 : vector<32x128xf32>
    %241 = arith.addf %235, %240 : vector<32x128xf32>
    %242 = arith.subf %186, %227 : vector<32x128xf32>
    %243 = math.exp %242 : vector<32x128xf32>
    %244 = arith.addf %238, %243 : vector<32x128xf32>
    %245 = vector.extract_strided_slice %180 {offsets = [0, 256], sizes = [32, 128], strides = [1, 1]} : vector<32x2048xf32> to vector<32x128xf32>
    %246 = arith.mulf %243, %245 : vector<32x128xf32>
    %247 = arith.addf %241, %246 : vector<32x128xf32>
    %248 = arith.subf %188, %227 : vector<32x128xf32>
    %249 = math.exp %248 : vector<32x128xf32>
    %250 = arith.addf %244, %249 : vector<32x128xf32>
    %251 = vector.extract_strided_slice %180 {offsets = [0, 384], sizes = [32, 128], strides = [1, 1]} : vector<32x2048xf32> to vector<32x128xf32>
    %252 = arith.mulf %249, %251 : vector<32x128xf32>
    %253 = arith.addf %247, %252 : vector<32x128xf32>
    %254 = arith.subf %190, %227 : vector<32x128xf32>
    %255 = math.exp %254 : vector<32x128xf32>
    %256 = arith.addf %250, %255 : vector<32x128xf32>
    %257 = vector.extract_strided_slice %180 {offsets = [0, 512], sizes = [32, 128], strides = [1, 1]} : vector<32x2048xf32> to vector<32x128xf32>
    %258 = arith.mulf %255, %257 : vector<32x128xf32>
    %259 = arith.addf %253, %258 : vector<32x128xf32>
    %260 = arith.subf %192, %227 : vector<32x128xf32>
    %261 = math.exp %260 : vector<32x128xf32>
    %262 = arith.addf %256, %261 : vector<32x128xf32>
    %263 = vector.extract_strided_slice %180 {offsets = [0, 640], sizes = [32, 128], strides = [1, 1]} : vector<32x2048xf32> to vector<32x128xf32>
    %264 = arith.mulf %261, %263 : vector<32x128xf32>
    %265 = arith.addf %259, %264 : vector<32x128xf32>
    %266 = arith.subf %194, %227 : vector<32x128xf32>
    %267 = math.exp %266 : vector<32x128xf32>
    %268 = arith.addf %262, %267 : vector<32x128xf32>
    %269 = vector.extract_strided_slice %180 {offsets = [0, 768], sizes = [32, 128], strides = [1, 1]} : vector<32x2048xf32> to vector<32x128xf32>
    %270 = arith.mulf %267, %269 : vector<32x128xf32>
    %271 = arith.addf %265, %270 : vector<32x128xf32>
    %272 = arith.subf %196, %227 : vector<32x128xf32>
    %273 = math.exp %272 : vector<32x128xf32>
    %274 = arith.addf %268, %273 : vector<32x128xf32>
    %275 = vector.extract_strided_slice %180 {offsets = [0, 896], sizes = [32, 128], strides = [1, 1]} : vector<32x2048xf32> to vector<32x128xf32>
    %276 = arith.mulf %273, %275 : vector<32x128xf32>
    %277 = arith.addf %271, %276 : vector<32x128xf32>
    %278 = arith.subf %198, %227 : vector<32x128xf32>
    %279 = math.exp %278 : vector<32x128xf32>
    %280 = arith.addf %274, %279 : vector<32x128xf32>
    %281 = vector.extract_strided_slice %180 {offsets = [0, 1024], sizes = [32, 128], strides = [1, 1]} : vector<32x2048xf32> to vector<32x128xf32>
    %282 = arith.mulf %279, %281 : vector<32x128xf32>
    %283 = arith.addf %277, %282 : vector<32x128xf32>
    %284 = arith.subf %200, %227 : vector<32x128xf32>
    %285 = math.exp %284 : vector<32x128xf32>
    %286 = arith.addf %280, %285 : vector<32x128xf32>
    %287 = vector.extract_strided_slice %180 {offsets = [0, 1152], sizes = [32, 128], strides = [1, 1]} : vector<32x2048xf32> to vector<32x128xf32>
    %288 = arith.mulf %285, %287 : vector<32x128xf32>
    %289 = arith.addf %283, %288 : vector<32x128xf32>
    %290 = arith.subf %202, %227 : vector<32x128xf32>
    %291 = math.exp %290 : vector<32x128xf32>
    %292 = arith.addf %286, %291 : vector<32x128xf32>
    %293 = vector.extract_strided_slice %180 {offsets = [0, 1280], sizes = [32, 128], strides = [1, 1]} : vector<32x2048xf32> to vector<32x128xf32>
    %294 = arith.mulf %291, %293 : vector<32x128xf32>
    %295 = arith.addf %289, %294 : vector<32x128xf32>
    %296 = arith.subf %204, %227 : vector<32x128xf32>
    %297 = math.exp %296 : vector<32x128xf32>
    %298 = arith.addf %292, %297 : vector<32x128xf32>
    %299 = vector.extract_strided_slice %180 {offsets = [0, 1408], sizes = [32, 128], strides = [1, 1]} : vector<32x2048xf32> to vector<32x128xf32>
    %300 = arith.mulf %297, %299 : vector<32x128xf32>
    %301 = arith.addf %295, %300 : vector<32x128xf32>
    %302 = arith.subf %206, %227 : vector<32x128xf32>
    %303 = math.exp %302 : vector<32x128xf32>
    %304 = arith.addf %298, %303 : vector<32x128xf32>
    %305 = vector.extract_strided_slice %180 {offsets = [0, 1536], sizes = [32, 128], strides = [1, 1]} : vector<32x2048xf32> to vector<32x128xf32>
    %306 = arith.mulf %303, %305 : vector<32x128xf32>
    %307 = arith.addf %301, %306 : vector<32x128xf32>
    %308 = arith.subf %208, %227 : vector<32x128xf32>
    %309 = math.exp %308 : vector<32x128xf32>
    %310 = arith.addf %304, %309 : vector<32x128xf32>
    %311 = vector.extract_strided_slice %180 {offsets = [0, 1664], sizes = [32, 128], strides = [1, 1]} : vector<32x2048xf32> to vector<32x128xf32>
    %312 = arith.mulf %309, %311 : vector<32x128xf32>
    %313 = arith.addf %307, %312 : vector<32x128xf32>
    %314 = arith.subf %210, %227 : vector<32x128xf32>
    %315 = math.exp %314 : vector<32x128xf32>
    %316 = arith.addf %310, %315 : vector<32x128xf32>
    %317 = vector.extract_strided_slice %180 {offsets = [0, 1792], sizes = [32, 128], strides = [1, 1]} : vector<32x2048xf32> to vector<32x128xf32>
    %318 = arith.mulf %315, %317 : vector<32x128xf32>
    %319 = arith.addf %313, %318 : vector<32x128xf32>
    %320 = arith.subf %212, %227 : vector<32x128xf32>
    %321 = math.exp %320 : vector<32x128xf32>
    %322 = arith.addf %316, %321 : vector<32x128xf32>
    %323 = vector.extract_strided_slice %180 {offsets = [0, 1920], sizes = [32, 128], strides = [1, 1]} : vector<32x2048xf32> to vector<32x128xf32>
    %324 = arith.mulf %321, %323 : vector<32x128xf32>
    %325 = arith.addf %319, %324 : vector<32x128xf32>
    %326 = tpu.reciprocal %322 : vector<32x128xf32> -> vector<32x128xf32>
    %327 = arith.mulf %325, %326 : vector<32x128xf32>
    %cst_35 = arith.constant dense<0.000000e+00> : vector<32x32xf32>
    %328 = tpu.matmul %327, %177, %cst_35 {dimension_numbers = #tpu.dot_dimension_numbers<[1], [0], [0], [1], [0, 0, 1, 1], [], []>} : vector<32x128xf32>, vector<128x32xf32>, vector<32x32xf32> -> vector<32x32xf32>
    %329 = vector.broadcast %5 : vector<1x32xf32> to vector<32x32xf32>
    %330 = arith.addf %328, %329 : vector<32x32xf32>
    %331 = math.tanh %330 : vector<32x32xf32>
    %c0_36 = arith.constant 0 : index
    %c0_37 = arith.constant 0 : index
    %332 = vector.load %arg12[%c0_36, %c0_37] : memref<32x32xf32, #tpu.memory_space<vmem>>, vector<32x32xf32>
    %cst_38 = arith.constant dense<0.000000e+00> : vector<32x32xf32>
    %333 = tpu.matmul %331, %332, %cst_38 {dimension_numbers = #tpu.dot_dimension_numbers<[1], [0], [0], [1], [0, 0, 1, 1], [], []>} : vector<32x32xf32>, vector<32x32xf32>, vector<32x32xf32> -> vector<32x32xf32>
    %334 = vector.broadcast %6 : vector<1x32xf32> to vector<32x32xf32>
    %335 = arith.addf %333, %334 : vector<32x32xf32>
    %336 = arith.addf %15, %335 : vector<32x32xf32>
    %c0_39 = arith.constant 0 : index
    %c0_40 = arith.constant 0 : index
    %337 = vector.load %arg14[%c0_39, %c0_40] : memref<32x32xf32, #tpu.memory_space<vmem>>, vector<32x32xf32>
    tpu.vector_store %arg14[%c0_39, %c0_40], %336 {strides = array<i32>} : memref<32x32xf32, #tpu.memory_space<vmem>>, vector<32x32xf32>,
    return
  }
  func.func @transform_0(%arg0: i32) -> (i32, i32) {
    %c0_i32 = arith.constant 0 : i32
    %c0_i32_0 = arith.constant 0 : i32
    return %arg0, %c0_i32 : i32, i32
  }
  func.func @transform_1(%arg0: i32) -> (i32, i32) {
    %c0_i32 = arith.constant 0 : i32
    %c0_i32_0 = arith.constant 0 : i32
    %c0_i32_1 = arith.constant 0 : i32
    return %c0_i32, %c0_i32_0 : i32, i32
  }
  func.func @transform_2(%arg0: i32) -> (i32, i32) {
    %c0_i32 = arith.constant 0 : i32
    %c0_i32_0 = arith.constant 0 : i32
    %c0_i32_1 = arith.constant 0 : i32
    return %c0_i32, %c0_i32_0 : i32, i32
  }
  func.func @transform_3(%arg0: i32) -> (i32, i32) {
    %c0_i32 = arith.constant 0 : i32
    %c0_i32_0 = arith.constant 0 : i32
    %c0_i32_1 = arith.constant 0 : i32
    return %c0_i32, %c0_i32_0 : i32, i32
  }
  func.func @transform_4(%arg0: i32) -> (i32, i32) {
    %c0_i32 = arith.constant 0 : i32
    %c0_i32_0 = arith.constant 0 : i32
    %c0_i32_1 = arith.constant 0 : i32
    return %c0_i32, %c0_i32_0 : i32, i32
  }
  func.func @transform_5(%arg0: i32) -> (i32, i32) {
    %c0_i32 = arith.constant 0 : i32
    %c0_i32_0 = arith.constant 0 : i32
    %c0_i32_1 = arith.constant 0 : i32
    return %c0_i32, %c0_i32_0 : i32, i32
  }
  func.func @transform_6(%arg0: i32) -> (i32, i32) {
    %c0_i32 = arith.constant 0 : i32
    %c0_i32_0 = arith.constant 0 : i32
    %c0_i32_1 = arith.constant 0 : i32
    return %c0_i32, %c0_i32_0 : i32, i32
  }
  func.func @transform_7(%arg0: i32) -> (i32, i32) {
    %c0_i32 = arith.constant 0 : i32
    %c0_i32_0 = arith.constant 0 : i32
    %c0_i32_1 = arith.constant 0 : i32
    return %c0_i32, %c0_i32_0 : i32, i32
  }
  func.func @transform_8(%arg0: i32) -> (i32, i32) {
    %c0_i32 = arith.constant 0 : i32
    %c0_i32_0 = arith.constant 0 : i32
    %c0_i32_1 = arith.constant 0 : i32
    return %c0_i32, %c0_i32_0 : i32, i32
  }
  func.func @transform_9(%arg0: i32) -> (i32, i32) {
    %c0_i32 = arith.constant 0 : i32
    %c0_i32_0 = arith.constant 0 : i32
    %c0_i32_1 = arith.constant 0 : i32
    return %c0_i32, %c0_i32_0 : i32, i32
  }
  func.func @transform_10(%arg0: i32) -> (i32, i32) {
    %c0_i32 = arith.constant 0 : i32
    %c0_i32_0 = arith.constant 0 : i32
    %c0_i32_1 = arith.constant 0 : i32
    return %c0_i32, %c0_i32_0 : i32, i32
  }
  func.func @transform_11(%arg0: i32) -> (i32, i32) {
    %c0_i32 = arith.constant 0 : i32
    %c0_i32_0 = arith.constant 0 : i32
    %c0_i32_1 = arith.constant 0 : i32
    return %c0_i32, %c0_i32_0 : i32, i32
  }
  func.func @transform_12(%arg0: i32) -> (i32, i32) {
    %c0_i32 = arith.constant 0 : i32
    %c0_i32_0 = arith.constant 0 : i32
    %c0_i32_1 = arith.constant 0 : i32
    return %c0_i32, %c0_i32_0 : i32, i32
  }
  func.func @transform_13(%arg0: i32) -> (i32, i32) {
    %c0_i32 = arith.constant 0 : i32
    %c0_i32_0 = arith.constant 0 : i32
    return %arg0, %c0_i32 : i32, i32
  }
}

</mosaic_0001>

<llo_original>
// kernel: tpu_custom_call.1
$region0: #{tpu_custom_call.1}
  #allocation0 [shape = 'u32[]', space=smem, size = 0x4, offset = 0x4, fixed_abs, tag = 'smem constant byte address 0x4 - core index']
  #allocation1 [shape = 'u32[144,128]{1,0:T(1,128)}', space=vmem, size = 0x12000, scoped, tag = 'internal scratch']
  %s0 = inlined_call_operand.vmem [shape: f32[64,20], index: 0, kind: input, shape index: {}]
  %s1 = inlined_call_operand.hbm [shape: f32[20,30], index: 1, kind: input, shape index: {}]
  %s2 = inlined_call_operand.vmem [shape: f32[30,32], index: 2, kind: input, shape index: {}]
  %s3 = inlined_call_operand.hbm [shape: f32[30,128], index: 3, kind: input, shape index: {}]
  %s4 = inlined_call_operand.hbm [shape: f32[30,2048], index: 4, kind: input, shape index: {}]
  %s5 = inlined_call_operand.hbm [shape: f32[30,2048], index: 5, kind: input, shape index: {}]
  %s6 = inlined_call_operand.vmem [shape: f32[128,20], index: 6, kind: input, shape index: {}]
  %s7 = inlined_call_operand.hbm [shape: f32[20,128], index: 7, kind: input, shape index: {}]
  %s8 = inlined_call_operand.vmem [shape: f32[20,2048], index: 8, kind: input, shape index: {}]
  %s9 = inlined_call_operand.hbm [shape: f32[20,2048], index: 9, kind: input, shape index: {}]
  %s10 = inlined_call_operand.vmem [shape: f32[128,32], index: 10, kind: input, shape index: {}]
  %s11 = inlined_call_operand.hbm [shape: f32[32,32], index: 11, kind: input, shape index: {}]
  %s12 = inlined_call_operand.vmem [shape: f32[8,128], index: 12, kind: input, shape index: {}]
  %s13 = inlined_call_operand.vmem [shape: f32[64,32], index: 13, kind: output, shape index: {}]
  %s14 = sld [smem:[#allocation0]]
  $region113: #{tpu_custom_call.1} parent=0
    _
  %s16 = ssub.s32 1, %s14
  %s17 = scalar_select 0, %s16, %s14
  $region1: #{tpu_custom_call.1} parent=0
    #allocation2 [shape = 'u8[12288]{0}', space=vmem, size = 0x3000, scoped, tag = 'input window, operand 1, single buffered']
    #allocation3 [shape = 's32[2]{0}', space=sflag, size = 0x8, scoped, tag = 'scoped memory for tpu_custom_call.1']
    #allocation4 [shape = 'u8[16384]{0}', space=vmem, size = 0x4000, scoped, tag = 'input window, operand 3, single buffered']
    #allocation5 [shape = 's32[1]{0}', space=sflag, size = 0x4, scoped, tag = 'scoped memory for tpu_custom_call.1']
    #allocation6 [shape = 'u8[262144]{0}', space=vmem, size = 0x40000, scoped, tag = 'input window, operand 4, single buffered']
    #allocation7 [shape = 'u8[262144]{0}', space=vmem, size = 0x40000, scoped, tag = 'input window, operand 5, single buffered']
    #allocation8 [shape = 's32[1]{0}', space=sflag, size = 0x4, scoped, tag = 'scoped memory for tpu_custom_call.1']
    #allocation9 [shape = 'u8[12288]{0}', space=vmem, size = 0x3000, scoped, tag = 'input window, operand 7, single buffered']
    #allocation10 [shape = 'u8[196608]{0}', space=vmem, size = 0x30000, scoped, tag = 'input window, operand 9, single buffered']
    #allocation11 [shape = 's32[1]{0}', space=sflag, size = 0x4, scoped, tag = 'scoped memory for tpu_custom_call.1']
    #allocation12 [shape = 'u8[16384]{0}', space=vmem, size = 0x4000, scoped, tag = 'input window, operand 11, single buffered']
    %18 = vsyncpa [#allocation3], 0
    %19 = vsyncpa [#allocation5], 0
    %20 = vsyncpa [#allocation8], 0
    %21 = vsyncpa [#allocation11], 0
    loop: start=0, step=1, limit=4
    $region2: #{tpu_custom_call.1} parent=1 // loop_pre_header
      _
    $region3: #{tpu_custom_call.1} parent=1 // loop_header
      %s23 = sphi 0, %s27
      %p24 = scmp.ge.s32.totalorder %s23, 4
      %s33 = sphi 0, %s35
      %s36 = sphi 0, %s33
      %s37 = sphi 0, %s36
      %s53 = sphi 0, %s37
      %s57 = sphi 0, %s57
      %s59 = sphi 0, %s57
      %s60 = sphi 0, %s59
      %s74 = sphi 0, %s60
      %s78 = sphi 0, %s78
      %s80 = sphi 0, %s78
      %s81 = sphi 0, %s80
      %s95 = sphi 0, %s81
      %s99 = sphi 0, %s99
      %s101 = sphi 0, %s99
      %s102 = sphi 0, %s101
      %s116 = sphi 0, %s102
      %s120 = sphi 0, %s120
      %s122 = sphi 0, %s120
      %s123 = sphi 0, %s122
      %s137 = sphi 0, %s123
      %s141 = sphi 0, %s141
      %s143 = sphi 0, %s141
      %s144 = sphi 0, %s143
      %s158 = sphi 0, %s144
      %s162 = sphi 0, %s162
      %s164 = sphi 0, %s162
      %s165 = sphi 0, %s164
      %s179 = sphi 0, %s165
      %s183 = sphi 0, %s183
      %s185 = sphi 0, %s183
      %s186 = sphi 0, %s185
      %s200 = sphi 0, %s186
      %s204 = sphi 0, %s204
      %s206 = sphi 0, %s204
      %s207 = sphi 0, %s206
      %s221 = sphi 0, %s207
      %s225 = sphi 0, %s225
      %s227 = sphi 0, %s225
      %s228 = sphi 0, %s227
      %s242 = sphi 0, %s228
      %s246 = sphi 0, %s246
      %s248 = sphi 0, %s246
      %s249 = sphi 0, %s248
      %s263 = sphi 0, %s249
      %s267 = sphi 0, %s267
      %s269 = sphi 0, %s267
      %s270 = sphi 0, %s269
      %s284 = sphi 0, %s270
      %s288 = sphi 0, %s288
      %s290 = sphi 0, %s288
      %s291 = sphi 0, %s290
      %s305 = sphi 0, %s291
      %s311 = sphi 0, %s313
      %s314 = sphi 0, %s311
      %s315 = sphi 0, %s314
      %s331 = sphi 0, %s315
    $region4: #{tpu_custom_call.1} parent=1 // loop_header_branch
      %26 = sbr.rel (%p24) target = $region8
    $region5: #{tpu_custom_call.1} parent=1 // loop_body
      %s28 = ssub.s32 %s23, 1
      %s29 = ssub.s32 %s23, 2
      %s30 = sadd.s32 %s23, 1
      %s31 = ssub.s32 %s23, %s30
      %p32 = scmp.eq.s32.totalorder %s31, 0
      %s34 = sadd.s32 %s33, 1
      %s35 = scalar_select %p32, %s33, %s34
      %p38 = pneg %p32
      %p39 = scmp.eq.s32.totalorder %s23, 1
      %p40 = por %p38, %p39
      %p41 = scmp.ne.s32.totalorder %s33, %s36
      %p42 = scmp.eq.s32.totalorder %s23, 0
      %p43 = por %p41, %p42
      %p44 = scmp.ne.s32.totalorder %s33, %s36
      %p45 = scmp.eq.s32.totalorder %s28, 1
      %p46 = por %p44, %p45
      %p47 = scmp.ne.s32.totalorder %s36, %s37
      %p48 = scmp.eq.s32.totalorder %s28, 0
      %p49 = por %p47, %p48
      %p50 = scmp.ne.s32.totalorder %s36, %s37
      %p51 = scmp.eq.s32.totalorder %s29, 1
      %p52 = por %p50, %p51
      %p54 = scmp.ne.s32.totalorder %s37, %s53
      %p55 = scmp.eq.s32.totalorder %s29, 0
      %p56 = por %p54, %p55
      %s58 = sadd.s32 %s57, 1
      %p61 = scmp.eq.s32.totalorder %s23, 1
      %p62 = scmp.ne.s32.totalorder %s57, %s59
      %p63 = scmp.eq.s32.totalorder %s23, 0
      %p64 = por %p62, %p63
      %p65 = scmp.ne.s32.totalorder %s57, %s59
      %p66 = scmp.eq.s32.totalorder %s28, 1
      %p67 = por %p65, %p66
      %p68 = scmp.ne.s32.totalorder %s59, %s60
      %p69 = scmp.eq.s32.totalorder %s28, 0
      %p70 = por %p68, %p69
      %p71 = scmp.ne.s32.totalorder %s59, %s60
      %p72 = scmp.eq.s32.totalorder %s29, 1
      %p73 = por %p71, %p72
      %p75 = scmp.ne.s32.totalorder %s60, %s74
      %p76 = scmp.eq.s32.totalorder %s29, 0
      %p77 = por %p75, %p76
      %s79 = sadd.s32 %s78, 1
      %p82 = scmp.eq.s32.totalorder %s23, 1
      %p83 = scmp.ne.s32.totalorder %s78, %s80
      %p84 = scmp.eq.s32.totalorder %s23, 0
      %p85 = por %p83, %p84
      %p86 = scmp.ne.s32.totalorder %s78, %s80
      %p87 = scmp.eq.s32.totalorder %s28, 1
      %p88 = por %p86, %p87
      %p89 = scmp.ne.s32.totalorder %s80, %s81
      %p90 = scmp.eq.s32.totalorder %s28, 0
      %p91 = por %p89, %p90
      %p92 = scmp.ne.s32.totalorder %s80, %s81
      %p93 = scmp.eq.s32.totalorder %s29, 1
      %p94 = por %p92, %p93
      %p96 = scmp.ne.s32.totalorder %s81, %s95
      %p97 = scmp.eq.s32.totalorder %s29, 0
      %p98 = por %p96, %p97
      %s100 = sadd.s32 %s99, 1
      %p103 = scmp.eq.s32.totalorder %s23, 1
      %p104 = scmp.ne.s32.totalorder %s99, %s101
      %p105 = scmp.eq.s32.totalorder %s23, 0
      %p106 = por %p104, %p105
      %p107 = scmp.ne.s32.totalorder %s99, %s101
      %p108 = scmp.eq.s32.totalorder %s28, 1
      %p109 = por %p107, %p108
      %p110 = scmp.ne.s32.totalorder %s101, %s102
      %p111 = scmp.eq.s32.totalorder %s28, 0
      %p112 = por %p110, %p111
      %p113 = scmp.ne.s32.totalorder %s101, %s102
      %p114 = scmp.eq.s32.totalorder %s29, 1
      %p115 = por %p113, %p114
      %p117 = scmp.ne.s32.totalorder %s102, %s116
      %p118 = scmp.eq.s32.totalorder %s29, 0
      %p119 = por %p117, %p118
      %s121 = sadd.s32 %s120, 1
      %p124 = scmp.eq.s32.totalorder %s23, 1
      %p125 = scmp.ne.s32.totalorder %s120, %s122
      %p126 = scmp.eq.s32.totalorder %s23, 0
      %p127 = por %p125, %p126
      %p128 = scmp.ne.s32.totalorder %s120, %s122
      %p129 = scmp.eq.s32.totalorder %s28, 1
      %p130 = por %p128, %p129
      %p131 = scmp.ne.s32.totalorder %s122, %s123
      %p132 = scmp.eq.s32.totalorder %s28, 0
      %p133 = por %p131, %p132
      %p134 = scmp.ne.s32.totalorder %s122, %s123
      %p135 = scmp.eq.s32.totalorder %s29, 1
      %p136 = por %p134, %p135
      %p138 = scmp.ne.s32.totalorder %s123, %s137
      %p139 = scmp.eq.s32.totalorder %s29, 0
      %p140 = por %p138, %p139
      %s142 = sadd.s32 %s141, 1
      %p145 = scmp.eq.s32.totalorder %s23, 1
      %p146 = scmp.ne.s32.totalorder %s141, %s143
      %p147 = scmp.eq.s32.totalorder %s23, 0
      %p148 = por %p146, %p147
      %p149 = scmp.ne.s32.totalorder %s141, %s143
      %p150 = scmp.eq.s32.totalorder %s28, 1
      %p151 = por %p149, %p150
      %p152 = scmp.ne.s32.totalorder %s143, %s144
      %p153 = scmp.eq.s32.totalorder %s28, 0
      %p154 = por %p152, %p153
      %p155 = scmp.ne.s32.totalorder %s143, %s144
      %p156 = scmp.eq.s32.totalorder %s29, 1
      %p157 = por %p155, %p156
      %p159 = scmp.ne.s32.totalorder %s144, %s158
      %p160 = scmp.eq.s32.totalorder %s29, 0
      %p161 = por %p159, %p160
      %s163 = sadd.s32 %s162, 1
      %p166 = scmp.eq.s32.totalorder %s23, 1
      %p167 = scmp.ne.s32.totalorder %s162, %s164
      %p168 = scmp.eq.s32.totalorder %s23, 0
      %p169 = por %p167, %p168
      %p170 = scmp.ne.s32.totalorder %s162, %s164
      %p171 = scmp.eq.s32.totalorder %s28, 1
      %p172 = por %p170, %p171
      %p173 = scmp.ne.s32.totalorder %s164, %s165
      %p174 = scmp.eq.s32.totalorder %s28, 0
      %p175 = por %p173, %p174
      %p176 = scmp.ne.s32.totalorder %s164, %s165
      %p177 = scmp.eq.s32.totalorder %s29, 1
      %p178 = por %p176, %p177
      %p180 = scmp.ne.s32.totalorder %s165, %s179
      %p181 = scmp.eq.s32.totalorder %s29, 0
      %p182 = por %p180, %p181
      %s184 = sadd.s32 %s183, 1
      %p187 = scmp.eq.s32.totalorder %s23, 1
      %p188 = scmp.ne.s32.totalorder %s183, %s185
      %p189 = scmp.eq.s32.totalorder %s23, 0
      %p190 = por %p188, %p189
      %p191 = scmp.ne.s32.totalorder %s183, %s185
      %p192 = scmp.eq.s32.totalorder %s28, 1
      %p193 = por %p191, %p192
      %p194 = scmp.ne.s32.totalorder %s185, %s186
      %p195 = scmp.eq.s32.totalorder %s28, 0
      %p196 = por %p194, %p195
      %p197 = scmp.ne.s32.totalorder %s185, %s186
      %p198 = scmp.eq.s32.totalorder %s29, 1
      %p199 = por %p197, %p198
      %p201 = scmp.ne.s32.totalorder %s186, %s200
      %p202 = scmp.eq.s32.totalorder %s29, 0
      %p203 = por %p201, %p202
      %s205 = sadd.s32 %s204, 1
      %p208 = scmp.eq.s32.totalorder %s23, 1
      %p209 = scmp.ne.s32.totalorder %s204, %s206
      %p210 = scmp.eq.s32.totalorder %s23, 0
      %p211 = por %p209, %p210
      %p212 = scmp.ne.s32.totalorder %s204, %s206
      %p213 = scmp.eq.s32.totalorder %s28, 1
      %p214 = por %p212, %p213
      %p215 = scmp.ne.s32.totalorder %s206, %s207
      %p216 = scmp.eq.s32.totalorder %s28, 0
      %p217 = por %p215, %p216
      %p218 = scmp.ne.s32.totalorder %s206, %s207
      %p219 = scmp.eq.s32.totalorder %s29, 1
      %p220 = por %p218, %p219
      %p222 = scmp.ne.s32.totalorder %s207, %s221
      %p223 = scmp.eq.s32.totalorder %s29, 0
      %p224 = por %p222, %p223
      %s226 = sadd.s32 %s225, 1
      %p229 = scmp.eq.s32.totalorder %s23, 1
      %p230 = scmp.ne.s32.totalorder %s225, %s227
      %p231 = scmp.eq.s32.totalorder %s23, 0
      %p232 = por %p230, %p231
      %p233 = scmp.ne.s32.totalorder %s225, %s227
      %p234 = scmp.eq.s32.totalorder %s28, 1
      %p235 = por %p233, %p234
      %p236 = scmp.ne.s32.totalorder %s227, %s228
      %p237 = scmp.eq.s32.totalorder %s28, 0
      %p238 = por %p236, %p237
      %p239 = scmp.ne.s32.totalorder %s227, %s228
      %p240 = scmp.eq.s32.totalorder %s29, 1
      %p241 = por %p239, %p240
      %p243 = scmp.ne.s32.totalorder %s228, %s242
      %p244 = scmp.eq.s32.totalorder %s29, 0
      %p245 = por %p243, %p244
      %s247 = sadd.s32 %s246, 1
      %p250 = scmp.eq.s32.totalorder %s23, 1
      %p251 = scmp.ne.s32.totalorder %s246, %s248
      %p252 = scmp.eq.s32.totalorder %s23, 0
      %p253 = por %p251, %p252
      %p254 = scmp.ne.s32.totalorder %s246, %s248
      %p255 = scmp.eq.s32.totalorder %s28, 1
      %p256 = por %p254, %p255
      %p257 = scmp.ne.s32.totalorder %s248, %s249
      %p258 = scmp.eq.s32.totalorder %s28, 0
      %p259 = por %p257, %p258
      %p260 = scmp.ne.s32.totalorder %s248, %s249
      %p261 = scmp.eq.s32.totalorder %s29, 1
      %p262 = por %p260, %p261
      %p264 = scmp.ne.s32.totalorder %s249, %s263
      %p265 = scmp.eq.s32.totalorder %s29, 0
      %p266 = por %p264, %p265
      %s268 = sadd.s32 %s267, 1
      %p271 = scmp.eq.s32.totalorder %s23, 1
      %p272 = scmp.ne.s32.totalorder %s267, %s269
      %p273 = scmp.eq.s32.totalorder %s23, 0
      %p274 = por %p272, %p273
      %p275 = scmp.ne.s32.totalorder %s267, %s269
      %p276 = scmp.eq.s32.totalorder %s28, 1
      %p277 = por %p275, %p276
      %p278 = scmp.ne.s32.totalorder %s269, %s270
      %p279 = scmp.eq.s32.totalorder %s28, 0
      %p280 = por %p278, %p279
      %p281 = scmp.ne.s32.totalorder %s269, %s270
      %p282 = scmp.eq.s32.totalorder %s29, 1
      %p283 = por %p281, %p282
      %p285 = scmp.ne.s32.totalorder %s270, %s284
      %p286 = scmp.eq.s32.totalorder %s29, 0
      %p287 = por %p285, %p286
      %s289 = sadd.s32 %s288, 1
      %p292 = scmp.eq.s32.totalorder %s23, 1
      %p293 = scmp.ne.s32.totalorder %s288, %s290
      %p294 = scmp.eq.s32.totalorder %s23, 0
      %p295 = por %p293, %p294
      %p296 = scmp.ne.s32.totalorder %s288, %s290
      %p297 = scmp.eq.s32.totalorder %s28, 1
      %p298 = por %p296, %p297
      %p299 = scmp.ne.s32.totalorder %s290, %s291
      %p300 = scmp.eq.s32.totalorder %s28, 0
      %p301 = por %p299, %p300
      %p302 = scmp.ne.s32.totalorder %s290, %s291
      %p303 = scmp.eq.s32.totalorder %s29, 1
      %p304 = por %p302, %p303
      %p306 = scmp.ne.s32.totalorder %s291, %s305
      %p307 = scmp.eq.s32.totalorder %s29, 0
      %p308 = por %p306, %p307
      %s309 = ssub.s32 %s23, %s30
      %p310 = scmp.eq.s32.totalorder %s309, 0
      %s312 = sadd.s32 %s311, 1
      %s313 = scalar_select %p310, %s311, %s312
      %p316 = pneg %p310
      %p317 = scmp.eq.s32.totalorder %s23, 1
      %p318 = por %p316, %p317
      %p319 = scmp.ne.s32.totalorder %s311, %s314
      %p320 = scmp.eq.s32.totalorder %s23, 0
      %p321 = por %p319, %p320
      %p322 = scmp.ne.s32.totalorder %s311, %s314
      %p323 = scmp.eq.s32.totalorder %s28, 1
      %p324 = por %p322, %p323
      %p325 = scmp.ne.s32.totalorder %s314, %s315
      %p326 = scmp.eq.s32.totalorder %s28, 0
      %p327 = por %p325, %p326
      %p328 = scmp.ne.s32.totalorder %s314, %s315
      %p329 = scmp.eq.s32.totalorder %s29, 1
      %p330 = por %p328, %p329
      %p332 = scmp.ne.s32.totalorder %s315, %s331
      %p333 = scmp.eq.s32.totalorder %s29, 0
      %p334 = por %p332, %p333
      %p335 = scmp.le.s32.totalorder 1, %s23
      %p336 = scmp.lt.s32.totalorder %s23, 3
      %p337 = pnand %p335, %p336
      %p338 = pneg %p337
      // Predicated region
      $region9: #{tpu_custom_call.1} parent=5 // pred_check
        _
      $region10: #{tpu_custom_call.1} parent=5 // pred_check_branch
        %340 = sbr.rel (%p337) target = $region12
      $region11: #{tpu_custom_call.1} parent=5 // pred_region
        %s341 = ssub.s32 %s23, 1
        // Predicated region
        $region13: #{tpu_custom_call.1} parent=11 // pred_check
          %p342 = pneg %p70
        $region14: #{tpu_custom_call.1} parent=11 // pred_check_branch
          %344 = sbr.rel (%p342) target = $region16
        $region15: #{tpu_custom_call.1} parent=11 // pred_region
          %s346 = ssub.s32 384, 384
          %347 = vsyncadd [#allocation3], %s346
          %s348 = sshll.u32 [#allocation2], 4
          %s349 = int_to_ptr.vmem [resolvable:$true] %s348
          %354 = dma.hbm_to_vmem [thread:$0]  %s1, 384, %s349, [#allocation3], 128, 128, 8
        $region16: #{tpu_custom_call.1} parent=11 // pred_fallthru
          _
        // Predicated region
        $region17: #{tpu_custom_call.1} parent=11 // pred_check
          %p355 = pneg %p91
        $region18: #{tpu_custom_call.1} parent=11 // pred_check_branch
          %357 = sbr.rel (%p355) target = $region20
        $region19: #{tpu_custom_call.1} parent=11 // pred_region
          _
        $region20: #{tpu_custom_call.1} parent=11 // pred_fallthru
          _
        // Predicated region
        $region21: #{tpu_custom_call.1} parent=11 // pred_check
          %p358 = pneg %p112
        $region22: #{tpu_custom_call.1} parent=11 // pred_check_branch
          %360 = sbr.rel (%p358) target = $region24
        $region23: #{tpu_custom_call.1} parent=11 // pred_region
          %s362 = ssub.s32 512, 512
          %363 = vsyncadd [#allocation5], %s362
          %s364 = sshll.u32 [#allocation4], 4
          %s365 = int_to_ptr.vmem [resolvable:$true] %s364
          %370 = dma.hbm_to_vmem [thread:$0]  %s3, 512, %s365, [#allocation5], 128, 128, 8
        $region24: #{tpu_custom_call.1} parent=11 // pred_fallthru
          _
        // Predicated region
        $region25: #{tpu_custom_call.1} parent=11 // pred_check
          %p371 = pneg %p133
        $region26: #{tpu_custom_call.1} parent=11 // pred_check_branch
          %373 = sbr.rel (%p371) target = $region28
        $region27: #{tpu_custom_call.1} parent=11 // pred_region
          %s375 = ssub.s32 8192, 8192
          %376 = vsyncadd [#allocation5], %s375
          %s377 = sshll.u32 [#allocation6], 4
          %s378 = int_to_ptr.vmem [resolvable:$true] %s377
          %383 = dma.hbm_to_vmem [thread:$0]  %s4, 8192, %s378, [#allocation5], 2048, 2048, 128
        $region28: #{tpu_custom_call.1} parent=11 // pred_fallthru
          _
        // Predicated region
        $region29: #{tpu_custom_call.1} parent=11 // pred_check
          %p384 = pneg %p154
        $region30: #{tpu_custom_call.1} parent=11 // pred_check_branch
          %386 = sbr.rel (%p384) target = $region32
        $region31: #{tpu_custom_call.1} parent=11 // pred_region
          %s388 = ssub.s32 8192, 8192
          %389 = vsyncadd [#allocation8], %s388
          %s390 = sshll.u32 [#allocation7], 4
          %s391 = int_to_ptr.vmem [resolvable:$true] %s390
          %396 = dma.hbm_to_vmem [thread:$0]  %s5, 8192, %s391, [#allocation8], 2048, 2048, 128
        $region32: #{tpu_custom_call.1} parent=11 // pred_fallthru
          _
        // Predicated region
        $region33: #{tpu_custom_call.1} parent=11 // pred_check
          %p397 = pneg %p175
        $region34: #{tpu_custom_call.1} parent=11 // pred_check_branch
          %399 = sbr.rel (%p397) target = $region36
        $region35: #{tpu_custom_call.1} parent=11 // pred_region
          _
        $region36: #{tpu_custom_call.1} parent=11 // pred_fallthru
          _
        // Predicated region
        $region37: #{tpu_custom_call.1} parent=11 // pred_check
          %p400 = pneg %p196
        $region38: #{tpu_custom_call.1} parent=11 // pred_check_branch
          %402 = sbr.rel (%p400) target = $region40
        $region39: #{tpu_custom_call.1} parent=11 // pred_region
          %s404 = ssub.s32 384, 384
          %405 = vsyncadd [#allocation8], %s404
          %s406 = sshll.u32 [#allocation9], 4
          %s407 = int_to_ptr.vmem [resolvable:$true] %s406
          %412 = dma.hbm_to_vmem [thread:$0]  %s7, 384, %s407, [#allocation8], 128, 128, 8
        $region40: #{tpu_custom_call.1} parent=11 // pred_fallthru
          _
        // Predicated region
        $region41: #{tpu_custom_call.1} parent=11 // pred_check
          %p413 = pneg %p217
        $region42: #{tpu_custom_call.1} parent=11 // pred_check_branch
          %415 = sbr.rel (%p413) target = $region44
        $region43: #{tpu_custom_call.1} parent=11 // pred_region
          _
        $region44: #{tpu_custom_call.1} parent=11 // pred_fallthru
          _
        // Predicated region
        $region45: #{tpu_custom_call.1} parent=11 // pred_check
          %p416 = pneg %p238
        $region46: #{tpu_custom_call.1} parent=11 // pred_check_branch
          %418 = sbr.rel (%p416) target = $region48
        $region47: #{tpu_custom_call.1} parent=11 // pred_region
          %s420 = ssub.s32 6144, 6144
          %421 = vsyncadd [#allocation11], %s420
          %s422 = sshll.u32 [#allocation10], 4
          %s423 = int_to_ptr.vmem [resolvable:$true] %s422
          %428 = dma.hbm_to_vmem [thread:$0]  %s9, 6144, %s423, [#allocation11], 2048, 2048, 128
        $region48: #{tpu_custom_call.1} parent=11 // pred_fallthru
          _
        // Predicated region
        $region49: #{tpu_custom_call.1} parent=11 // pred_check
          %p429 = pneg %p259
        $region50: #{tpu_custom_call.1} parent=11 // pred_check_branch
          %431 = sbr.rel (%p429) target = $region52
        $region51: #{tpu_custom_call.1} parent=11 // pred_region
          _
        $region52: #{tpu_custom_call.1} parent=11 // pred_fallthru
          _
        // Predicated region
        $region53: #{tpu_custom_call.1} parent=11 // pred_check
          %p432 = pneg %p280
        $region54: #{tpu_custom_call.1} parent=11 // pred_check_branch
          %434 = sbr.rel (%p432) target = $region56
        $region55: #{tpu_custom_call.1} parent=11 // pred_region
          %s436 = ssub.s32 512, 512
          %437 = vsyncadd [#allocation11], %s436
          %s438 = sshll.u32 [#allocation12], 4
          %s439 = int_to_ptr.vmem [resolvable:$true] %s438
          %444 = dma.hbm_to_vmem [thread:$0]  %s11, 512, %s439, [#allocation11], 128, 128, 8
        $region56: #{tpu_custom_call.1} parent=11 // pred_fallthru
          _
        // Predicated region
        $region57: #{tpu_custom_call.1} parent=11 // pred_check
          %p445 = pneg %p301
        $region58: #{tpu_custom_call.1} parent=11 // pred_check_branch
          %447 = sbr.rel (%p445) target = $region60
        $region59: #{tpu_custom_call.1} parent=11 // pred_region
          _
        $region60: #{tpu_custom_call.1} parent=11 // pred_fallthru
          _
      $region12: #{tpu_custom_call.1} parent=5 // pred_fallthru
        _
      %p448 = scmp.lt.s32.totalorder %s23, 2
      // Predicated region
      $region61: #{tpu_custom_call.1} parent=5 // pred_check
        %p449 = pneg %p448
      $region62: #{tpu_custom_call.1} parent=5 // pred_check_branch
        %451 = sbr.rel (%p449) target = $region64
      $region63: #{tpu_custom_call.1} parent=5 // pred_region
        // Predicated region
        $region65: #{tpu_custom_call.1} parent=63 // pred_check
          %p452 = pneg %p43
        $region66: #{tpu_custom_call.1} parent=63 // pred_check_branch
          %454 = sbr.rel (%p452) target = $region68
        $region67: #{tpu_custom_call.1} parent=63 // pred_region
          %s455 = smul.u32 4, %s23
          %p456 = scmp.lt.s32.totalorder %s455, 7
          %s457 = scalar_select %p456, %s455, 7
          %s458 = smul.addr %s457, 8
          %s459 = scalar_lea.vmem %s0, %s458
          %s460 = smul.u32 4, %s23
        $region68: #{tpu_custom_call.1} parent=63 // pred_fallthru
          _
      $region64: #{tpu_custom_call.1} parent=5 // pred_fallthru
        _
      %p461 = scmp.le.s32.totalorder 1, %s23
      %p462 = scmp.lt.s32.totalorder %s23, 3
      %p463 = pnand %p461, %p462
      %p464 = pneg %p463
      // Predicated region
      $region69: #{tpu_custom_call.1} parent=5 // pred_check
        _
      $region70: #{tpu_custom_call.1} parent=5 // pred_check_branch
        %466 = sbr.rel (%p463) target = $region72
      $region71: #{tpu_custom_call.1} parent=5 // pred_region
        %s467 = ssub.s32 %s23, 1
        // Predicated region
        $region73: #{tpu_custom_call.1} parent=71 // pred_check
          %p468 = pneg %p70
        $region74: #{tpu_custom_call.1} parent=71 // pred_check_branch
          %470 = sbr.rel (%p468) target = $region76
        $region75: #{tpu_custom_call.1} parent=71 // pred_region
          %471 = dma.done [#allocation3], 384
        $region76: #{tpu_custom_call.1} parent=71 // pred_fallthru
          _
        // Predicated region
        $region77: #{tpu_custom_call.1} parent=71 // pred_check
          %p472 = pneg %p112
        $region78: #{tpu_custom_call.1} parent=71 // pred_check_branch
          %474 = sbr.rel (%p472) target = $region80
        $region79: #{tpu_custom_call.1} parent=71 // pred_region
          %475 = dma.done [#allocation5], 512
        $region80: #{tpu_custom_call.1} parent=71 // pred_fallthru
          _
        // Predicated region
        $region81: #{tpu_custom_call.1} parent=71 // pred_check
          %p476 = pneg %p133
        $region82: #{tpu_custom_call.1} parent=71 // pred_check_branch
          %478 = sbr.rel (%p476) target = $region84
        $region83: #{tpu_custom_call.1} parent=71 // pred_region
          %479 = dma.done [#allocation5], 8192
        $region84: #{tpu_custom_call.1} parent=71 // pred_fallthru
          _
        // Predicated region
        $region85: #{tpu_custom_call.1} parent=71 // pred_check
          %p480 = pneg %p154
        $region86: #{tpu_custom_call.1} parent=71 // pred_check_branch
          %482 = sbr.rel (%p480) target = $region88
        $region87: #{tpu_custom_call.1} parent=71 // pred_region
          %483 = dma.done [#allocation8], 8192
        $region88: #{tpu_custom_call.1} parent=71 // pred_fallthru
          _
        // Predicated region
        $region89: #{tpu_custom_call.1} parent=71 // pred_check
          %p484 = pneg %p196
        $region90: #{tpu_custom_call.1} parent=71 // pred_check_branch
          %486 = sbr.rel (%p484) target = $region92
        $region91: #{tpu_custom_call.1} parent=71 // pred_region
          %487 = dma.done [#allocation8], 384
        $region92: #{tpu_custom_call.1} parent=71 // pred_fallthru
          _
        // Predicated region
        $region93: #{tpu_custom_call.1} parent=71 // pred_check
          %p488 = pneg %p238
        $region94: #{tpu_custom_call.1} parent=71 // pred_check_branch
          %490 = sbr.rel (%p488) target = $region96
        $region95: #{tpu_custom_call.1} parent=71 // pred_region
          %491 = dma.done [#allocation11], 6144
        $region96: #{tpu_custom_call.1} parent=71 // pred_fallthru
          _
        // Predicated region
        $region97: #{tpu_custom_call.1} parent=71 // pred_check
          %p492 = pneg %p280
        $region98: #{tpu_custom_call.1} parent=71 // pred_check_branch
          %494 = sbr.rel (%p492) target = $region100
        $region99: #{tpu_custom_call.1} parent=71 // pred_region
          %495 = dma.done [#allocation11], 512
        $region100: #{tpu_custom_call.1} parent=71 // pred_fallthru
          _
        %s496 = smul.u32 4, %s28
        %p497 = scmp.lt.s32.totalorder %s496, 7
        %s498 = scalar_select %p497, %s496, 7
        %s499 = smul.addr %s498, 8
        %s500 = scalar_lea.vmem %s0, %s499
        %p501 = pneg %p49
        %p502 = pneg %p46
        %p503 = pneg %p70
        %p504 = pneg %p67
        %p505 = pneg %p91
        %p506 = pneg %p88
        %p507 = pneg %p112
        %p508 = pneg %p109
        %p509 = pneg %p133
        %p510 = pneg %p130
        %p511 = pneg %p154
        %p512 = pneg %p151
        %p513 = pneg %p175
        %p514 = pneg %p172
        %p515 = pneg %p196
        %p516 = pneg %p193
        %p517 = pneg %p217
        %p518 = pneg %p214
        %p519 = pneg %p238
        %p520 = pneg %p235
        %p521 = pneg %p259
        %p522 = pneg %p256
        %p523 = pneg %p280
        %p524 = pneg %p277
        %p525 = pneg %p301
        %p526 = pneg %p298
        %p527 = pneg %p327
        %p528 = pneg %p324
        %s529 = smul.u32 4, %s28
        %p530 = scmp.lt.s32.totalorder %s529, 7
        %s531 = scalar_select %p530, %s529, 7
        %s532 = smul.addr %s531, 8
        %s533 = scalar_lea.vmem %s13, %s532
        %s534 = smul.u32 4, %s28
        %p535 = scmp.lt.s32.totalorder %s534, 7
        %s536 = scalar_select %p535, %s534, 7
        %s537 = smul.addr %s536, 8
        %s538 = scalar_lea.vmem %s0, %s537
        %s539 = smul.u32 4, %s28
        %s540 = smul.u32 4, %s28
        %p541 = scmp.lt.s32.totalorder %s540, 7
        %s542 = scalar_select %p541, %s540, 7
        %s543 = smul.addr %s542, 8
        %s544 = scalar_lea.vmem %s13, %s543
        %s545 = smul.u32 4, %s28
        %v546 = vld [vmem:[%s538] sm:$0xff]
        %v547 = vld [vmem:[%s538 + $0x8] sm:$0xff]
        %v548 = vld [vmem:[%s538 + $0x10] sm:$0xff]
        %v549 = vld [vmem:[%s538 + $0x18] sm:$0xff]
        %v550 = vld [vmem:[%s12] sm:$0xff]
        %v551 = vld [vmem:[#allocation2] sm:$0xff]
        %v552 = vld [vmem:[#allocation2 + $0x8] sm:$0xff]
        %v553 = vld [vmem:[#allocation2 + $0x10] sm:$0xf]
        %v554 = vlaneseq
        %v555 = vshrl.u32 %v554, 7
        %v556 = vsub.s32 0, %v555
        %v557 = vrot.slane %v550, %v556
        %vm558 = vcmask 162816
        %v560 = vsel %vm558, %v546, 0
        %v563 = vsel %vm558, %v547, 0
        %v566 = vsel %vm558, %v548, 0
        %v569 = vsel %vm558, %v549, 0
        %vm571 = vcmask 1043456
        %v573 = vsel %vm571, %v553, 0
        %575 = vmatprep.subr.mxu0 0.0
        %576 = vmatpush1.msra.mxu0 %v551
        %577 = vmatprep.subr.mxu0 0.0
        %578 = vmatpush1.msra.mxu0 %v552
        %579 = vmatprep.subr.mxu0 0.0
        %580 = vmatpush1.msra.mxu0 %v573
        %581 = vmatprep.subr.mxu0 0.0
        %582 = vmatpush1.msra.mxu0 0.0
        %583 = vmatprep.subr.mxu0 0.0
        %584 = vmatpush1.msra.mxu0 0.0
        %585 = vmatprep.subr.mxu0 0.0
        %586 = vmatpush1.msra.mxu0 0.0
        %587 = vmatprep.subr.mxu0 0.0
        %588 = vmatpush1.msra.mxu0 0.0
        %589 = vmatprep.subr.mxu0 0.0
        %590 = vmatpush1.msra.mxu0 0.0
        %591 = vmatprep.subr.mxu0 0.0
        %592 = vmatpush1.msra.mxu0 0.0
        %593 = vmatprep.subr.mxu0 0.0
        %594 = vmatpush1.msra.mxu0 0.0
        %595 = vmatprep.subr.mxu0 0.0
        %596 = vmatpush1.msra.mxu0 0.0
        %597 = vmatprep.subr.mxu0 0.0
        %598 = vmatpush1.msra.mxu0 0.0
        %599 = vmatprep.subr.mxu0 0.0
        %600 = vmatpush1.msra.mxu0 0.0
        %601 = vmatprep.subr.mxu0 0.0
        %602 = vmatpush1.msra.mxu0 0.0
        %603 = vmatprep.subr.mxu0 0.0
        %604 = vmatpush1.msra.mxu0 0.0
        %605 = vmatprep.subr.mxu0 0.0
        %606 = vmatpush1.msra.mxu0 0.0
        %607 = vmatprep.subr.mxu0 0.0
        %608 = vmatpush1.msra.mxu0 0.0
        %609 = vmatprep.subr.mxu0 0.0
        %610 = vmatpush1.msra.mxu0 0.0
        %611 = vmatprep.subr.mxu0 0.0
        %612 = vmatpush1.msra.mxu0 0.0
        %613 = vmatprep.subr.mxu0 0.0
        %614 = vmatpush1.msra.mxu0 0.0
        %615 = vmatprep.subr.mxu0 0.0
        %616 = vmatpush1.msra.mxu0 0.0
        %617 = vmatprep.subr.mxu0 0.0
        %618 = vmatpush1.msra.mxu0 0.0
        %619 = vmatprep.subr.mxu0 0.0
        %620 = vmatpush1.msra.mxu0 0.0
        %621 = vmatprep.subr.mxu0 0.0
        %622 = vmatpush1.msra.mxu0 0.0
        %623 = vmatprep.subr.mxu0 0.0
        %624 = vmatpush1.msra.mxu0 0.0
        %625 = vmatprep.subr.mxu0 0.0
        %626 = vmatpush1.msra.mxu0 0.0
        %627 = vmatprep.subr.mxu0 0.0
        %628 = vmatpush1.msra.mxu0 0.0
        %629 = vmatprep.subr.mxu0 0.0
        %630 = vmatpush1.msra.mxu0 0.0
        %631 = vmatprep.subr.mxu0 0.0
        %632 = vmatpush1.msra.mxu0 0.0
        %633 = vmatprep.subr.mxu0 0.0
        %634 = vmatpush1.msra.mxu0 0.0
        %635 = vmatprep.subr.mxu0 0.0
        %636 = vmatpush1.msra.mxu0 0.0
        %637 = vmatprep.subr.mxu0 0.0
        %638 = vmatpush1.msra.mxu0 0.0
        %639 = vmatprep.mubr.f32.mxu0 0.0
        %640 = vmatmul.mubr.f32.gmra.mrb[0].mxu0 %v560
        %v641 = vpop.f32.mrb[0].mxu0
        %v642 = vadd.f32 %v557, %v641
        %v643 = vpop.f32.mrb[0].mxu0
        %644 = vmatprep.mubr.f32.mxu0 0.0
        %645 = vmatmul.mubr.f32.gmra.mrb[0].mxu0 %v563
        %v646 = vpop.f32.mrb[0].mxu0
        %v647 = vadd.f32 %v557, %v646
        %v648 = vpop.f32.mrb[0].mxu0
        %649 = vmatprep.mubr.f32.mxu0 0.0
        %650 = vmatmul.mubr.f32.gmra.mrb[0].mxu0 %v566
        %v651 = vpop.f32.mrb[0].mxu0
        %v652 = vadd.f32 %v557, %v651
        %v653 = vpop.f32.mrb[0].mxu0
        %654 = vmatprep.mubr.f32.mxu0 0.0
        %655 = vmatmul.mubr.f32.gmra.mrb[0].mxu0 %v569
        %v656 = vpop.f32.mrb[0].mxu0
        %v657 = vadd.f32 %v557, %v656
        %v658 = vpop.f32.mrb[0].mxu0
        %659 = vdwg.mxu0
        %v660 = vtanh.pop %v642
        %v661 = vtanh.pop %v647
        %v662 = vtanh.pop %v652
        %v663 = vtanh.pop %v657
        %v664 = vld [vmem:[%s2] sm:$0xff]
        %v665 = vld [vmem:[%s2 + $0x8] sm:$0xff]
        %v666 = vld [vmem:[%s2 + $0x10] sm:$0xff]
        %v667 = vld [vmem:[%s2 + $0x18] sm:$0x3f]
        %v668 = vlaneseq
        %v669 = vshrl.u32 %v668, 7
        %v670 = vsub.s32 1, %v669
        %v671 = vrot.slane %v550, %v670
        %vm672 = vcmask 244736
        %v674 = vsel %vm672, %v660, 0
        %v677 = vsel %vm672, %v661, 0
        %v680 = vsel %vm672, %v662, 0
        %v683 = vsel %vm672, %v663, 0
        %vm685 = vcmask 1045504
        %v687 = vsel %vm685, %v667, 0
        %689 = vmatprep.subr.mxu0 0.0
        %690 = vmatpush1.msra.mxu0 %v664
        %691 = vmatprep.subr.mxu0 0.0
        %692 = vmatpush1.msra.mxu0 %v665
        %693 = vmatprep.subr.mxu0 0.0
        %694 = vmatpush1.msra.mxu0 %v666
        %695 = vmatprep.subr.mxu0 0.0
        %696 = vmatpush1.msra.mxu0 %v687
        %697 = vmatprep.subr.mxu0 0.0
        %698 = vmatpush1.msra.mxu0 0.0
        %699 = vmatprep.subr.mxu0 0.0
        %700 = vmatpush1.msra.mxu0 0.0
        %701 = vmatprep.subr.mxu0 0.0
        %702 = vmatpush1.msra.mxu0 0.0
        %703 = vmatprep.subr.mxu0 0.0
        %704 = vmatpush1.msra.mxu0 0.0
        %705 = vmatprep.subr.mxu0 0.0
        %706 = vmatpush1.msra.mxu0 0.0
        %707 = vmatprep.subr.mxu0 0.0
        %708 = vmatpush1.msra.mxu0 0.0
        %709 = vmatprep.subr.mxu0 0.0
        %710 = vmatpush1.msra.mxu0 0.0
        %711 = vmatprep.subr.mxu0 0.0
        %712 = vmatpush1.msra.mxu0 0.0
        %713 = vmatprep.subr.mxu0 0.0
        %714 = vmatpush1.msra.mxu0 0.0
        %715 = vmatprep.subr.mxu0 0.0
        %716 = vmatpush1.msra.mxu0 0.0
        %717 = vmatprep.subr.mxu0 0.0
        %718 = vmatpush1.msra.mxu0 0.0
        %719 = vmatprep.subr.mxu0 0.0
        %720 = vmatpush1.msra.mxu0 0.0
        %721 = vmatprep.subr.mxu0 0.0
        %722 = vmatpush1.msra.mxu0 0.0
        %723 = vmatprep.subr.mxu0 0.0
        %724 = vmatpush1.msra.mxu0 0.0
        %725 = vmatprep.subr.mxu0 0.0
        %726 = vmatpush1.msra.mxu0 0.0
        %727 = vmatprep.subr.mxu0 0.0
        %728 = vmatpush1.msra.mxu0 0.0
        %729 = vmatprep.subr.mxu0 0.0
        %730 = vmatpush1.msra.mxu0 0.0
        %731 = vmatprep.subr.mxu0 0.0
        %732 = vmatpush1.msra.mxu0 0.0
        %733 = vmatprep.subr.mxu0 0.0
        %734 = vmatpush1.msra.mxu0 0.0
        %735 = vmatprep.subr.mxu0 0.0
        %736 = vmatpush1.msra.mxu0 0.0
        %737 = vmatprep.subr.mxu0 0.0
        %738 = vmatpush1.msra.mxu0 0.0
        %739 = vmatprep.subr.mxu0 0.0
        %740 = vmatpush1.msra.mxu0 0.0
        %741 = vmatprep.subr.mxu0 0.0
        %742 = vmatpush1.msra.mxu0 0.0
        %743 = vmatprep.subr.mxu0 0.0
        %744 = vmatpush1.msra.mxu0 0.0
        %745 = vmatprep.subr.mxu0 0.0
        %746 = vmatpush1.msra.mxu0 0.0
        %747 = vmatprep.subr.mxu0 0.0
        %748 = vmatpush1.msra.mxu0 0.0
        %749 = vmatprep.subr.mxu0 0.0
        %750 = vmatpush1.msra.mxu0 0.0
        %751 = vmatprep.subr.mxu0 0.0
        %752 = vmatpush1.msra.mxu0 0.0
        %753 = vmatprep.mubr.f32.mxu0 0.0
        %754 = vmatmul.mubr.f32.gmra.mrb[0].mxu0 %v674
        %v755 = vpop.f32.mrb[0].mxu0
        %v756 = vadd.f32 %v671, %v755
        %v757 = vpop.f32.mrb[0].mxu0
        %758 = vmatprep.mubr.f32.mxu0 0.0
        %759 = vmatmul.mubr.f32.gmra.mrb[0].mxu0 %v677
        %v760 = vpop.f32.mrb[0].mxu0
        %v761 = vadd.f32 %v671, %v760
        %v762 = vpop.f32.mrb[0].mxu0
        %763 = vmatprep.mubr.f32.mxu0 0.0
        %764 = vmatmul.mubr.f32.gmra.mrb[0].mxu0 %v680
        %v765 = vpop.f32.mrb[0].mxu0
        %v766 = vadd.f32 %v671, %v765
        %v767 = vpop.f32.mrb[0].mxu0
        %768 = vmatprep.mubr.f32.mxu0 0.0
        %769 = vmatmul.mubr.f32.gmra.mrb[0].mxu0 %v683
        %v770 = vpop.f32.mrb[0].mxu0
        %v771 = vadd.f32 %v671, %v770
        %v772 = vpop.f32.mrb[0].mxu0
        %773 = vdwg.mxu0
        %v774 = vld [vmem:[#allocation4] sm:$0xff]
        %v775 = vld [vmem:[#allocation4 + $0x8] sm:$0xff]
        %v776 = vld [vmem:[#allocation4 + $0x10] sm:$0xff]
        %v777 = vld [vmem:[#allocation4 + $0x18] sm:$0x3f]
        %v778 = vld [vmem:[#allocation6] sm:$0xff]
        %v779 = vld [vmem:[#allocation6 + $0x8] sm:$0xff]
        %v780 = vld [vmem:[#allocation6 + $0x10] sm:$0xff]
        %v781 = vld [vmem:[#allocation6 + $0x18] sm:$0xff]
        %v782 = vld [vmem:[#allocation6 + $0x20] sm:$0xff]
        %v783 = vld [vmem:[#allocation6 + $0x28] sm:$0xff]
        %v784 = vld [vmem:[#allocation6 + $0x30] sm:$0xff]
        %v785 = vld [vmem:[#allocation6 + $0x38] sm:$0xff]
        %v786 = vld [vmem:[#allocation6 + $0x40] sm:$0xff]
        %v787 = vld [vmem:[#allocation6 + $0x48] sm:$0xff]
        %v788 = vld [vmem:[#allocation6 + $0x50] sm:$0xff]
        %v789 = vld [vmem:[#allocation6 + $0x58] sm:$0xff]
        %v790 = vld [vmem:[#allocation6 + $0x60] sm:$0xff]
        %v791 = vld [vmem:[#allocation6 + $0x68] sm:$0xff]
        %v792 = vld [vmem:[#allocation6 + $0x70] sm:$0xff]
        %v793 = vld [vmem:[#allocation6 + $0x78] sm:$0xff]
        %v794 = vld [vmem:[#allocation6 + $0x80] sm:$0xff]
        %v795 = vld [vmem:[#allocation6 + $0x88] sm:$0xff]
        %v796 = vld [vmem:[#allocation6 + $0x90] sm:$0xff]
        %v797 = vld [vmem:[#allocation6 + $0x98] sm:$0xff]
        %v798 = vld [vmem:[#allocation6 + $0xa0] sm:$0xff]
        %v799 = vld [vmem:[#allocation6 + $0xa8] sm:$0xff]
        %v800 = vld [vmem:[#allocation6 + $0xb0] sm:$0xff]
        %v801 = vld [vmem:[#allocation6 + $0xb8] sm:$0xff]
        %v802 = vld [vmem:[#allocation6 + $0xc0] sm:$0xff]
        %v803 = vld [vmem:[#allocation6 + $0xc8] sm:$0xff]
        %v804 = vld [vmem:[#allocation6 + $0xd0] sm:$0xff]
        %v805 = vld [vmem:[#allocation6 + $0xd8] sm:$0xff]
        %v806 = vld [vmem:[#allocation6 + $0xe0] sm:$0xff]
        %v807 = vld [vmem:[#allocation6 + $0xe8] sm:$0xff]
        %v808 = vld [vmem:[#allocation6 + $0xf0] sm:$0xff]
        %v809 = vld [vmem:[#allocation6 + $0xf8] sm:$0xff]
        %v810 = vld [vmem:[#allocation6 + $0x100] sm:$0xff]
        %v811 = vld [vmem:[#allocation6 + $0x108] sm:$0xff]
        %v812 = vld [vmem:[#allocation6 + $0x110] sm:$0xff]
        %v813 = vld [vmem:[#allocation6 + $0x118] sm:$0xff]
        %v814 = vld [vmem:[#allocation6 + $0x120] sm:$0xff]
        %v815 = vld [vmem:[#allocation6 + $0x128] sm:$0xff]
        %v816 = vld [vmem:[#allocation6 + $0x130] sm:$0xff]
        %v817 = vld [vmem:[#allocation6 + $0x138] sm:$0xff]
        %v818 = vld [vmem:[#allocation6 + $0x140] sm:$0xff]
        %v819 = vld [vmem:[#allocation6 + $0x148] sm:$0xff]
        %v820 = vld [vmem:[#allocation6 + $0x150] sm:$0xff]
        %v821 = vld [vmem:[#allocation6 + $0x158] sm:$0xff]
        %v822 = vld [vmem:[#allocation6 + $0x160] sm:$0xff]
        %v823 = vld [vmem:[#allocation6 + $0x168] sm:$0xff]
        %v824 = vld [vmem:[#allocation6 + $0x170] sm:$0xff]
        %v825 = vld [vmem:[#allocation6 + $0x178] sm:$0xff]
        %v826 = vld [vmem:[#allocation6 + $0x180] sm:$0x3f]
        %v827 = vld [vmem:[#allocation6 + $0x188] sm:$0x3f]
        %v828 = vld [vmem:[#allocation6 + $0x190] sm:$0x3f]
        %v829 = vld [vmem:[#allocation6 + $0x198] sm:$0x3f]
        %v830 = vld [vmem:[#allocation6 + $0x1a0] sm:$0x3f]
        %v831 = vld [vmem:[#allocation6 + $0x1a8] sm:$0x3f]
        %v832 = vld [vmem:[#allocation6 + $0x1b0] sm:$0x3f]
        %v833 = vld [vmem:[#allocation6 + $0x1b8] sm:$0x3f]
        %v834 = vld [vmem:[#allocation6 + $0x1c0] sm:$0x3f]
        %v835 = vld [vmem:[#allocation6 + $0x1c8] sm:$0x3f]
        %v836 = vld [vmem:[#allocation6 + $0x1d0] sm:$0x3f]
        %v837 = vld [vmem:[#allocation6 + $0x1d8] sm:$0x3f]
        %v838 = vld [vmem:[#allocation6 + $0x1e0] sm:$0x3f]
        %v839 = vld [vmem:[#allocation6 + $0x1e8] sm:$0x3f]
        %v840 = vld [vmem:[#allocation6 + $0x1f0] sm:$0x3f]
        %v841 = vld [vmem:[#allocation6 + $0x1f8] sm:$0x3f]
        %v842 = vld [vmem:[#allocation7] sm:$0xff]
        %v843 = vld [vmem:[#allocation7 + $0x8] sm:$0xff]
        %v844 = vld [vmem:[#allocation7 + $0x10] sm:$0xff]
        %v845 = vld [vmem:[#allocation7 + $0x18] sm:$0xff]
        %v846 = vld [vmem:[#allocation7 + $0x20] sm:$0xff]
        %v847 = vld [vmem:[#allocation7 + $0x28] sm:$0xff]
        %v848 = vld [vmem:[#allocation7 + $0x30] sm:$0xff]
        %v849 = vld [vmem:[#allocation7 + $0x38] sm:$0xff]
        %v850 = vld [vmem:[#allocation7 + $0x40] sm:$0xff]
        %v851 = vld [vmem:[#allocation7 + $0x48] sm:$0xff]
        %v852 = vld [vmem:[#allocation7 + $0x50] sm:$0xff]
        %v853 = vld [vmem:[#allocation7 + $0x58] sm:$0xff]
        %v854 = vld [vmem:[#allocation7 + $0x60] sm:$0xff]
        %v855 = vld [vmem:[#allocation7 + $0x68] sm:$0xff]
        %v856 = vld [vmem:[#allocation7 + $0x70] sm:$0xff]
        %v857 = vld [vmem:[#allocation7 + $0x78] sm:$0xff]
        %v858 = vld [vmem:[#allocation7 + $0x80] sm:$0xff]
        %v859 = vld [vmem:[#allocation7 + $0x88] sm:$0xff]
        %v860 = vld [vmem:[#allocation7 + $0x90] sm:$0xff]
        %v861 = vld [vmem:[#allocation7 + $0x98] sm:$0xff]
        %v862 = vld [vmem:[#allocation7 + $0xa0] sm:$0xff]
        %v863 = vld [vmem:[#allocation7 + $0xa8] sm:$0xff]
        %v864 = vld [vmem:[#allocation7 + $0xb0] sm:$0xff]
        %v865 = vld [vmem:[#allocation7 + $0xb8] sm:$0xff]
        %v866 = vld [vmem:[#allocation7 + $0xc0] sm:$0xff]
        %v867 = vld [vmem:[#allocation7 + $0xc8] sm:$0xff]
        %v868 = vld [vmem:[#allocation7 + $0xd0] sm:$0xff]
        %v869 = vld [vmem:[#allocation7 + $0xd8] sm:$0xff]
        %v870 = vld [vmem:[#allocation7 + $0xe0] sm:$0xff]
        %v871 = vld [vmem:[#allocation7 + $0xe8] sm:$0xff]
        %v872 = vld [vmem:[#allocation7 + $0xf0] sm:$0xff]
        %v873 = vld [vmem:[#allocation7 + $0xf8] sm:$0xff]
        %v874 = vld [vmem:[#allocation7 + $0x100] sm:$0xff]
        %v875 = vld [vmem:[#allocation7 + $0x108] sm:$0xff]
        %v876 = vld [vmem:[#allocation7 + $0x110] sm:$0xff]
        %v877 = vld [vmem:[#allocation7 + $0x118] sm:$0xff]
        %v878 = vld [vmem:[#allocation7 + $0x120] sm:$0xff]
        %v879 = vld [vmem:[#allocation7 + $0x128] sm:$0xff]
        %v880 = vld [vmem:[#allocation7 + $0x130] sm:$0xff]
        %v881 = vld [vmem:[#allocation7 + $0x138] sm:$0xff]
        %v882 = vld [vmem:[#allocation7 + $0x140] sm:$0xff]
        %v883 = vld [vmem:[#allocation7 + $0x148] sm:$0xff]
        %v884 = vld [vmem:[#allocation7 + $0x150] sm:$0xff]
        %v885 = vld [vmem:[#allocation7 + $0x158] sm:$0xff]
        %v886 = vld [vmem:[#allocation7 + $0x160] sm:$0xff]
        %v887 = vld [vmem:[#allocation7 + $0x168] sm:$0xff]
        %v888 = vld [vmem:[#allocation7 + $0x170] sm:$0xff]
        %v889 = vld [vmem:[#allocation7 + $0x178] sm:$0xff]
        %v890 = vld [vmem:[#allocation7 + $0x180] sm:$0x3f]
        %v891 = vld [vmem:[#allocation7 + $0x188] sm:$0x3f]
        %v892 = vld [vmem:[#allocation7 + $0x190] sm:$0x3f]
        %v893 = vld [vmem:[#allocation7 + $0x198] sm:$0x3f]
        %v894 = vld [vmem:[#allocation7 + $0x1a0] sm:$0x3f]
        %v895 = vld [vmem:[#allocation7 + $0x1a8] sm:$0x3f]
        %v896 = vld [vmem:[#allocation7 + $0x1b0] sm:$0x3f]
        %v897 = vld [vmem:[#allocation7 + $0x1b8] sm:$0x3f]
        %v898 = vld [vmem:[#allocation7 + $0x1c0] sm:$0x3f]
        %v899 = vld [vmem:[#allocation7 + $0x1c8] sm:$0x3f]
        %v900 = vld [vmem:[#allocation7 + $0x1d0] sm:$0x3f]
        %v901 = vld [vmem:[#allocation7 + $0x1d8] sm:$0x3f]
        %v902 = vld [vmem:[#allocation7 + $0x1e0] sm:$0x3f]
        %v903 = vld [vmem:[#allocation7 + $0x1e8] sm:$0x3f]
        %v904 = vld [vmem:[#allocation7 + $0x1f0] sm:$0x3f]
        %v905 = vld [vmem:[#allocation7 + $0x1f8] sm:$0x3f]
        %v906 = vld [vmem:[%s6] sm:$0xff]
        %v907 = vld [vmem:[%s6 + $0x8] sm:$0xff]
        %v908 = vld [vmem:[%s6 + $0x10] sm:$0xff]
        %v909 = vld [vmem:[%s6 + $0x18] sm:$0xff]
        %v910 = vld [vmem:[%s6 + $0x20] sm:$0xff]
        %v911 = vld [vmem:[%s6 + $0x28] sm:$0xff]
        %v912 = vld [vmem:[%s6 + $0x30] sm:$0xff]
        %v913 = vld [vmem:[%s6 + $0x38] sm:$0xff]
        %v914 = vld [vmem:[%s6 + $0x40] sm:$0xff]
        %v915 = vld [vmem:[%s6 + $0x48] sm:$0xff]
        %v916 = vld [vmem:[%s6 + $0x50] sm:$0xff]
        %v917 = vld [vmem:[%s6 + $0x58] sm:$0xff]
        %v918 = vld [vmem:[%s6 + $0x60] sm:$0xff]
        %v919 = vld [vmem:[%s6 + $0x68] sm:$0xff]
        %v920 = vld [vmem:[%s6 + $0x70] sm:$0xff]
        %v921 = vld [vmem:[%s6 + $0x78] sm:$0xff]
        %v923 = vsel %vm685, %v777, 0
        %925 = vmatprep.subr.mxu0 0.0
        %926 = vmatpush1.msra.mxu0 %v774
        %927 = vmatprep.subr.mxu0 0.0
        %928 = vmatpush1.msra.mxu0 %v775
        %929 = vmatprep.subr.mxu0 0.0
        %930 = vmatpush1.msra.mxu0 %v776
        %931 = vmatprep.subr.mxu0 0.0
        %932 = vmatpush1.msra.mxu0 %v923
        %933 = vmatprep.subr.mxu0 0.0
        %934 = vmatpush1.msra.mxu0 0.0
        %935 = vmatprep.subr.mxu0 0.0
        %936 = vmatpush1.msra.mxu0 0.0
        %937 = vmatprep.subr.mxu0 0.0
        %938 = vmatpush1.msra.mxu0 0.0
        %939 = vmatprep.subr.mxu0 0.0
        %940 = vmatpush1.msra.mxu0 0.0
        %941 = vmatprep.subr.mxu0 0.0
        %942 = vmatpush1.msra.mxu0 0.0
        %943 = vmatprep.subr.mxu0 0.0
        %944 = vmatpush1.msra.mxu0 0.0
        %945 = vmatprep.subr.mxu0 0.0
        %946 = vmatpush1.msra.mxu0 0.0
        %947 = vmatprep.subr.mxu0 0.0
        %948 = vmatpush1.msra.mxu0 0.0
        %949 = vmatprep.subr.mxu0 0.0
        %950 = vmatpush1.msra.mxu0 0.0
        %951 = vmatprep.subr.mxu0 0.0
        %952 = vmatpush1.msra.mxu0 0.0
        %953 = vmatprep.subr.mxu0 0.0
        %954 = vmatpush1.msra.mxu0 0.0
        %955 = vmatprep.subr.mxu0 0.0
        %956 = vmatpush1.msra.mxu0 0.0
        %957 = vmatprep.subr.mxu0 0.0
        %958 = vmatpush1.msra.mxu0 0.0
        %959 = vmatprep.subr.mxu0 0.0
        %960 = vmatpush1.msra.mxu0 0.0
        %961 = vmatprep.subr.mxu0 0.0
        %962 = vmatpush1.msra.mxu0 0.0
        %963 = vmatprep.subr.mxu0 0.0
        %964 = vmatpush1.msra.mxu0 0.0
        %965 = vmatprep.subr.mxu0 0.0
        %966 = vmatpush1.msra.mxu0 0.0
        %967 = vmatprep.subr.mxu0 0.0
        %968 = vmatpush1.msra.mxu0 0.0
        %969 = vmatprep.subr.mxu0 0.0
        %970 = vmatpush1.msra.mxu0 0.0
        %971 = vmatprep.subr.mxu0 0.0
        %972 = vmatpush1.msra.mxu0 0.0
        %973 = vmatprep.subr.mxu0 0.0
        %974 = vmatpush1.msra.mxu0 0.0
        %975 = vmatprep.subr.mxu0 0.0
        %976 = vmatpush1.msra.mxu0 0.0
        %977 = vmatprep.subr.mxu0 0.0
        %978 = vmatpush1.msra.mxu0 0.0
        %979 = vmatprep.subr.mxu0 0.0
        %980 = vmatpush1.msra.mxu0 0.0
        %981 = vmatprep.subr.mxu0 0.0
        %982 = vmatpush1.msra.mxu0 0.0
        %983 = vmatprep.subr.mxu0 0.0
        %984 = vmatpush1.msra.mxu0 0.0
        %985 = vmatprep.subr.mxu0 0.0
        %986 = vmatpush1.msra.mxu0 0.0
        %987 = vmatprep.subr.mxu0 0.0
        %988 = vmatpush1.msra.mxu0 0.0
        %989 = vmatprep.mubr.f32.mxu0 0.0
        %990 = vmatmul.mubr.f32.gmra.mrb[0].mxu0 %v674
        %v991 = vpop.f32.mrb[0].mxu0
        %v992 = vadd.f32 0.0, %v991
        %v993 = vpop.f32.mrb[0].mxu0
        %994 = vmatprep.mubr.f32.mxu0 0.0
        %995 = vmatmul.mubr.f32.gmra.mrb[0].mxu0 %v677
        %v996 = vpop.f32.mrb[0].mxu0
        %v997 = vadd.f32 0.0, %v996
        %v998 = vpop.f32.mrb[0].mxu0
        %999 = vmatprep.mubr.f32.mxu0 0.0
        %1000 = vmatmul.mubr.f32.gmra.mrb[0].mxu0 %v680
        %v1001 = vpop.f32.mrb[0].mxu0
        %v1002 = vadd.f32 0.0, %v1001
        %v1003 = vpop.f32.mrb[0].mxu0
        %1004 = vmatprep.mubr.f32.mxu0 0.0
        %1005 = vmatmul.mubr.f32.gmra.mrb[0].mxu0 %v683
        %v1006 = vpop.f32.mrb[0].mxu0
        %v1007 = vadd.f32 0.0, %v1006
        %v1008 = vpop.f32.mrb[0].mxu0
        %1009 = vdwg.mxu0
        %v1011 = vsel %vm685, %v826, 0
        %v1014 = vsel %vm685, %v827, 0
        %v1017 = vsel %vm685, %v828, 0
        %v1020 = vsel %vm685, %v829, 0
        %v1023 = vsel %vm685, %v830, 0
        %v1026 = vsel %vm685, %v831, 0
        %v1029 = vsel %vm685, %v832, 0
        %v1032 = vsel %vm685, %v833, 0
        %v1035 = vsel %vm685, %v834, 0
        %v1038 = vsel %vm685, %v835, 0
        %v1041 = vsel %vm685, %v836, 0
        %v1044 = vsel %vm685, %v837, 0
        %v1047 = vsel %vm685, %v838, 0
        %v1050 = vsel %vm685, %v839, 0
        %v1053 = vsel %vm685, %v840, 0
        %v1056 = vsel %vm685, %v841, 0
        %1058 = vmatprep.subr.mxu0 %v779
        %1059 = vmatpush1.msra.mxu0 %v778
        %1060 = vmatprep.subr.mxu0 %v795
        %1061 = vmatpush1.msra.mxu0 %v794
        %1062 = vmatprep.subr.mxu0 %v811
        %1063 = vmatpush1.msra.mxu0 %v810
        %1064 = vmatprep.subr.mxu0 %v1014
        %1065 = vmatpush1.msra.mxu0 %v1011
        %1066 = vmatprep.subr.mxu0 0.0
        %1067 = vmatpush1.msra.mxu0 0.0
        %1068 = vmatprep.subr.mxu0 0.0
        %1069 = vmatpush1.msra.mxu0 0.0
        %1070 = vmatprep.subr.mxu0 0.0
        %1071 = vmatpush1.msra.mxu0 0.0
        %1072 = vmatprep.subr.mxu0 0.0
        %1073 = vmatpush1.msra.mxu0 0.0
        %1074 = vmatprep.subr.mxu0 0.0
        %1075 = vmatpush1.msra.mxu0 0.0
        %1076 = vmatprep.subr.mxu0 0.0
        %1077 = vmatpush1.msra.mxu0 0.0
        %1078 = vmatprep.subr.mxu0 0.0
        %1079 = vmatpush1.msra.mxu0 0.0
        %1080 = vmatprep.subr.mxu0 0.0
        %1081 = vmatpush1.msra.mxu0 0.0
        %1082 = vmatprep.subr.mxu0 0.0
        %1083 = vmatpush1.msra.mxu0 0.0
        %1084 = vmatprep.subr.mxu0 0.0
        %1085 = vmatpush1.msra.mxu0 0.0
        %1086 = vmatprep.subr.mxu0 0.0
        %1087 = vmatpush1.msra.mxu0 0.0
        %1088 = vmatprep.subr.mxu0 0.0
        %1089 = vmatpush1.msra.mxu0 0.0
        %1090 = vmatprep.subr.mxu0 0.0
        %1091 = vmatpush1.msra.mxu0 0.0
        %1092 = vmatprep.subr.mxu0 0.0
        %1093 = vmatpush1.msra.mxu0 0.0
        %1094 = vmatprep.subr.mxu0 0.0
        %1095 = vmatpush1.msra.mxu0 0.0
        %1096 = vmatprep.subr.mxu0 0.0
        %1097 = vmatpush1.msra.mxu0 0.0
        %1098 = vmatprep.subr.mxu0 0.0
        %1099 = vmatpush1.msra.mxu0 0.0
        %1100 = vmatprep.subr.mxu0 0.0
        %1101 = vmatpush1.msra.mxu0 0.0
        %1102 = vmatprep.subr.mxu0 0.0
        %1103 = vmatpush1.msra.mxu0 0.0
        %1104 = vmatprep.subr.mxu0 0.0
        %1105 = vmatpush1.msra.mxu0 0.0
        %1106 = vmatprep.subr.mxu0 0.0
        %1107 = vmatpush1.msra.mxu0 0.0
        %1108 = vmatprep.subr.mxu0 0.0
        %1109 = vmatpush1.msra.mxu0 0.0
        %1110 = vmatprep.subr.mxu0 0.0
        %1111 = vmatpush1.msra.mxu0 0.0
        %1112 = vmatprep.subr.mxu0 0.0
        %1113 = vmatpush1.msra.mxu0 0.0
        %1114 = vmatprep.subr.mxu0 0.0
        %1115 = vmatpush1.msra.mxu0 0.0
        %1116 = vmatprep.subr.mxu0 0.0
        %1117 = vmatpush1.msra.mxu0 0.0
        %1118 = vmatprep.subr.mxu0 0.0
        %1119 = vmatpush1.msra.mxu0 0.0
        %1120 = vmatprep.subr.mxu0 0.0
        %1121 = vmatpush1.msra.mxu0 0.0
        %1122 = vmatprep.mubr.f32.mxu0 0.0
        %1123 = vmatmul.mubr.f32.gmra.mrb[0].mxu0 %v674
        %v1124 = vpop.f32.mrb[0].mxu0
        %v1125 = vadd.f32 0.0, %v1124
        %v1126 = vpop.f32.mrb[0].mxu0
        %v1127 = vadd.f32 0.0, %v1126
        %1128 = vmatprep.mubr.f32.mxu0 0.0
        %1129 = vmatmul.mubr.f32.gmra.mrb[0].mxu0 %v677
        %v1130 = vpop.f32.mrb[0].mxu0
        %v1131 = vadd.f32 0.0, %v1130
        %v1132 = vpop.f32.mrb[0].mxu0
        %v1133 = vadd.f32 0.0, %v1132
        %1134 = vmatprep.mubr.f32.mxu0 0.0
        %1135 = vmatmul.mubr.f32.gmra.mrb[0].mxu0 %v680
        %v1136 = vpop.f32.mrb[0].mxu0
        %v1137 = vadd.f32 0.0, %v1136
        %v1138 = vpop.f32.mrb[0].mxu0
        %v1139 = vadd.f32 0.0, %v1138
        %1140 = vmatprep.mubr.f32.mxu0 0.0
        %1141 = vmatmul.mubr.f32.gmra.mrb[0].mxu0 %v683
        %v1142 = vpop.f32.mrb[0].mxu0
        %v1143 = vadd.f32 0.0, %v1142
        %v1144 = vpop.f32.mrb[0].mxu0
        %v1145 = vadd.f32 0.0, %v1144
        %1146 = vdwg.mxu0
        %1147 = vmatprep.subr.mxu0 %v781
        %1148 = vmatpush1.msra.mxu0 %v780
        %1149 = vmatprep.subr.mxu0 %v797
        %1150 = vmatpush1.msra.mxu0 %v796
        %1151 = vmatprep.subr.mxu0 %v813
        %1152 = vmatpush1.msra.mxu0 %v812
        %1153 = vmatprep.subr.mxu0 %v1020
        %1154 = vmatpush1.msra.mxu0 %v1017
        %1155 = vmatprep.subr.mxu0 0.0
        %1156 = vmatpush1.msra.mxu0 0.0
        %1157 = vmatprep.subr.mxu0 0.0
        %1158 = vmatpush1.msra.mxu0 0.0
        %1159 = vmatprep.subr.mxu0 0.0
        %1160 = vmatpush1.msra.mxu0 0.0
        %1161 = vmatprep.subr.mxu0 0.0
        %1162 = vmatpush1.msra.mxu0 0.0
        %1163 = vmatprep.subr.mxu0 0.0
        %1164 = vmatpush1.msra.mxu0 0.0
        %1165 = vmatprep.subr.mxu0 0.0
        %1166 = vmatpush1.msra.mxu0 0.0
        %1167 = vmatprep.subr.mxu0 0.0
        %1168 = vmatpush1.msra.mxu0 0.0
        %1169 = vmatprep.subr.mxu0 0.0
        %1170 = vmatpush1.msra.mxu0 0.0
        %1171 = vmatprep.subr.mxu0 0.0
        %1172 = vmatpush1.msra.mxu0 0.0
        %1173 = vmatprep.subr.mxu0 0.0
        %1174 = vmatpush1.msra.mxu0 0.0
        %1175 = vmatprep.subr.mxu0 0.0
        %1176 = vmatpush1.msra.mxu0 0.0
        %1177 = vmatprep.subr.mxu0 0.0
        %1178 = vmatpush1.msra.mxu0 0.0
        %1179 = vmatprep.subr.mxu0 0.0
        %1180 = vmatpush1.msra.mxu0 0.0
        %1181 = vmatprep.subr.mxu0 0.0
        %1182 = vmatpush1.msra.mxu0 0.0
        %1183 = vmatprep.subr.mxu0 0.0
        %1184 = vmatpush1.msra.mxu0 0.0
        %1185 = vmatprep.subr.mxu0 0.0
        %1186 = vmatpush1.msra.mxu0 0.0
        %1187 = vmatprep.subr.mxu0 0.0
        %1188 = vmatpush1.msra.mxu0 0.0
        %1189 = vmatprep.subr.mxu0 0.0
        %1190 = vmatpush1.msra.mxu0 0.0
        %1191 = vmatprep.subr.mxu0 0.0
        %1192 = vmatpush1.msra.mxu0 0.0
        %1193 = vmatprep.subr.mxu0 0.0
        %1194 = vmatpush1.msra.mxu0 0.0
        %1195 = vmatprep.subr.mxu0 0.0
        %1196 = vmatpush1.msra.mxu0 0.0
        %1197 = vmatprep.subr.mxu0 0.0
        %1198 = vmatpush1.msra.mxu0 0.0
        %1199 = vmatprep.subr.mxu0 0.0
        %1200 = vmatpush1.msra.mxu0 0.0
        %1201 = vmatprep.subr.mxu0 0.0
        %1202 = vmatpush1.msra.mxu0 0.0
        %1203 = vmatprep.subr.mxu0 0.0
        %1204 = vmatpush1.msra.mxu0 0.0
        %1205 = vmatprep.subr.mxu0 0.0
        %1206 = vmatpush1.msra.mxu0 0.0
        %1207 = vmatprep.subr.mxu0 0.0
        %1208 = vmatpush1.msra.mxu0 0.0
        %1209 = vmatprep.subr.mxu0 0.0
        %1210 = vmatpush1.msra.mxu0 0.0
        %1211 = vmatprep.mubr.f32.mxu0 0.0
        %1212 = vmatmul.mubr.f32.gmra.mrb[0].mxu0 %v674
        %v1213 = vpop.f32.mrb[0].mxu0
        %v1214 = vadd.f32 0.0, %v1213
        %v1215 = vpop.f32.mrb[0].mxu0
        %v1216 = vadd.f32 0.0, %v1215
        %1217 = vmatprep.mubr.f32.mxu0 0.0
        %1218 = vmatmul.mubr.f32.gmra.mrb[0].mxu0 %v677
        %v1219 = vpop.f32.mrb[0].mxu0
        %v1220 = vadd.f32 0.0, %v1219
        %v1221 = vpop.f32.mrb[0].mxu0
        %v1222 = vadd.f32 0.0, %v1221
        %1223 = vmatprep.mubr.f32.mxu0 0.0
        %1224 = vmatmul.mubr.f32.gmra.mrb[0].mxu0 %v680
        %v1225 = vpop.f32.mrb[0].mxu0
        %v1226 = vadd.f32 0.0, %v1225
        %v1227 = vpop.f32.mrb[0].mxu0
        %v1228 = vadd.f32 0.0, %v1227
        %1229 = vmatprep.mubr.f32.mxu0 0.0
        %1230 = vmatmul.mubr.f32.gmra.mrb[0].mxu0 %v683
        %v1231 = vpop.f32.mrb[0].mxu0
        %v1232 = vadd.f32 0.0, %v1231
        %v1233 = vpop.f32.mrb[0].mxu0
        %v1234 = vadd.f32 0.0, %v1233
        %1235 = vdwg.mxu0
        %1236 = vmatprep.subr.mxu0 %v783
        %1237 = vmatpush1.msra.mxu0 %v782
        %1238 = vmatprep.subr.mxu0 %v799
        %1239 = vmatpush1.msra.mxu0 %v798
        %1240 = vmatprep.subr.mxu0 %v815
        %1241 = vmatpush1.msra.mxu0 %v814
        %1242 = vmatprep.subr.mxu0 %v1026
        %1243 = vmatpush1.msra.mxu0 %v1023
        %1244 = vmatprep.subr.mxu0 0.0
        %1245 = vmatpush1.msra.mxu0 0.0
        %1246 = vmatprep.subr.mxu0 0.0
        %1247 = vmatpush1.msra.mxu0 0.0
        %1248 = vmatprep.subr.mxu0 0.0
        %1249 = vmatpush1.msra.mxu0 0.0
        %1250 = vmatprep.subr.mxu0 0.0
        %1251 = vmatpush1.msra.mxu0 0.0
        %1252 = vmatprep.subr.mxu0 0.0
        %1253 = vmatpush1.msra.mxu0 0.0
        %1254 = vmatprep.subr.mxu0 0.0
        %1255 = vmatpush1.msra.mxu0 0.0
        %1256 = vmatprep.subr.mxu0 0.0
        %1257 = vmatpush1.msra.mxu0 0.0
        %1258 = vmatprep.subr.mxu0 0.0
        %1259 = vmatpush1.msra.mxu0 0.0
        %1260 = vmatprep.subr.mxu0 0.0
        %1261 = vmatpush1.msra.mxu0 0.0
        %1262 = vmatprep.subr.mxu0 0.0
        %1263 = vmatpush1.msra.mxu0 0.0
        %1264 = vmatprep.subr.mxu0 0.0
        %1265 = vmatpush1.msra.mxu0 0.0
        %1266 = vmatprep.subr.mxu0 0.0
        %1267 = vmatpush1.msra.mxu0 0.0
        %1268 = vmatprep.subr.mxu0 0.0
        %1269 = vmatpush1.msra.mxu0 0.0
        %1270 = vmatprep.subr.mxu0 0.0
        %1271 = vmatpush1.msra.mxu0 0.0
        %1272 = vmatprep.subr.mxu0 0.0
        %1273 = vmatpush1.msra.mxu0 0.0
        %1274 = vmatprep.subr.mxu0 0.0
        %1275 = vmatpush1.msra.mxu0 0.0
        %1276 = vmatprep.subr.mxu0 0.0
        %1277 = vmatpush1.msra.mxu0 0.0
        %1278 = vmatprep.subr.mxu0 0.0
        %1279 = vmatpush1.msra.mxu0 0.0
        %1280 = vmatprep.subr.mxu0 0.0
        %1281 = vmatpush1.msra.mxu0 0.0
        %1282 = vmatprep.subr.mxu0 0.0
        %1283 = vmatpush1.msra.mxu0 0.0
        %1284 = vmatprep.subr.mxu0 0.0
        %1285 = vmatpush1.msra.mxu0 0.0
        %1286 = vmatprep.subr.mxu0 0.0
        %1287 = vmatpush1.msra.mxu0 0.0
        %1288 = vmatprep.subr.mxu0 0.0
        %1289 = vmatpush1.msra.mxu0 0.0
        %1290 = vmatprep.subr.mxu0 0.0
        %1291 = vmatpush1.msra.mxu0 0.0
        %1292 = vmatprep.subr.mxu0 0.0
        %1293 = vmatpush1.msra.mxu0 0.0
        %1294 = vmatprep.subr.mxu0 0.0
        %1295 = vmatpush1.msra.mxu0 0.0
        %1296 = vmatprep.subr.mxu0 0.0
        %1297 = vmatpush1.msra.mxu0 0.0
        %1298 = vmatprep.subr.mxu0 0.0
        %1299 = vmatpush1.msra.mxu0 0.0
        %1300 = vmatprep.mubr.f32.mxu0 0.0
        %1301 = vmatmul.mubr.f32.gmra.mrb[0].mxu0 %v674
        %v1302 = vpop.f32.mrb[0].mxu0
        %v1303 = vadd.f32 0.0, %v1302
        %v1304 = vpop.f32.mrb[0].mxu0
        %v1305 = vadd.f32 0.0, %v1304
        %1306 = vmatprep.mubr.f32.mxu0 0.0
        %1307 = vmatmul.mubr.f32.gmra.mrb[0].mxu0 %v677
        %v1308 = vpop.f32.mrb[0].mxu0
        %v1309 = vadd.f32 0.0, %v1308
        %v1310 = vpop.f32.mrb[0].mxu0
        %v1311 = vadd.f32 0.0, %v1310
        %1312 = vmatprep.mubr.f32.mxu0 0.0
        %1313 = vmatmul.mubr.f32.gmra.mrb[0].mxu0 %v680
        %v1314 = vpop.f32.mrb[0].mxu0
        %v1315 = vadd.f32 0.0, %v1314
        %v1316 = vpop.f32.mrb[0].mxu0
        %v1317 = vadd.f32 0.0, %v1316
        %1318 = vmatprep.mubr.f32.mxu0 0.0
        %1319 = vmatmul.mubr.f32.gmra.mrb[0].mxu0 %v683
        %v1320 = vpop.f32.mrb[0].mxu0
        %v1321 = vadd.f32 0.0, %v1320
        %v1322 = vpop.f32.mrb[0].mxu0
        %v1323 = vadd.f32 0.0, %v1322
        %1324 = vdwg.mxu0
        %1325 = vmatprep.subr.mxu0 %v785
        %1326 = vmatpush1.msra.mxu0 %v784
        %1327 = vmatprep.subr.mxu0 %v801
        %1328 = vmatpush1.msra.mxu0 %v800
        %1329 = vmatprep.subr.mxu0 %v817
        %1330 = vmatpush1.msra.mxu0 %v816
        %1331 = vmatprep.subr.mxu0 %v1032
        %1332 = vmatpush1.msra.mxu0 %v1029
        %1333 = vmatprep.subr.mxu0 0.0
        %1334 = vmatpush1.msra.mxu0 0.0
        %1335 = vmatprep.subr.mxu0 0.0
        %1336 = vmatpush1.msra.mxu0 0.0
        %1337 = vmatprep.subr.mxu0 0.0
        %1338 = vmatpush1.msra.mxu0 0.0
        %1339 = vmatprep.subr.mxu0 0.0
        %1340 = vmatpush1.msra.mxu0 0.0
        %1341 = vmatprep.subr.mxu0 0.0
        %1342 = vmatpush1.msra.mxu0 0.0
        %1343 = vmatprep.subr.mxu0 0.0
        %1344 = vmatpush1.msra.mxu0 0.0
        %1345 = vmatprep.subr.mxu0 0.0
        %1346 = vmatpush1.msra.mxu0 0.0
        %1347 = vmatprep.subr.mxu0 0.0
        %1348 = vmatpush1.msra.mxu0 0.0
        %1349 = vmatprep.subr.mxu0 0.0
        %1350 = vmatpush1.msra.mxu0 0.0
        %1351 = vmatprep.subr.mxu0 0.0
        %1352 = vmatpush1.msra.mxu0 0.0
        %1353 = vmatprep.subr.mxu0 0.0
        %1354 = vmatpush1.msra.mxu0 0.0
        %1355 = vmatprep.subr.mxu0 0.0
        %1356 = vmatpush1.msra.mxu0 0.0
        %1357 = vmatprep.subr.mxu0 0.0
        %1358 = vmatpush1.msra.mxu0 0.0
        %1359 = vmatprep.subr.mxu0 0.0
        %1360 = vmatpush1.msra.mxu0 0.0
        %1361 = vmatprep.subr.mxu0 0.0
        %1362 = vmatpush1.msra.mxu0 0.0
        %1363 = vmatprep.subr.mxu0 0.0
        %1364 = vmatpush1.msra.mxu0 0.0
        %1365 = vmatprep.subr.mxu0 0.0
        %1366 = vmatpush1.msra.mxu0 0.0
        %1367 = vmatprep.subr.mxu0 0.0
        %1368 = vmatpush1.msra.mxu0 0.0
        %1369 = vmatprep.subr.mxu0 0.0
        %1370 = vmatpush1.msra.mxu0 0.0
        %1371 = vmatprep.subr.mxu0 0.0
        %1372 = vmatpush1.msra.mxu0 0.0
        %1373 = vmatprep.subr.mxu0 0.0
        %1374 = vmatpush1.msra.mxu0 0.0
        %1375 = vmatprep.subr.mxu0 0.0
        %1376 = vmatpush1.msra.mxu0 0.0
        %1377 = vmatprep.subr.mxu0 0.0
        %1378 = vmatpush1.msra.mxu0 0.0
        %1379 = vmatprep.subr.mxu0 0.0
        %1380 = vmatpush1.msra.mxu0 0.0
        %1381 = vmatprep.subr.mxu0 0.0
        %1382 = vmatpush1.msra.mxu0 0.0
        %1383 = vmatprep.subr.mxu0 0.0
        %1384 = vmatpush1.msra.mxu0 0.0
        %1385 = vmatprep.subr.mxu0 0.0
        %1386 = vmatpush1.msra.mxu0 0.0
        %1387 = vmatprep.subr.mxu0 0.0
        %1388 = vmatpush1.msra.mxu0 0.0
        %1389 = vmatprep.mubr.f32.mxu0 0.0
        %1390 = vmatmul.mubr.f32.gmra.mrb[0].mxu0 %v674
        %v1391 = vpop.f32.mrb[0].mxu0
        %v1392 = vadd.f32 0.0, %v1391
        %v1393 = vpop.f32.mrb[0].mxu0
        %v1394 = vadd.f32 0.0, %v1393
        %1395 = vmatprep.mubr.f32.mxu0 0.0
        %1396 = vmatmul.mubr.f32.gmra.mrb[0].mxu0 %v677
        %v1397 = vpop.f32.mrb[0].mxu0
        %v1398 = vadd.f32 0.0, %v1397
        %v1399 = vpop.f32.mrb[0].mxu0
        %v1400 = vadd.f32 0.0, %v1399
        %1401 = vmatprep.mubr.f32.mxu0 0.0
        %1402 = vmatmul.mubr.f32.gmra.mrb[0].mxu0 %v680
        %v1403 = vpop.f32.mrb[0].mxu0
        %v1404 = vadd.f32 0.0, %v1403
        %v1405 = vpop.f32.mrb[0].mxu0
        %v1406 = vadd.f32 0.0, %v1405
        %1407 = vmatprep.mubr.f32.mxu0 0.0
        %1408 = vmatmul.mubr.f32.gmra.mrb[0].mxu0 %v683
        %v1409 = vpop.f32.mrb[0].mxu0
        %v1410 = vadd.f32 0.0, %v1409
        %v1411 = vpop.f32.mrb[0].mxu0
        %v1412 = vadd.f32 0.0, %v1411
        %1413 = vdwg.mxu0
        %1414 = vmatprep.subr.mxu0 %v787
        %1415 = vmatpush1.msra.mxu0 %v786
        %1416 = vmatprep.subr.mxu0 %v803
        %1417 = vmatpush1.msra.mxu0 %v802
        %1418 = vmatprep.subr.mxu0 %v819
        %1419 = vmatpush1.msra.mxu0 %v818
        %1420 = vmatprep.subr.mxu0 %v1038
        %1421 = vmatpush1.msra.mxu0 %v1035
        %1422 = vmatprep.subr.mxu0 0.0
        %1423 = vmatpush1.msra.mxu0 0.0
        %1424 = vmatprep.subr.mxu0 0.0
        %1425 = vmatpush1.msra.mxu0 0.0
        %1426 = vmatprep.subr.mxu0 0.0
        %1427 = vmatpush1.msra.mxu0 0.0
        %1428 = vmatprep.subr.mxu0 0.0
        %1429 = vmatpush1.msra.mxu0 0.0
        %1430 = vmatprep.subr.mxu0 0.0
        %1431 = vmatpush1.msra.mxu0 0.0
        %1432 = vmatprep.subr.mxu0 0.0
        %1433 = vmatpush1.msra.mxu0 0.0
        %1434 = vmatprep.subr.mxu0 0.0
        %1435 = vmatpush1.msra.mxu0 0.0
        %1436 = vmatprep.subr.mxu0 0.0
        %1437 = vmatpush1.msra.mxu0 0.0
        %1438 = vmatprep.subr.mxu0 0.0
        %1439 = vmatpush1.msra.mxu0 0.0
        %1440 = vmatprep.subr.mxu0 0.0
        %1441 = vmatpush1.msra.mxu0 0.0
        %1442 = vmatprep.subr.mxu0 0.0
        %1443 = vmatpush1.msra.mxu0 0.0
        %1444 = vmatprep.subr.mxu0 0.0
        %1445 = vmatpush1.msra.mxu0 0.0
        %1446 = vmatprep.subr.mxu0 0.0
        %1447 = vmatpush1.msra.mxu0 0.0
        %1448 = vmatprep.subr.mxu0 0.0
        %1449 = vmatpush1.msra.mxu0 0.0
        %1450 = vmatprep.subr.mxu0 0.0
        %1451 = vmatpush1.msra.mxu0 0.0
        %1452 = vmatprep.subr.mxu0 0.0
        %1453 = vmatpush1.msra.mxu0 0.0
        %1454 = vmatprep.subr.mxu0 0.0
        %1455 = vmatpush1.msra.mxu0 0.0
        %1456 = vmatprep.subr.mxu0 0.0
        %1457 = vmatpush1.msra.mxu0 0.0
        %1458 = vmatprep.subr.mxu0 0.0
        %1459 = vmatpush1.msra.mxu0 0.0
        %1460 = vmatprep.subr.mxu0 0.0
        %1461 = vmatpush1.msra.mxu0 0.0
        %1462 = vmatprep.subr.mxu0 0.0
        %1463 = vmatpush1.msra.mxu0 0.0
        %1464 = vmatprep.subr.mxu0 0.0
        %1465 = vmatpush1.msra.mxu0 0.0
        %1466 = vmatprep.subr.mxu0 0.0
        %1467 = vmatpush1.msra.mxu0 0.0
        %1468 = vmatprep.subr.mxu0 0.0
        %1469 = vmatpush1.msra.mxu0 0.0
        %1470 = vmatprep.subr.mxu0 0.0
        %1471 = vmatpush1.msra.mxu0 0.0
        %1472 = vmatprep.subr.mxu0 0.0
        %1473 = vmatpush1.msra.mxu0 0.0
        %1474 = vmatprep.subr.mxu0 0.0
        %1475 = vmatpush1.msra.mxu0 0.0
        %1476 = vmatprep.subr.mxu0 0.0
        %1477 = vmatpush1.msra.mxu0 0.0
        %1478 = vmatprep.mubr.f32.mxu0 0.0
        %1479 = vmatmul.mubr.f32.gmra.mrb[0].mxu0 %v674
        %v1480 = vpop.f32.mrb[0].mxu0
        %v1481 = vadd.f32 0.0, %v1480
        %v1482 = vpop.f32.mrb[0].mxu0
        %v1483 = vadd.f32 0.0, %v1482
        %1484 = vmatprep.mubr.f32.mxu0 0.0
        %1485 = vmatmul.mubr.f32.gmra.mrb[0].mxu0 %v677
        %v1486 = vpop.f32.mrb[0].mxu0
        %v1487 = vadd.f32 0.0, %v1486
        %v1488 = vpop.f32.mrb[0].mxu0
        %v1489 = vadd.f32 0.0, %v1488
        %1490 = vmatprep.mubr.f32.mxu0 0.0
        %1491 = vmatmul.mubr.f32.gmra.mrb[0].mxu0 %v680
        %v1492 = vpop.f32.mrb[0].mxu0
        %v1493 = vadd.f32 0.0, %v1492
        %v1494 = vpop.f32.mrb[0].mxu0
        %v1495 = vadd.f32 0.0, %v1494
        %1496 = vmatprep.mubr.f32.mxu0 0.0
        %1497 = vmatmul.mubr.f32.gmra.mrb[0].mxu0 %v683
        %v1498 = vpop.f32.mrb[0].mxu0
        %v1499 = vadd.f32 0.0, %v1498
        %v1500 = vpop.f32.mrb[0].mxu0
        %v1501 = vadd.f32 0.0, %v1500
        %1502 = vdwg.mxu0
        %1503 = vmatprep.subr.mxu0 %v789
        %1504 = vmatpush1.msra.mxu0 %v788
        %1505 = vmatprep.subr.mxu0 %v805
        %1506 = vmatpush1.msra.mxu0 %v804
        %1507 = vmatprep.subr.mxu0 %v821
        %1508 = vmatpush1.msra.mxu0 %v820
        %1509 = vmatprep.subr.mxu0 %v1044
        %1510 = vmatpush1.msra.mxu0 %v1041
        %1511 = vmatprep.subr.mxu0 0.0
        %1512 = vmatpush1.msra.mxu0 0.0
        %1513 = vmatprep.subr.mxu0 0.0
        %1514 = vmatpush1.msra.mxu0 0.0
        %1515 = vmatprep.subr.mxu0 0.0
        %1516 = vmatpush1.msra.mxu0 0.0
        %1517 = vmatprep.subr.mxu0 0.0
        %1518 = vmatpush1.msra.mxu0 0.0
        %1519 = vmatprep.subr.mxu0 0.0
        %1520 = vmatpush1.msra.mxu0 0.0
        %1521 = vmatprep.subr.mxu0 0.0
        %1522 = vmatpush1.msra.mxu0 0.0
        %1523 = vmatprep.subr.mxu0 0.0
        %1524 = vmatpush1.msra.mxu0 0.0
        %1525 = vmatprep.subr.mxu0 0.0
        %1526 = vmatpush1.msra.mxu0 0.0
        %1527 = vmatprep.subr.mxu0 0.0
        %1528 = vmatpush1.msra.mxu0 0.0
        %1529 = vmatprep.subr.mxu0 0.0
        %1530 = vmatpush1.msra.mxu0 0.0
        %1531 = vmatprep.subr.mxu0 0.0
        %1532 = vmatpush1.msra.mxu0 0.0
        %1533 = vmatprep.subr.mxu0 0.0
        %1534 = vmatpush1.msra.mxu0 0.0
        %1535 = vmatprep.subr.mxu0 0.0
        %1536 = vmatpush1.msra.mxu0 0.0
        %1537 = vmatprep.subr.mxu0 0.0
        %1538 = vmatpush1.msra.mxu0 0.0
        %1539 = vmatprep.subr.mxu0 0.0
        %1540 = vmatpush1.msra.mxu0 0.0
        %1541 = vmatprep.subr.mxu0 0.0
        %1542 = vmatpush1.msra.mxu0 0.0
        %1543 = vmatprep.subr.mxu0 0.0
        %1544 = vmatpush1.msra.mxu0 0.0
        %1545 = vmatprep.subr.mxu0 0.0
        %1546 = vmatpush1.msra.mxu0 0.0
        %1547 = vmatprep.subr.mxu0 0.0
        %1548 = vmatpush1.msra.mxu0 0.0
        %1549 = vmatprep.subr.mxu0 0.0
        %1550 = vmatpush1.msra.mxu0 0.0
        %1551 = vmatprep.subr.mxu0 0.0
        %1552 = vmatpush1.msra.mxu0 0.0
        %1553 = vmatprep.subr.mxu0 0.0
        %1554 = vmatpush1.msra.mxu0 0.0
        %1555 = vmatprep.subr.mxu0 0.0
        %1556 = vmatpush1.msra.mxu0 0.0
        %1557 = vmatprep.subr.mxu0 0.0
        %1558 = vmatpush1.msra.mxu0 0.0
        %1559 = vmatprep.subr.mxu0 0.0
        %1560 = vmatpush1.msra.mxu0 0.0
        %1561 = vmatprep.subr.mxu0 0.0
        %1562 = vmatpush1.msra.mxu0 0.0
        %1563 = vmatprep.subr.mxu0 0.0
        %1564 = vmatpush1.msra.mxu0 0.0
        %1565 = vmatprep.subr.mxu0 0.0
        %1566 = vmatpush1.msra.mxu0 0.0
        %1567 = vmatprep.mubr.f32.mxu0 0.0
        %1568 = vmatmul.mubr.f32.gmra.mrb[0].mxu0 %v674
        %v1569 = vpop.f32.mrb[0].mxu0
        %v1570 = vadd.f32 0.0, %v1569
        %v1571 = vpop.f32.mrb[0].mxu0
        %v1572 = vadd.f32 0.0, %v1571
        %1573 = vmatprep.mubr.f32.mxu0 0.0
        %1574 = vmatmul.mubr.f32.gmra.mrb[0].mxu0 %v677
        %v1575 = vpop.f32.mrb[0].mxu0
        %v1576 = vadd.f32 0.0, %v1575
        %v1577 = vpop.f32.mrb[0].mxu0
        %v1578 = vadd.f32 0.0, %v1577
        %1579 = vmatprep.mubr.f32.mxu0 0.0
        %1580 = vmatmul.mubr.f32.gmra.mrb[0].mxu0 %v680
        %v1581 = vpop.f32.mrb[0].mxu0
        %v1582 = vadd.f32 0.0, %v1581
        %v1583 = vpop.f32.mrb[0].mxu0
        %v1584 = vadd.f32 0.0, %v1583
        %1585 = vmatprep.mubr.f32.mxu0 0.0
        %1586 = vmatmul.mubr.f32.gmra.mrb[0].mxu0 %v683
        %v1587 = vpop.f32.mrb[0].mxu0
        %v1588 = vadd.f32 0.0, %v1587
        %v1589 = vpop.f32.mrb[0].mxu0
        %v1590 = vadd.f32 0.0, %v1589
        %1591 = vdwg.mxu0
        %1592 = vmatprep.subr.mxu0 %v791
        %1593 = vmatpush1.msra.mxu0 %v790
        %1594 = vmatprep.subr.mxu0 %v807
        %1595 = vmatpush1.msra.mxu0 %v806
        %1596 = vmatprep.subr.mxu0 %v823
        %1597 = vmatpush1.msra.mxu0 %v822
        %1598 = vmatprep.subr.mxu0 %v1050
        %1599 = vmatpush1.msra.mxu0 %v1047
        %1600 = vmatprep.subr.mxu0 0.0
        %1601 = vmatpush1.msra.mxu0 0.0
        %1602 = vmatprep.subr.mxu0 0.0
        %1603 = vmatpush1.msra.mxu0 0.0
        %1604 = vmatprep.subr.mxu0 0.0
        %1605 = vmatpush1.msra.mxu0 0.0
        %1606 = vmatprep.subr.mxu0 0.0
        %1607 = vmatpush1.msra.mxu0 0.0
        %1608 = vmatprep.subr.mxu0 0.0
        %1609 = vmatpush1.msra.mxu0 0.0
        %1610 = vmatprep.subr.mxu0 0.0
        %1611 = vmatpush1.msra.mxu0 0.0
        %1612 = vmatprep.subr.mxu0 0.0
        %1613 = vmatpush1.msra.mxu0 0.0
        %1614 = vmatprep.subr.mxu0 0.0
        %1615 = vmatpush1.msra.mxu0 0.0
        %1616 = vmatprep.subr.mxu0 0.0
        %1617 = vmatpush1.msra.mxu0 0.0
        %1618 = vmatprep.subr.mxu0 0.0
        %1619 = vmatpush1.msra.mxu0 0.0
        %1620 = vmatprep.subr.mxu0 0.0
        %1621 = vmatpush1.msra.mxu0 0.0
        %1622 = vmatprep.subr.mxu0 0.0
        %1623 = vmatpush1.msra.mxu0 0.0
        %1624 = vmatprep.subr.mxu0 0.0
        %1625 = vmatpush1.msra.mxu0 0.0
        %1626 = vmatprep.subr.mxu0 0.0
        %1627 = vmatpush1.msra.mxu0 0.0
        %1628 = vmatprep.subr.mxu0 0.0
        %1629 = vmatpush1.msra.mxu0 0.0
        %1630 = vmatprep.subr.mxu0 0.0
        %1631 = vmatpush1.msra.mxu0 0.0
        %1632 = vmatprep.subr.mxu0 0.0
        %1633 = vmatpush1.msra.mxu0 0.0
        %1634 = vmatprep.subr.mxu0 0.0
        %1635 = vmatpush1.msra.mxu0 0.0
        %1636 = vmatprep.subr.mxu0 0.0
        %1637 = vmatpush1.msra.mxu0 0.0
        %1638 = vmatprep.subr.mxu0 0.0
        %1639 = vmatpush1.msra.mxu0 0.0
        %1640 = vmatprep.subr.mxu0 0.0
        %1641 = vmatpush1.msra.mxu0 0.0
        %1642 = vmatprep.subr.mxu0 0.0
        %1643 = vmatpush1.msra.mxu0 0.0
        %1644 = vmatprep.subr.mxu0 0.0
        %1645 = vmatpush1.msra.mxu0 0.0
        %1646 = vmatprep.subr.mxu0 0.0
        %1647 = vmatpush1.msra.mxu0 0.0
        %1648 = vmatprep.subr.mxu0 0.0
        %1649 = vmatpush1.msra.mxu0 0.0
        %1650 = vmatprep.subr.mxu0 0.0
        %1651 = vmatpush1.msra.mxu0 0.0
        %1652 = vmatprep.subr.mxu0 0.0
        %1653 = vmatpush1.msra.mxu0 0.0
        %1654 = vmatprep.subr.mxu0 0.0
        %1655 = vmatpush1.msra.mxu0 0.0
        %1656 = vmatprep.mubr.f32.mxu0 0.0
        %1657 = vmatmul.mubr.f32.gmra.mrb[0].mxu0 %v674
        %v1658 = vpop.f32.mrb[0].mxu0
        %v1659 = vadd.f32 0.0, %v1658
        %v1660 = vpop.f32.mrb[0].mxu0
        %v1661 = vadd.f32 0.0, %v1660
        %1662 = vmatprep.mubr.f32.mxu0 0.0
        %1663 = vmatmul.mubr.f32.gmra.mrb[0].mxu0 %v677
        %v1664 = vpop.f32.mrb[0].mxu0
        %v1665 = vadd.f32 0.0, %v1664
        %v1666 = vpop.f32.mrb[0].mxu0
        %v1667 = vadd.f32 0.0, %v1666
        %1668 = vmatprep.mubr.f32.mxu0 0.0
        %1669 = vmatmul.mubr.f32.gmra.mrb[0].mxu0 %v680
        %v1670 = vpop.f32.mrb[0].mxu0
        %v1671 = vadd.f32 0.0, %v1670
        %v1672 = vpop.f32.mrb[0].mxu0
        %v1673 = vadd.f32 0.0, %v1672
        %1674 = vmatprep.mubr.f32.mxu0 0.0
        %1675 = vmatmul.mubr.f32.gmra.mrb[0].mxu0 %v683
        %v1676 = vpop.f32.mrb[0].mxu0
        %v1677 = vadd.f32 0.0, %v1676
        %v1678 = vpop.f32.mrb[0].mxu0
        %v1679 = vadd.f32 0.0, %v1678
        %1680 = vdwg.mxu0
        %1681 = vmatprep.subr.mxu0 %v793
        %1682 = vmatpush1.msra.mxu0 %v792
        %1683 = vmatprep.subr.mxu0 %v809
        %1684 = vmatpush1.msra.mxu0 %v808
        %1685 = vmatprep.subr.mxu0 %v825
        %1686 = vmatpush1.msra.mxu0 %v824
        %1687 = vmatprep.subr.mxu0 %v1056
        %1688 = vmatpush1.msra.mxu0 %v1053
        %1689 = vmatprep.subr.mxu0 0.0
        %1690 = vmatpush1.msra.mxu0 0.0
        %1691 = vmatprep.subr.mxu0 0.0
        %1692 = vmatpush1.msra.mxu0 0.0
        %1693 = vmatprep.subr.mxu0 0.0
        %1694 = vmatpush1.msra.mxu0 0.0
        %1695 = vmatprep.subr.mxu0 0.0
        %1696 = vmatpush1.msra.mxu0 0.0
        %1697 = vmatprep.subr.mxu0 0.0
        %1698 = vmatpush1.msra.mxu0 0.0
        %1699 = vmatprep.subr.mxu0 0.0
        %1700 = vmatpush1.msra.mxu0 0.0
        %1701 = vmatprep.subr.mxu0 0.0
        %1702 = vmatpush1.msra.mxu0 0.0
        %1703 = vmatprep.subr.mxu0 0.0
        %1704 = vmatpush1.msra.mxu0 0.0
        %1705 = vmatprep.subr.mxu0 0.0
        %1706 = vmatpush1.msra.mxu0 0.0
        %1707 = vmatprep.subr.mxu0 0.0
        %1708 = vmatpush1.msra.mxu0 0.0
        %1709 = vmatprep.subr.mxu0 0.0
        %1710 = vmatpush1.msra.mxu0 0.0
        %1711 = vmatprep.subr.mxu0 0.0
        %1712 = vmatpush1.msra.mxu0 0.0
        %1713 = vmatprep.subr.mxu0 0.0
        %1714 = vmatpush1.msra.mxu0 0.0
        %1715 = vmatprep.subr.mxu0 0.0
        %1716 = vmatpush1.msra.mxu0 0.0
        %1717 = vmatprep.subr.mxu0 0.0
        %1718 = vmatpush1.msra.mxu0 0.0
        %1719 = vmatprep.subr.mxu0 0.0
        %1720 = vmatpush1.msra.mxu0 0.0
        %1721 = vmatprep.subr.mxu0 0.0
        %1722 = vmatpush1.msra.mxu0 0.0
        %1723 = vmatprep.subr.mxu0 0.0
        %1724 = vmatpush1.msra.mxu0 0.0
        %1725 = vmatprep.subr.mxu0 0.0
        %1726 = vmatpush1.msra.mxu0 0.0
        %1727 = vmatprep.subr.mxu0 0.0
        %1728 = vmatpush1.msra.mxu0 0.0
        %1729 = vmatprep.subr.mxu0 0.0
        %1730 = vmatpush1.msra.mxu0 0.0
        %1731 = vmatprep.subr.mxu0 0.0
        %1732 = vmatpush1.msra.mxu0 0.0
        %1733 = vmatprep.subr.mxu0 0.0
        %1734 = vmatpush1.msra.mxu0 0.0
        %1735 = vmatprep.subr.mxu0 0.0
        %1736 = vmatpush1.msra.mxu0 0.0
        %1737 = vmatprep.subr.mxu0 0.0
        %1738 = vmatpush1.msra.mxu0 0.0
        %1739 = vmatprep.subr.mxu0 0.0
        %1740 = vmatpush1.msra.mxu0 0.0
        %1741 = vmatprep.subr.mxu0 0.0
        %1742 = vmatpush1.msra.mxu0 0.0
        %1743 = vmatprep.subr.mxu0 0.0
        %1744 = vmatpush1.msra.mxu0 0.0
        %1745 = vmatprep.mubr.f32.mxu0 0.0
        %1746 = vmatmul.mubr.f32.gmra.mrb[0].mxu0 %v674
        %v1747 = vpop.f32.mrb[0].mxu0
        %v1748 = vadd.f32 0.0, %v1747
        %v1749 = vpop.f32.mrb[0].mxu0
        %v1750 = vadd.f32 0.0, %v1749
        %1751 = vmatprep.mubr.f32.mxu0 0.0
        %1752 = vmatmul.mubr.f32.gmra.mrb[0].mxu0 %v677
        %v1753 = vpop.f32.mrb[0].mxu0
        %v1754 = vadd.f32 0.0, %v1753
        %v1755 = vpop.f32.mrb[0].mxu0
        %v1756 = vadd.f32 0.0, %v1755
        %1757 = vmatprep.mubr.f32.mxu0 0.0
        %1758 = vmatmul.mubr.f32.gmra.mrb[0].mxu0 %v680
        %v1759 = vpop.f32.mrb[0].mxu0
        %v1760 = vadd.f32 0.0, %v1759
        %v1761 = vpop.f32.mrb[0].mxu0
        %v1762 = vadd.f32 0.0, %v1761
        %1763 = vmatprep.mubr.f32.mxu0 0.0
        %1764 = vmatmul.mubr.f32.gmra.mrb[0].mxu0 %v683
        %v1765 = vpop.f32.mrb[0].mxu0
        %v1766 = vadd.f32 0.0, %v1765
        %v1767 = vpop.f32.mrb[0].mxu0
        %v1768 = vadd.f32 0.0, %v1767
        %1769 = vdwg.mxu0
        %v1771 = vsel %vm685, %v890, 0
        %v1774 = vsel %vm685, %v891, 0
        %v1777 = vsel %vm685, %v892, 0
        %v1780 = vsel %vm685, %v893, 0
        %v1783 = vsel %vm685, %v894, 0
        %v1786 = vsel %vm685, %v895, 0
        %v1789 = vsel %vm685, %v896, 0
        %v1792 = vsel %vm685, %v897, 0
        %v1795 = vsel %vm685, %v898, 0
        %v1798 = vsel %vm685, %v899, 0
        %v1801 = vsel %vm685, %v900, 0
        %v1804 = vsel %vm685, %v901, 0
        %v1807 = vsel %vm685, %v902, 0
        %v1810 = vsel %vm685, %v903, 0
        %v1813 = vsel %vm685, %v904, 0
        %v1816 = vsel %vm685, %v905, 0
        %1818 = vmatprep.subr.mxu0 %v843
        %1819 = vmatpush1.msra.mxu0 %v842
        %1820 = vmatprep.subr.mxu0 %v859
        %1821 = vmatpush1.msra.mxu0 %v858
        %1822 = vmatprep.subr.mxu0 %v875
        %1823 = vmatpush1.msra.mxu0 %v874
        %1824 = vmatprep.subr.mxu0 %v1774
        %1825 = vmatpush1.msra.mxu0 %v1771
        %1826 = vmatprep.subr.mxu0 0.0
        %1827 = vmatpush1.msra.mxu0 0.0
        %1828 = vmatprep.subr.mxu0 0.0
        %1829 = vmatpush1.msra.mxu0 0.0
        %1830 = vmatprep.subr.mxu0 0.0
        %1831 = vmatpush1.msra.mxu0 0.0
        %1832 = vmatprep.subr.mxu0 0.0
        %1833 = vmatpush1.msra.mxu0 0.0
        %1834 = vmatprep.subr.mxu0 0.0
        %1835 = vmatpush1.msra.mxu0 0.0
        %1836 = vmatprep.subr.mxu0 0.0
        %1837 = vmatpush1.msra.mxu0 0.0
        %1838 = vmatprep.subr.mxu0 0.0
        %1839 = vmatpush1.msra.mxu0 0.0
        %1840 = vmatprep.subr.mxu0 0.0
        %1841 = vmatpush1.msra.mxu0 0.0
        %1842 = vmatprep.subr.mxu0 0.0
        %1843 = vmatpush1.msra.mxu0 0.0
        %1844 = vmatprep.subr.mxu0 0.0
        %1845 = vmatpush1.msra.mxu0 0.0
        %1846 = vmatprep.subr.mxu0 0.0
        %1847 = vmatpush1.msra.mxu0 0.0
        %1848 = vmatprep.subr.mxu0 0.0
        %1849 = vmatpush1.msra.mxu0 0.0
        %1850 = vmatprep.subr.mxu0 0.0
        %1851 = vmatpush1.msra.mxu0 0.0
        %1852 = vmatprep.subr.mxu0 0.0
        %1853 = vmatpush1.msra.mxu0 0.0
        %1854 = vmatprep.subr.mxu0 0.0
        %1855 = vmatpush1.msra.mxu0 0.0
        %1856 = vmatprep.subr.mxu0 0.0
        %1857 = vmatpush1.msra.mxu0 0.0
        %1858 = vmatprep.subr.mxu0 0.0
        %1859 = vmatpush1.msra.mxu0 0.0
        %1860 = vmatprep.subr.mxu0 0.0
        %1861 = vmatpush1.msra.mxu0 0.0
        %1862 = vmatprep.subr.mxu0 0.0
        %1863 = vmatpush1.msra.mxu0 0.0
        %1864 = vmatprep.subr.mxu0 0.0
        %1865 = vmatpush1.msra.mxu0 0.0
        %1866 = vmatprep.subr.mxu0 0.0
        %1867 = vmatpush1.msra.mxu0 0.0
        %1868 = vmatprep.subr.mxu0 0.0
        %1869 = vmatpush1.msra.mxu0 0.0
        %1870 = vmatprep.subr.mxu0 0.0
        %1871 = vmatpush1.msra.mxu0 0.0
        %1872 = vmatprep.subr.mxu0 0.0
        %1873 = vmatpush1.msra.mxu0 0.0
        %1874 = vmatprep.subr.mxu0 0.0
        %1875 = vmatpush1.msra.mxu0 0.0
        %1876 = vmatprep.subr.mxu0 0.0
        %1877 = vmatpush1.msra.mxu0 0.0
        %1878 = vmatprep.subr.mxu0 0.0
        %1879 = vmatpush1.msra.mxu0 0.0
        %1880 = vmatprep.subr.mxu0 0.0
        %1881 = vmatpush1.msra.mxu0 0.0
        %1882 = vmatprep.mubr.f32.mxu0 0.0
        %1883 = vmatmul.mubr.f32.gmra.mrb[0].mxu0 %v674
        %v1884 = vpop.f32.mrb[0].mxu0
        %v1885 = vadd.f32 0.0, %v1884
        %v1886 = vpop.f32.mrb[0].mxu0
        %v1887 = vadd.f32 0.0, %v1886
        %1888 = vmatprep.mubr.f32.mxu0 0.0
        %1889 = vmatmul.mubr.f32.gmra.mrb[0].mxu0 %v677
        %v1890 = vpop.f32.mrb[0].mxu0
        %v1891 = vadd.f32 0.0, %v1890
        %v1892 = vpop.f32.mrb[0].mxu0
        %v1893 = vadd.f32 0.0, %v1892
        %1894 = vmatprep.mubr.f32.mxu0 0.0
        %1895 = vmatmul.mubr.f32.gmra.mrb[0].mxu0 %v680
        %v1896 = vpop.f32.mrb[0].mxu0
        %v1897 = vadd.f32 0.0, %v1896
        %v1898 = vpop.f32.mrb[0].mxu0
        %v1899 = vadd.f32 0.0, %v1898
        %1900 = vmatprep.mubr.f32.mxu0 0.0
        %1901 = vmatmul.mubr.f32.gmra.mrb[0].mxu0 %v683
        %v1902 = vpop.f32.mrb[0].mxu0
        %v1903 = vadd.f32 0.0, %v1902
        %v1904 = vpop.f32.mrb[0].mxu0
        %v1905 = vadd.f32 0.0, %v1904
        %1906 = vdwg.mxu0
        %1907 = vmatprep.subr.mxu0 %v845
        %1908 = vmatpush1.msra.mxu0 %v844
        %1909 = vmatprep.subr.mxu0 %v861
        %1910 = vmatpush1.msra.mxu0 %v860
        %1911 = vmatprep.subr.mxu0 %v877
        %1912 = vmatpush1.msra.mxu0 %v876
        %1913 = vmatprep.subr.mxu0 %v1780
        %1914 = vmatpush1.msra.mxu0 %v1777
        %1915 = vmatprep.subr.mxu0 0.0
        %1916 = vmatpush1.msra.mxu0 0.0
        %1917 = vmatprep.subr.mxu0 0.0
        %1918 = vmatpush1.msra.mxu0 0.0
        %1919 = vmatprep.subr.mxu0 0.0
        %1920 = vmatpush1.msra.mxu0 0.0
        %1921 = vmatprep.subr.mxu0 0.0
        %1922 = vmatpush1.msra.mxu0 0.0
        %1923 = vmatprep.subr.mxu0 0.0
        %1924 = vmatpush1.msra.mxu0 0.0
        %1925 = vmatprep.subr.mxu0 0.0
        %1926 = vmatpush1.msra.mxu0 0.0
        %1927 = vmatprep.subr.mxu0 0.0
        %1928 = vmatpush1.msra.mxu0 0.0
        %1929 = vmatprep.subr.mxu0 0.0
        %1930 = vmatpush1.msra.mxu0 0.0
        %1931 = vmatprep.subr.mxu0 0.0
        %1932 = vmatpush1.msra.mxu0 0.0
        %1933 = vmatprep.subr.mxu0 0.0
        %1934 = vmatpush1.msra.mxu0 0.0
        %1935 = vmatprep.subr.mxu0 0.0
        %1936 = vmatpush1.msra.mxu0 0.0
        %1937 = vmatprep.subr.mxu0 0.0
        %1938 = vmatpush1.msra.mxu0 0.0
        %1939 = vmatprep.subr.mxu0 0.0
        %1940 = vmatpush1.msra.mxu0 0.0
        %1941 = vmatprep.subr.mxu0 0.0
        %1942 = vmatpush1.msra.mxu0 0.0
        %1943 = vmatprep.subr.mxu0 0.0
        %1944 = vmatpush1.msra.mxu0 0.0
        %1945 = vmatprep.subr.mxu0 0.0
        %1946 = vmatpush1.msra.mxu0 0.0
        %1947 = vmatprep.subr.mxu0 0.0
        %1948 = vmatpush1.msra.mxu0 0.0
        %1949 = vmatprep.subr.mxu0 0.0
        %1950 = vmatpush1.msra.mxu0 0.0
        %1951 = vmatprep.subr.mxu0 0.0
        %1952 = vmatpush1.msra.mxu0 0.0
        %1953 = vmatprep.subr.mxu0 0.0
        %1954 = vmatpush1.msra.mxu0 0.0
        %1955 = vmatprep.subr.mxu0 0.0
        %1956 = vmatpush1.msra.mxu0 0.0
        %1957 = vmatprep.subr.mxu0 0.0
        %1958 = vmatpush1.msra.mxu0 0.0
        %1959 = vmatprep.subr.mxu0 0.0
        %1960 = vmatpush1.msra.mxu0 0.0
        %1961 = vmatprep.subr.mxu0 0.0
        %1962 = vmatpush1.msra.mxu0 0.0
        %1963 = vmatprep.subr.mxu0 0.0
        %1964 = vmatpush1.msra.mxu0 0.0
        %1965 = vmatprep.subr.mxu0 0.0
        %1966 = vmatpush1.msra.mxu0 0.0
        %1967 = vmatprep.subr.mxu0 0.0
        %1968 = vmatpush1.msra.mxu0 0.0
        %1969 = vmatprep.subr.mxu0 0.0
        %1970 = vmatpush1.msra.mxu0 0.0
        %1971 = vmatprep.mubr.f32.mxu0 0.0
        %1972 = vmatmul.mubr.f32.gmra.mrb[0].mxu0 %v674
        %v1973 = vpop.f32.mrb[0].mxu0
        %v1974 = vadd.f32 0.0, %v1973
        %v1975 = vpop.f32.mrb[0].mxu0
        %v1976 = vadd.f32 0.0, %v1975
        %1977 = vmatprep.mubr.f32.mxu0 0.0
        %1978 = vmatmul.mubr.f32.gmra.mrb[0].mxu0 %v677
        %v1979 = vpop.f32.mrb[0].mxu0
        %v1980 = vadd.f32 0.0, %v1979
        %v1981 = vpop.f32.mrb[0].mxu0
        %v1982 = vadd.f32 0.0, %v1981
        %1983 = vmatprep.mubr.f32.mxu0 0.0
        %1984 = vmatmul.mubr.f32.gmra.mrb[0].mxu0 %v680
        %v1985 = vpop.f32.mrb[0].mxu0
        %v1986 = vadd.f32 0.0, %v1985
        %v1987 = vpop.f32.mrb[0].mxu0
        %v1988 = vadd.f32 0.0, %v1987
        %1989 = vmatprep.mubr.f32.mxu0 0.0
        %1990 = vmatmul.mubr.f32.gmra.mrb[0].mxu0 %v683
        %v1991 = vpop.f32.mrb[0].mxu0
        %v1992 = vadd.f32 0.0, %v1991
        %v1993 = vpop.f32.mrb[0].mxu0
        %v1994 = vadd.f32 0.0, %v1993
        %1995 = vdwg.mxu0
        %1996 = vmatprep.subr.mxu0 %v847
        %1997 = vmatpush1.msra.mxu0 %v846
        %1998 = vmatprep.subr.mxu0 %v863
        %1999 = vmatpush1.msra.mxu0 %v862
        %2000 = vmatprep.subr.mxu0 %v879
        %2001 = vmatpush1.msra.mxu0 %v878
        %2002 = vmatprep.subr.mxu0 %v1786
        %2003 = vmatpush1.msra.mxu0 %v1783
        %2004 = vmatprep.subr.mxu0 0.0
        %2005 = vmatpush1.msra.mxu0 0.0
        %2006 = vmatprep.subr.mxu0 0.0
        %2007 = vmatpush1.msra.mxu0 0.0
        %2008 = vmatprep.subr.mxu0 0.0
        %2009 = vmatpush1.msra.mxu0 0.0
        %2010 = vmatprep.subr.mxu0 0.0
        %2011 = vmatpush1.msra.mxu0 0.0
        %2012 = vmatprep.subr.mxu0 0.0
        %2013 = vmatpush1.msra.mxu0 0.0
        %2014 = vmatprep.subr.mxu0 0.0
        %2015 = vmatpush1.msra.mxu0 0.0
        %2016 = vmatprep.subr.mxu0 0.0
        %2017 = vmatpush1.msra.mxu0 0.0
        %2018 = vmatprep.subr.mxu0 0.0
        %2019 = vmatpush1.msra.mxu0 0.0
        %2020 = vmatprep.subr.mxu0 0.0
        %2021 = vmatpush1.msra.mxu0 0.0
        %2022 = vmatprep.subr.mxu0 0.0
        %2023 = vmatpush1.msra.mxu0 0.0
        %2024 = vmatprep.subr.mxu0 0.0
        %2025 = vmatpush1.msra.mxu0 0.0
        %2026 = vmatprep.subr.mxu0 0.0
        %2027 = vmatpush1.msra.mxu0 0.0
        %2028 = vmatprep.subr.mxu0 0.0
        %2029 = vmatpush1.msra.mxu0 0.0
        %2030 = vmatprep.subr.mxu0 0.0
        %2031 = vmatpush1.msra.mxu0 0.0
        %2032 = vmatprep.subr.mxu0 0.0
        %2033 = vmatpush1.msra.mxu0 0.0
        %2034 = vmatprep.subr.mxu0 0.0
        %2035 = vmatpush1.msra.mxu0 0.0
        %2036 = vmatprep.subr.mxu0 0.0
        %2037 = vmatpush1.msra.mxu0 0.0
        %2038 = vmatprep.subr.mxu0 0.0
        %2039 = vmatpush1.msra.mxu0 0.0
        %2040 = vmatprep.subr.mxu0 0.0
        %2041 = vmatpush1.msra.mxu0 0.0
        %2042 = vmatprep.subr.mxu0 0.0
        %2043 = vmatpush1.msra.mxu0 0.0
        %2044 = vmatprep.subr.mxu0 0.0
        %2045 = vmatpush1.msra.mxu0 0.0
        %2046 = vmatprep.subr.mxu0 0.0
        %2047 = vmatpush1.msra.mxu0 0.0
        %2048 = vmatprep.subr.mxu0 0.0
        %2049 = vmatpush1.msra.mxu0 0.0
        %2050 = vmatprep.subr.mxu0 0.0
        %2051 = vmatpush1.msra.mxu0 0.0
        %2052 = vmatprep.subr.mxu0 0.0
        %2053 = vmatpush1.msra.mxu0 0.0
        %2054 = vmatprep.subr.mxu0 0.0
        %2055 = vmatpush1.msra.mxu0 0.0
        %2056 = vmatprep.subr.mxu0 0.0
        %2057 = vmatpush1.msra.mxu0 0.0
        %2058 = vmatprep.subr.mxu0 0.0
        %2059 = vmatpush1.msra.mxu0 0.0
        %2060 = vmatprep.mubr.f32.mxu0 0.0
        %2061 = vmatmul.mubr.f32.gmra.mrb[0].mxu0 %v674
        %v2062 = vpop.f32.mrb[0].mxu0
        %v2063 = vadd.f32 0.0, %v2062
        %v2064 = vpop.f32.mrb[0].mxu0
        %v2065 = vadd.f32 0.0, %v2064
        %2066 = vmatprep.mubr.f32.mxu0 0.0
        %2067 = vmatmul.mubr.f32.gmra.mrb[0].mxu0 %v677
        %v2068 = vpop.f32.mrb[0].mxu0
        %v2069 = vadd.f32 0.0, %v2068
        %v2070 = vpop.f32.mrb[0].mxu0
        %v2071 = vadd.f32 0.0, %v2070
        %2072 = vmatprep.mubr.f32.mxu0 0.0
        %2073 = vmatmul.mubr.f32.gmra.mrb[0].mxu0 %v680
        %v2074 = vpop.f32.mrb[0].mxu0
        %v2075 = vadd.f32 0.0, %v2074
        %v2076 = vpop.f32.mrb[0].mxu0
        %v2077 = vadd.f32 0.0, %v2076
        %2078 = vmatprep.mubr.f32.mxu0 0.0
        %2079 = vmatmul.mubr.f32.gmra.mrb[0].mxu0 %v683
        %v2080 = vpop.f32.mrb[0].mxu0
        %v2081 = vadd.f32 0.0, %v2080
        %v2082 = vpop.f32.mrb[0].mxu0
        %v2083 = vadd.f32 0.0, %v2082
        %2084 = vdwg.mxu0
        %2085 = vmatprep.subr.mxu0 %v849
        %2086 = vmatpush1.msra.mxu0 %v848
        %2087 = vmatprep.subr.mxu0 %v865
        %2088 = vmatpush1.msra.mxu0 %v864
        %2089 = vmatprep.subr.mxu0 %v881
        %2090 = vmatpush1.msra.mxu0 %v880
        %2091 = vmatprep.subr.mxu0 %v1792
        %2092 = vmatpush1.msra.mxu0 %v1789
        %2093 = vmatprep.subr.mxu0 0.0
        %2094 = vmatpush1.msra.mxu0 0.0
        %2095 = vmatprep.subr.mxu0 0.0
        %2096 = vmatpush1.msra.mxu0 0.0
        %2097 = vmatprep.subr.mxu0 0.0
        %2098 = vmatpush1.msra.mxu0 0.0
        %2099 = vmatprep.subr.mxu0 0.0
        %2100 = vmatpush1.msra.mxu0 0.0
        %2101 = vmatprep.subr.mxu0 0.0
        %2102 = vmatpush1.msra.mxu0 0.0
        %2103 = vmatprep.subr.mxu0 0.0
        %2104 = vmatpush1.msra.mxu0 0.0
        %2105 = vmatprep.subr.mxu0 0.0
        %2106 = vmatpush1.msra.mxu0 0.0
        %2107 = vmatprep.subr.mxu0 0.0
        %2108 = vmatpush1.msra.mxu0 0.0
        %2109 = vmatprep.subr.mxu0 0.0
        %2110 = vmatpush1.msra.mxu0 0.0
        %2111 = vmatprep.subr.mxu0 0.0
        %2112 = vmatpush1.msra.mxu0 0.0
        %2113 = vmatprep.subr.mxu0 0.0
        %2114 = vmatpush1.msra.mxu0 0.0
        %2115 = vmatprep.subr.mxu0 0.0
        %2116 = vmatpush1.msra.mxu0 0.0
        %2117 = vmatprep.subr.mxu0 0.0
        %2118 = vmatpush1.msra.mxu0 0.0
        %2119 = vmatprep.subr.mxu0 0.0
        %2120 = vmatpush1.msra.mxu0 0.0
        %2121 = vmatprep.subr.mxu0 0.0
        %2122 = vmatpush1.msra.mxu0 0.0
        %2123 = vmatprep.subr.mxu0 0.0
        %2124 = vmatpush1.msra.mxu0 0.0
        %2125 = vmatprep.subr.mxu0 0.0
        %2126 = vmatpush1.msra.mxu0 0.0
        %2127 = vmatprep.subr.mxu0 0.0
        %2128 = vmatpush1.msra.mxu0 0.0
        %2129 = vmatprep.subr.mxu0 0.0
        %2130 = vmatpush1.msra.mxu0 0.0
        %2131 = vmatprep.subr.mxu0 0.0
        %2132 = vmatpush1.msra.mxu0 0.0
        %2133 = vmatprep.subr.mxu0 0.0
        %2134 = vmatpush1.msra.mxu0 0.0
        %2135 = vmatprep.subr.mxu0 0.0
        %2136 = vmatpush1.msra.mxu0 0.0
        %2137 = vmatprep.subr.mxu0 0.0
        %2138 = vmatpush1.msra.mxu0 0.0
        %2139 = vmatprep.subr.mxu0 0.0
        %2140 = vmatpush1.msra.mxu0 0.0
        %2141 = vmatprep.subr.mxu0 0.0
        %2142 = vmatpush1.msra.mxu0 0.0
        %2143 = vmatprep.subr.mxu0 0.0
        %2144 = vmatpush1.msra.mxu0 0.0
        %2145 = vmatprep.subr.mxu0 0.0
        %2146 = vmatpush1.msra.mxu0 0.0
        %2147 = vmatprep.subr.mxu0 0.0
        %2148 = vmatpush1.msra.mxu0 0.0
        %2149 = vmatprep.mubr.f32.mxu0 0.0
        %2150 = vmatmul.mubr.f32.gmra.mrb[0].mxu0 %v674
        %v2151 = vpop.f32.mrb[0].mxu0
        %v2152 = vadd.f32 0.0, %v2151
        %v2153 = vpop.f32.mrb[0].mxu0
        %v2154 = vadd.f32 0.0, %v2153
        %2155 = vmatprep.mubr.f32.mxu0 0.0
        %2156 = vmatmul.mubr.f32.gmra.mrb[0].mxu0 %v677
        %v2157 = vpop.f32.mrb[0].mxu0
        %v2158 = vadd.f32 0.0, %v2157
        %v2159 = vpop.f32.mrb[0].mxu0
        %v2160 = vadd.f32 0.0, %v2159
        %2161 = vmatprep.mubr.f32.mxu0 0.0
        %2162 = vmatmul.mubr.f32.gmra.mrb[0].mxu0 %v680
        %v2163 = vpop.f32.mrb[0].mxu0
        %v2164 = vadd.f32 0.0, %v2163
        %v2165 = vpop.f32.mrb[0].mxu0
        %v2166 = vadd.f32 0.0, %v2165
        %2167 = vmatprep.mubr.f32.mxu0 0.0
        %2168 = vmatmul.mubr.f32.gmra.mrb[0].mxu0 %v683
        %v2169 = vpop.f32.mrb[0].mxu0
        %v2170 = vadd.f32 0.0, %v2169
        %v2171 = vpop.f32.mrb[0].mxu0
        %v2172 = vadd.f32 0.0, %v2171
        %2173 = vdwg.mxu0
        %2174 = vmatprep.subr.mxu0 %v851
        %2175 = vmatpush1.msra.mxu0 %v850
        %2176 = vmatprep.subr.mxu0 %v867
        %2177 = vmatpush1.msra.mxu0 %v866
        %2178 = vmatprep.subr.mxu0 %v883
        %2179 = vmatpush1.msra.mxu0 %v882
        %2180 = vmatprep.subr.mxu0 %v1798
        %2181 = vmatpush1.msra.mxu0 %v1795
        %2182 = vmatprep.subr.mxu0 0.0
        %2183 = vmatpush1.msra.mxu0 0.0
        %2184 = vmatprep.subr.mxu0 0.0
        %2185 = vmatpush1.msra.mxu0 0.0
        %2186 = vmatprep.subr.mxu0 0.0
        %2187 = vmatpush1.msra.mxu0 0.0
        %2188 = vmatprep.subr.mxu0 0.0
        %2189 = vmatpush1.msra.mxu0 0.0
        %2190 = vmatprep.subr.mxu0 0.0
        %2191 = vmatpush1.msra.mxu0 0.0
        %2192 = vmatprep.subr.mxu0 0.0
        %2193 = vmatpush1.msra.mxu0 0.0
        %2194 = vmatprep.subr.mxu0 0.0
        %2195 = vmatpush1.msra.mxu0 0.0
        %2196 = vmatprep.subr.mxu0 0.0
        %2197 = vmatpush1.msra.mxu0 0.0
        %2198 = vmatprep.subr.mxu0 0.0
        %2199 = vmatpush1.msra.mxu0 0.0
        %2200 = vmatprep.subr.mxu0 0.0
        %2201 = vmatpush1.msra.mxu0 0.0
        %2202 = vmatprep.subr.mxu0 0.0
        %2203 = vmatpush1.msra.mxu0 0.0
        %2204 = vmatprep.subr.mxu0 0.0
        %2205 = vmatpush1.msra.mxu0 0.0
        %2206 = vmatprep.subr.mxu0 0.0
        %2207 = vmatpush1.msra.mxu0 0.0
        %2208 = vmatprep.subr.mxu0 0.0
        %2209 = vmatpush1.msra.mxu0 0.0
        %2210 = vmatprep.subr.mxu0 0.0
        %2211 = vmatpush1.msra.mxu0 0.0
        %2212 = vmatprep.subr.mxu0 0.0
        %2213 = vmatpush1.msra.mxu0 0.0
        %2214 = vmatprep.subr.mxu0 0.0
        %2215 = vmatpush1.msra.mxu0 0.0
        %2216 = vmatprep.subr.mxu0 0.0
        %2217 = vmatpush1.msra.mxu0 0.0
        %2218 = vmatprep.subr.mxu0 0.0
        %2219 = vmatpush1.msra.mxu0 0.0
        %2220 = vmatprep.subr.mxu0 0.0
        %2221 = vmatpush1.msra.mxu0 0.0
        %2222 = vmatprep.subr.mxu0 0.0
        %2223 = vmatpush1.msra.mxu0 0.0
        %2224 = vmatprep.subr.mxu0 0.0
        %2225 = vmatpush1.msra.mxu0 0.0
        %2226 = vmatprep.subr.mxu0 0.0
        %2227 = vmatpush1.msra.mxu0 0.0
        %2228 = vmatprep.subr.mxu0 0.0
        %2229 = vmatpush1.msra.mxu0 0.0
        %2230 = vmatprep.subr.mxu0 0.0
        %2231 = vmatpush1.msra.mxu0 0.0
        %2232 = vmatprep.subr.mxu0 0.0
        %2233 = vmatpush1.msra.mxu0 0.0
        %2234 = vmatprep.subr.mxu0 0.0
        %2235 = vmatpush1.msra.mxu0 0.0
        %2236 = vmatprep.subr.mxu0 0.0
        %2237 = vmatpush1.msra.mxu0 0.0
        %2238 = vmatprep.mubr.f32.mxu0 0.0
        %2239 = vmatmul.mubr.f32.gmra.mrb[0].mxu0 %v674
        %v2240 = vpop.f32.mrb[0].mxu0
        %v2241 = vadd.f32 0.0, %v2240
        %v2242 = vpop.f32.mrb[0].mxu0
        %v2243 = vadd.f32 0.0, %v2242
        %2244 = vmatprep.mubr.f32.mxu0 0.0
        %2245 = vmatmul.mubr.f32.gmra.mrb[0].mxu0 %v677
        %v2246 = vpop.f32.mrb[0].mxu0
        %v2247 = vadd.f32 0.0, %v2246
        %v2248 = vpop.f32.mrb[0].mxu0
        %v2249 = vadd.f32 0.0, %v2248
        %2250 = vmatprep.mubr.f32.mxu0 0.0
        %2251 = vmatmul.mubr.f32.gmra.mrb[0].mxu0 %v680
        %v2252 = vpop.f32.mrb[0].mxu0
        %v2253 = vadd.f32 0.0, %v2252
        %v2254 = vpop.f32.mrb[0].mxu0
        %v2255 = vadd.f32 0.0, %v2254
        %2256 = vmatprep.mubr.f32.mxu0 0.0
        %2257 = vmatmul.mubr.f32.gmra.mrb[0].mxu0 %v683
        %v2258 = vpop.f32.mrb[0].mxu0
        %v2259 = vadd.f32 0.0, %v2258
        %v2260 = vpop.f32.mrb[0].mxu0
        %v2261 = vadd.f32 0.0, %v2260
        %2262 = vdwg.mxu0
        %2263 = vmatprep.subr.mxu0 %v853
        %2264 = vmatpush1.msra.mxu0 %v852
        %2265 = vmatprep.subr.mxu0 %v869
        %2266 = vmatpush1.msra.mxu0 %v868
        %2267 = vmatprep.subr.mxu0 %v885
        %2268 = vmatpush1.msra.mxu0 %v884
        %2269 = vmatprep.subr.mxu0 %v1804
        %2270 = vmatpush1.msra.mxu0 %v1801
        %2271 = vmatprep.subr.mxu0 0.0
        %2272 = vmatpush1.msra.mxu0 0.0
        %2273 = vmatprep.subr.mxu0 0.0
        %2274 = vmatpush1.msra.mxu0 0.0
        %2275 = vmatprep.subr.mxu0 0.0
        %2276 = vmatpush1.msra.mxu0 0.0
        %2277 = vmatprep.subr.mxu0 0.0
        %2278 = vmatpush1.msra.mxu0 0.0
        %2279 = vmatprep.subr.mxu0 0.0
        %2280 = vmatpush1.msra.mxu0 0.0
        %2281 = vmatprep.subr.mxu0 0.0
        %2282 = vmatpush1.msra.mxu0 0.0
        %2283 = vmatprep.subr.mxu0 0.0
        %2284 = vmatpush1.msra.mxu0 0.0
        %2285 = vmatprep.subr.mxu0 0.0
        %2286 = vmatpush1.msra.mxu0 0.0
        %2287 = vmatprep.subr.mxu0 0.0
        %2288 = vmatpush1.msra.mxu0 0.0
        %2289 = vmatprep.subr.mxu0 0.0
        %2290 = vmatpush1.msra.mxu0 0.0
        %2291 = vmatprep.subr.mxu0 0.0
        %2292 = vmatpush1.msra.mxu0 0.0
        %2293 = vmatprep.subr.mxu0 0.0
        %2294 = vmatpush1.msra.mxu0 0.0
        %2295 = vmatprep.subr.mxu0 0.0
        %2296 = vmatpush1.msra.mxu0 0.0
        %2297 = vmatprep.subr.mxu0 0.0
        %2298 = vmatpush1.msra.mxu0 0.0
        %2299 = vmatprep.subr.mxu0 0.0
        %2300 = vmatpush1.msra.mxu0 0.0
        %2301 = vmatprep.subr.mxu0 0.0
        %2302 = vmatpush1.msra.mxu0 0.0
        %2303 = vmatprep.subr.mxu0 0.0
        %2304 = vmatpush1.msra.mxu0 0.0
        %2305 = vmatprep.subr.mxu0 0.0
        %2306 = vmatpush1.msra.mxu0 0.0
        %2307 = vmatprep.subr.mxu0 0.0
        %2308 = vmatpush1.msra.mxu0 0.0
        %2309 = vmatprep.subr.mxu0 0.0
        %2310 = vmatpush1.msra.mxu0 0.0
        %2311 = vmatprep.subr.mxu0 0.0
        %2312 = vmatpush1.msra.mxu0 0.0
        %2313 = vmatprep.subr.mxu0 0.0
        %2314 = vmatpush1.msra.mxu0 0.0
        %2315 = vmatprep.subr.mxu0 0.0
        %2316 = vmatpush1.msra.mxu0 0.0
        %2317 = vmatprep.subr.mxu0 0.0
        %2318 = vmatpush1.msra.mxu0 0.0
        %2319 = vmatprep.subr.mxu0 0.0
        %2320 = vmatpush1.msra.mxu0 0.0
        %2321 = vmatprep.subr.mxu0 0.0
        %2322 = vmatpush1.msra.mxu0 0.0
        %2323 = vmatprep.subr.mxu0 0.0
        %2324 = vmatpush1.msra.mxu0 0.0
        %2325 = vmatprep.subr.mxu0 0.0
        %2326 = vmatpush1.msra.mxu0 0.0
        %2327 = vmatprep.mubr.f32.mxu0 0.0
        %2328 = vmatmul.mubr.f32.gmra.mrb[0].mxu0 %v674
        %v2329 = vpop.f32.mrb[0].mxu0
        %v2330 = vadd.f32 0.0, %v2329
        %v2331 = vpop.f32.mrb[0].mxu0
        %v2332 = vadd.f32 0.0, %v2331
        %2333 = vmatprep.mubr.f32.mxu0 0.0
        %2334 = vmatmul.mubr.f32.gmra.mrb[0].mxu0 %v677
        %v2335 = vpop.f32.mrb[0].mxu0
        %v2336 = vadd.f32 0.0, %v2335
        %v2337 = vpop.f32.mrb[0].mxu0
        %v2338 = vadd.f32 0.0, %v2337
        %2339 = vmatprep.mubr.f32.mxu0 0.0
        %2340 = vmatmul.mubr.f32.gmra.mrb[0].mxu0 %v680
        %v2341 = vpop.f32.mrb[0].mxu0
        %v2342 = vadd.f32 0.0, %v2341
        %v2343 = vpop.f32.mrb[0].mxu0
        %v2344 = vadd.f32 0.0, %v2343
        %2345 = vmatprep.mubr.f32.mxu0 0.0
        %2346 = vmatmul.mubr.f32.gmra.mrb[0].mxu0 %v683
        %v2347 = vpop.f32.mrb[0].mxu0
        %v2348 = vadd.f32 0.0, %v2347
        %v2349 = vpop.f32.mrb[0].mxu0
        %v2350 = vadd.f32 0.0, %v2349
        %2351 = vdwg.mxu0
        %2352 = vmatprep.subr.mxu0 %v855
        %2353 = vmatpush1.msra.mxu0 %v854
        %2354 = vmatprep.subr.mxu0 %v871
        %2355 = vmatpush1.msra.mxu0 %v870
        %2356 = vmatprep.subr.mxu0 %v887
        %2357 = vmatpush1.msra.mxu0 %v886
        %2358 = vmatprep.subr.mxu0 %v1810
        %2359 = vmatpush1.msra.mxu0 %v1807
        %2360 = vmatprep.subr.mxu0 0.0
        %2361 = vmatpush1.msra.mxu0 0.0
        %2362 = vmatprep.subr.mxu0 0.0
        %2363 = vmatpush1.msra.mxu0 0.0
        %2364 = vmatprep.subr.mxu0 0.0
        %2365 = vmatpush1.msra.mxu0 0.0
        %2366 = vmatprep.subr.mxu0 0.0
        %2367 = vmatpush1.msra.mxu0 0.0
        %2368 = vmatprep.subr.mxu0 0.0
        %2369 = vmatpush1.msra.mxu0 0.0
        %2370 = vmatprep.subr.mxu0 0.0
        %2371 = vmatpush1.msra.mxu0 0.0
        %2372 = vmatprep.subr.mxu0 0.0
        %2373 = vmatpush1.msra.mxu0 0.0
        %2374 = vmatprep.subr.mxu0 0.0
        %2375 = vmatpush1.msra.mxu0 0.0
        %2376 = vmatprep.subr.mxu0 0.0
        %2377 = vmatpush1.msra.mxu0 0.0
        %2378 = vmatprep.subr.mxu0 0.0
        %2379 = vmatpush1.msra.mxu0 0.0
        %2380 = vmatprep.subr.mxu0 0.0
        %2381 = vmatpush1.msra.mxu0 0.0
        %2382 = vmatprep.subr.mxu0 0.0
        %2383 = vmatpush1.msra.mxu0 0.0
        %2384 = vmatprep.subr.mxu0 0.0
        %2385 = vmatpush1.msra.mxu0 0.0
        %2386 = vmatprep.subr.mxu0 0.0
        %2387 = vmatpush1.msra.mxu0 0.0
        %2388 = vmatprep.subr.mxu0 0.0
        %2389 = vmatpush1.msra.mxu0 0.0
        %2390 = vmatprep.subr.mxu0 0.0
        %2391 = vmatpush1.msra.mxu0 0.0
        %2392 = vmatprep.subr.mxu0 0.0
        %2393 = vmatpush1.msra.mxu0 0.0
        %2394 = vmatprep.subr.mxu0 0.0
        %2395 = vmatpush1.msra.mxu0 0.0
        %2396 = vmatprep.subr.mxu0 0.0
        %2397 = vmatpush1.msra.mxu0 0.0
        %2398 = vmatprep.subr.mxu0 0.0
        %2399 = vmatpush1.msra.mxu0 0.0
        %2400 = vmatprep.subr.mxu0 0.0
        %2401 = vmatpush1.msra.mxu0 0.0
        %2402 = vmatprep.subr.mxu0 0.0
        %2403 = vmatpush1.msra.mxu0 0.0
        %2404 = vmatprep.subr.mxu0 0.0
        %2405 = vmatpush1.msra.mxu0 0.0
        %2406 = vmatprep.subr.mxu0 0.0
        %2407 = vmatpush1.msra.mxu0 0.0
        %2408 = vmatprep.subr.mxu0 0.0
        %2409 = vmatpush1.msra.mxu0 0.0
        %2410 = vmatprep.subr.mxu0 0.0
        %2411 = vmatpush1.msra.mxu0 0.0
        %2412 = vmatprep.subr.mxu0 0.0
        %2413 = vmatpush1.msra.mxu0 0.0
        %2414 = vmatprep.subr.mxu0 0.0
        %2415 = vmatpush1.msra.mxu0 0.0
        %2416 = vmatprep.mubr.f32.mxu0 0.0
        %2417 = vmatmul.mubr.f32.gmra.mrb[0].mxu0 %v674
        %v2418 = vpop.f32.mrb[0].mxu0
        %v2419 = vadd.f32 0.0, %v2418
        %v2420 = vpop.f32.mrb[0].mxu0
        %v2421 = vadd.f32 0.0, %v2420
        %2422 = vmatprep.mubr.f32.mxu0 0.0
        %2423 = vmatmul.mubr.f32.gmra.mrb[0].mxu0 %v677
        %v2424 = vpop.f32.mrb[0].mxu0
        %v2425 = vadd.f32 0.0, %v2424
        %v2426 = vpop.f32.mrb[0].mxu0
        %v2427 = vadd.f32 0.0, %v2426
        %2428 = vmatprep.mubr.f32.mxu0 0.0
        %2429 = vmatmul.mubr.f32.gmra.mrb[0].mxu0 %v680
        %v2430 = vpop.f32.mrb[0].mxu0
        %v2431 = vadd.f32 0.0, %v2430
        %v2432 = vpop.f32.mrb[0].mxu0
        %v2433 = vadd.f32 0.0, %v2432
        %2434 = vmatprep.mubr.f32.mxu0 0.0
        %2435 = vmatmul.mubr.f32.gmra.mrb[0].mxu0 %v683
        %v2436 = vpop.f32.mrb[0].mxu0
        %v2437 = vadd.f32 0.0, %v2436
        %v2438 = vpop.f32.mrb[0].mxu0
        %v2439 = vadd.f32 0.0, %v2438
        %2440 = vdwg.mxu0
        %2441 = vmatprep.subr.mxu0 %v857
        %2442 = vmatpush1.msra.mxu0 %v856
        %2443 = vmatprep.subr.mxu0 %v873
        %2444 = vmatpush1.msra.mxu0 %v872
        %2445 = vmatprep.subr.mxu0 %v889
        %2446 = vmatpush1.msra.mxu0 %v888
        %2447 = vmatprep.subr.mxu0 %v1816
        %2448 = vmatpush1.msra.mxu0 %v1813
        %2449 = vmatprep.subr.mxu0 0.0
        %2450 = vmatpush1.msra.mxu0 0.0
        %2451 = vmatprep.subr.mxu0 0.0
        %2452 = vmatpush1.msra.mxu0 0.0
        %2453 = vmatprep.subr.mxu0 0.0
        %2454 = vmatpush1.msra.mxu0 0.0
        %2455 = vmatprep.subr.mxu0 0.0
        %2456 = vmatpush1.msra.mxu0 0.0
        %2457 = vmatprep.subr.mxu0 0.0
        %2458 = vmatpush1.msra.mxu0 0.0
        %2459 = vmatprep.subr.mxu0 0.0
        %2460 = vmatpush1.msra.mxu0 0.0
        %2461 = vmatprep.subr.mxu0 0.0
        %2462 = vmatpush1.msra.mxu0 0.0
        %2463 = vmatprep.subr.mxu0 0.0
        %2464 = vmatpush1.msra.mxu0 0.0
        %2465 = vmatprep.subr.mxu0 0.0
        %2466 = vmatpush1.msra.mxu0 0.0
        %2467 = vmatprep.subr.mxu0 0.0
        %2468 = vmatpush1.msra.mxu0 0.0
        %2469 = vmatprep.subr.mxu0 0.0
        %2470 = vmatpush1.msra.mxu0 0.0
        %2471 = vmatprep.subr.mxu0 0.0
        %2472 = vmatpush1.msra.mxu0 0.0
        %2473 = vmatprep.subr.mxu0 0.0
        %2474 = vmatpush1.msra.mxu0 0.0
        %2475 = vmatprep.subr.mxu0 0.0
        %2476 = vmatpush1.msra.mxu0 0.0
        %2477 = vmatprep.subr.mxu0 0.0
        %2478 = vmatpush1.msra.mxu0 0.0
        %2479 = vmatprep.subr.mxu0 0.0
        %2480 = vmatpush1.msra.mxu0 0.0
        %2481 = vmatprep.subr.mxu0 0.0
        %2482 = vmatpush1.msra.mxu0 0.0
        %2483 = vmatprep.subr.mxu0 0.0
        %2484 = vmatpush1.msra.mxu0 0.0
        %2485 = vmatprep.subr.mxu0 0.0
        %2486 = vmatpush1.msra.mxu0 0.0
        %2487 = vmatprep.subr.mxu0 0.0
        %2488 = vmatpush1.msra.mxu0 0.0
        %2489 = vmatprep.subr.mxu0 0.0
        %2490 = vmatpush1.msra.mxu0 0.0
        %2491 = vmatprep.subr.mxu0 0.0
        %2492 = vmatpush1.msra.mxu0 0.0
        %2493 = vmatprep.subr.mxu0 0.0
        %2494 = vmatpush1.msra.mxu0 0.0
        %2495 = vmatprep.subr.mxu0 0.0
        %2496 = vmatpush1.msra.mxu0 0.0
        %2497 = vmatprep.subr.mxu0 0.0
        %2498 = vmatpush1.msra.mxu0 0.0
        %2499 = vmatprep.subr.mxu0 0.0
        %2500 = vmatpush1.msra.mxu0 0.0
        %2501 = vmatprep.subr.mxu0 0.0
        %2502 = vmatpush1.msra.mxu0 0.0
        %2503 = vmatprep.subr.mxu0 0.0
        %2504 = vmatpush1.msra.mxu0 0.0
        %2505 = vmatprep.mubr.f32.mxu0 0.0
        %2506 = vmatmul.mubr.f32.gmra.mrb[0].mxu0 %v674
        %v2507 = vpop.f32.mrb[0].mxu0
        %v2508 = vadd.f32 0.0, %v2507
        %v2509 = vpop.f32.mrb[0].mxu0
        %v2510 = vadd.f32 0.0, %v2509
        %2511 = vmatprep.mubr.f32.mxu0 0.0
        %2512 = vmatmul.mubr.f32.gmra.mrb[0].mxu0 %v677
        %v2513 = vpop.f32.mrb[0].mxu0
        %v2514 = vadd.f32 0.0, %v2513
        %v2515 = vpop.f32.mrb[0].mxu0
        %v2516 = vadd.f32 0.0, %v2515
        %2517 = vmatprep.mubr.f32.mxu0 0.0
        %2518 = vmatmul.mubr.f32.gmra.mrb[0].mxu0 %v680
        %v2519 = vpop.f32.mrb[0].mxu0
        %v2520 = vadd.f32 0.0, %v2519
        %v2521 = vpop.f32.mrb[0].mxu0
        %v2522 = vadd.f32 0.0, %v2521
        %2523 = vmatprep.mubr.f32.mxu0 0.0
        %2524 = vmatmul.mubr.f32.gmra.mrb[0].mxu0 %v683
        %v2525 = vpop.f32.mrb[0].mxu0
        %v2526 = vadd.f32 0.0, %v2525
        %v2527 = vpop.f32.mrb[0].mxu0
        %v2528 = vadd.f32 0.0, %v2527
        %2529 = vdwg.mxu0
        %v2530 = vmul.f32 %v992, %v1125
        %v2531 = vmul.f32 %v997, %v1131
        %v2532 = vmul.f32 %v1002, %v1137
        %v2533 = vmul.f32 %v1007, %v1143
        %v2534 = vmul.f32 %v992, %v1127
        %v2535 = vmul.f32 %v997, %v1133
        %v2536 = vmul.f32 %v1002, %v1139
        %v2537 = vmul.f32 %v1007, %v1145
        %v2538 = vmul.f32 %v992, %v1214
        %v2539 = vmul.f32 %v997, %v1220
        %v2540 = vmul.f32 %v1002, %v1226
        %v2541 = vmul.f32 %v1007, %v1232
        %v2542 = vmul.f32 %v992, %v1216
        %v2543 = vmul.f32 %v997, %v1222
        %v2544 = vmul.f32 %v1002, %v1228
        %v2545 = vmul.f32 %v1007, %v1234
        %v2546 = vmul.f32 %v992, %v1303
        %v2547 = vmul.f32 %v997, %v1309
        %v2548 = vmul.f32 %v1002, %v1315
        %v2549 = vmul.f32 %v1007, %v1321
        %v2550 = vmul.f32 %v992, %v1305
        %v2551 = vmul.f32 %v997, %v1311
        %v2552 = vmul.f32 %v1002, %v1317
        %v2553 = vmul.f32 %v1007, %v1323
        %v2554 = vmul.f32 %v992, %v1392
        %v2555 = vmul.f32 %v997, %v1398
        %v2556 = vmul.f32 %v1002, %v1404
        %v2557 = vmul.f32 %v1007, %v1410
        %v2558 = vmul.f32 %v992, %v1394
        %v2559 = vmul.f32 %v997, %v1400
        %v2560 = vmul.f32 %v1002, %v1406
        %v2561 = vmul.f32 %v1007, %v1412
        %v2562 = vmul.f32 %v992, %v1481
        %v2563 = vmul.f32 %v997, %v1487
        %v2564 = vmul.f32 %v1002, %v1493
        %v2565 = vmul.f32 %v1007, %v1499
        %v2566 = vmul.f32 %v992, %v1483
        %v2567 = vmul.f32 %v997, %v1489
        %v2568 = vmul.f32 %v1002, %v1495
        %v2569 = vmul.f32 %v1007, %v1501
        %v2570 = vmul.f32 %v992, %v1570
        %v2571 = vmul.f32 %v997, %v1576
        %v2572 = vmul.f32 %v1002, %v1582
        %v2573 = vmul.f32 %v1007, %v1588
        %v2574 = vmul.f32 %v992, %v1572
        %v2575 = vmul.f32 %v997, %v1578
        %v2576 = vmul.f32 %v1002, %v1584
        %v2577 = vmul.f32 %v1007, %v1590
        %v2578 = vmul.f32 %v992, %v1659
        %v2579 = vmul.f32 %v997, %v1665
        %v2580 = vmul.f32 %v1002, %v1671
        %v2581 = vmul.f32 %v1007, %v1677
        %v2582 = vmul.f32 %v992, %v1661
        %v2583 = vmul.f32 %v997, %v1667
        %v2584 = vmul.f32 %v1002, %v1673
        %v2585 = vmul.f32 %v1007, %v1679
        %v2586 = vmul.f32 %v992, %v1748
        %v2587 = vmul.f32 %v997, %v1754
        %v2588 = vmul.f32 %v1002, %v1760
        %v2589 = vmul.f32 %v1007, %v1766
        %v2590 = vmul.f32 %v992, %v1750
        %v2591 = vmul.f32 %v997, %v1756
        %v2592 = vmul.f32 %v1002, %v1762
        %v2593 = vmul.f32 %v1007, %v1768
        %v2594 = vmax.f32 %v2530, %v2534
        %v2595 = vmax.f32 %v2531, %v2535
        %v2596 = vmax.f32 %v2532, %v2536
        %v2597 = vmax.f32 %v2533, %v2537
        %v2598 = vmax.f32 %v2594, %v2538
        %v2599 = vmax.f32 %v2595, %v2539
        %v2600 = vmax.f32 %v2596, %v2540
        %v2601 = vmax.f32 %v2597, %v2541
        %v2602 = vmax.f32 %v2598, %v2542
        %v2603 = vmax.f32 %v2599, %v2543
        %v2604 = vmax.f32 %v2600, %v2544
        %v2605 = vmax.f32 %v2601, %v2545
        %v2606 = vmax.f32 %v2602, %v2546
        %v2607 = vmax.f32 %v2603, %v2547
        %v2608 = vmax.f32 %v2604, %v2548
        %v2609 = vmax.f32 %v2605, %v2549
        %v2610 = vmax.f32 %v2606, %v2550
        %v2611 = vmax.f32 %v2607, %v2551
        %v2612 = vmax.f32 %v2608, %v2552
        %v2613 = vmax.f32 %v2609, %v2553
        %v2614 = vmax.f32 %v2610, %v2554
        %v2615 = vmax.f32 %v2611, %v2555
        %v2616 = vmax.f32 %v2612, %v2556
        %v2617 = vmax.f32 %v2613, %v2557
        %v2618 = vmax.f32 %v2614, %v2558
        %v2619 = vmax.f32 %v2615, %v2559
        %v2620 = vmax.f32 %v2616, %v2560
        %v2621 = vmax.f32 %v2617, %v2561
        %v2622 = vmax.f32 %v2618, %v2562
        %v2623 = vmax.f32 %v2619, %v2563
        %v2624 = vmax.f32 %v2620, %v2564
        %v2625 = vmax.f32 %v2621, %v2565
        %v2626 = vmax.f32 %v2622, %v2566
        %v2627 = vmax.f32 %v2623, %v2567
        %v2628 = vmax.f32 %v2624, %v2568
        %v2629 = vmax.f32 %v2625, %v2569
        %v2630 = vmax.f32 %v2626, %v2570
        %v2631 = vmax.f32 %v2627, %v2571
        %v2632 = vmax.f32 %v2628, %v2572
        %v2633 = vmax.f32 %v2629, %v2573
        %v2634 = vmax.f32 %v2630, %v2574
        %v2635 = vmax.f32 %v2631, %v2575
        %v2636 = vmax.f32 %v2632, %v2576
        %v2637 = vmax.f32 %v2633, %v2577
        %v2638 = vmax.f32 %v2634, %v2578
        %v2639 = vmax.f32 %v2635, %v2579
        %v2640 = vmax.f32 %v2636, %v2580
        %v2641 = vmax.f32 %v2637, %v2581
        %v2642 = vmax.f32 %v2638, %v2582
        %v2643 = vmax.f32 %v2639, %v2583
        %v2644 = vmax.f32 %v2640, %v2584
        %v2645 = vmax.f32 %v2641, %v2585
        %v2646 = vmax.f32 %v2642, %v2586
        %v2647 = vmax.f32 %v2643, %v2587
        %v2648 = vmax.f32 %v2644, %v2588
        %v2649 = vmax.f32 %v2645, %v2589
        %v2650 = vmax.f32 %v2646, %v2590
        %v2651 = vmax.f32 %v2647, %v2591
        %v2652 = vmax.f32 %v2648, %v2592
        %v2653 = vmax.f32 %v2649, %v2593
        %v2654 = vsub.f32 %v2530, %v2650
        %v2655 = vsub.f32 %v2531, %v2651
        %v2656 = vsub.f32 %v2532, %v2652
        %v2657 = vsub.f32 %v2533, %v2653
        %v2658 = vmul.f32 %v2654, 1.442695
        %v2659 = vpow.pop %v2658
        %v2660 = vmul.f32 %v2655, 1.442695
        %v2661 = vpow.pop %v2660
        %v2662 = vmul.f32 %v2656, 1.442695
        %v2663 = vpow.pop %v2662
        %v2664 = vmul.f32 %v2657, 1.442695
        %v2665 = vpow.pop %v2664
        %v2666 = vadd.f32 %v2659, 0.0
        %v2667 = vadd.f32 %v2661, 0.0
        %v2668 = vadd.f32 %v2663, 0.0
        %v2669 = vadd.f32 %v2665, 0.0
        %v2670 = vmul.f32 %v2659, %v1885
        %v2671 = vmul.f32 %v2661, %v1891
        %v2672 = vmul.f32 %v2663, %v1897
        %v2673 = vmul.f32 %v2665, %v1903
        %v2674 = vadd.f32 %v2670, 0.0
        %v2675 = vadd.f32 %v2671, 0.0
        %v2676 = vadd.f32 %v2672, 0.0
        %v2677 = vadd.f32 %v2673, 0.0
        %v2678 = vsub.f32 %v2534, %v2650
        %v2679 = vsub.f32 %v2535, %v2651
        %v2680 = vsub.f32 %v2536, %v2652
        %v2681 = vsub.f32 %v2537, %v2653
        %v2682 = vmul.f32 %v2678, 1.442695
        %v2683 = vpow.pop %v2682
        %v2684 = vmul.f32 %v2679, 1.442695
        %v2685 = vpow.pop %v2684
        %v2686 = vmul.f32 %v2680, 1.442695
        %v2687 = vpow.pop %v2686
        %v2688 = vmul.f32 %v2681, 1.442695
        %v2689 = vpow.pop %v2688
        %v2690 = vadd.f32 %v2666, %v2683
        %v2691 = vadd.f32 %v2667, %v2685
        %v2692 = vadd.f32 %v2668, %v2687
        %v2693 = vadd.f32 %v2669, %v2689
        %v2694 = vmul.f32 %v2683, %v1887
        %v2695 = vmul.f32 %v2685, %v1893
        %v2696 = vmul.f32 %v2687, %v1899
        %v2697 = vmul.f32 %v2689, %v1905
        %v2698 = vadd.f32 %v2674, %v2694
        %v2699 = vadd.f32 %v2675, %v2695
        %v2700 = vadd.f32 %v2676, %v2696
        %v2701 = vadd.f32 %v2677, %v2697
        %v2702 = vsub.f32 %v2538, %v2650
        %v2703 = vsub.f32 %v2539, %v2651
        %v2704 = vsub.f32 %v2540, %v2652
        %v2705 = vsub.f32 %v2541, %v2653
        %v2706 = vmul.f32 %v2702, 1.442695
        %v2707 = vpow.pop %v2706
        %v2708 = vmul.f32 %v2703, 1.442695
        %v2709 = vpow.pop %v2708
        %v2710 = vmul.f32 %v2704, 1.442695
        %v2711 = vpow.pop %v2710
        %v2712 = vmul.f32 %v2705, 1.442695
        %v2713 = vpow.pop %v2712
        %v2714 = vadd.f32 %v2690, %v2707
        %v2715 = vadd.f32 %v2691, %v2709
        %v2716 = vadd.f32 %v2692, %v2711
        %v2717 = vadd.f32 %v2693, %v2713
        %v2718 = vmul.f32 %v2707, %v1974
        %v2719 = vmul.f32 %v2709, %v1980
        %v2720 = vmul.f32 %v2711, %v1986
        %v2721 = vmul.f32 %v2713, %v1992
        %v2722 = vadd.f32 %v2698, %v2718
        %v2723 = vadd.f32 %v2699, %v2719
        %v2724 = vadd.f32 %v2700, %v2720
        %v2725 = vadd.f32 %v2701, %v2721
        %v2726 = vsub.f32 %v2542, %v2650
        %v2727 = vsub.f32 %v2543, %v2651
        %v2728 = vsub.f32 %v2544, %v2652
        %v2729 = vsub.f32 %v2545, %v2653
        %v2730 = vmul.f32 %v2726, 1.442695
        %v2731 = vpow.pop %v2730
        %v2732 = vmul.f32 %v2727, 1.442695
        %v2733 = vpow.pop %v2732
        %v2734 = vmul.f32 %v2728, 1.442695
        %v2735 = vpow.pop %v2734
        %v2736 = vmul.f32 %v2729, 1.442695
        %v2737 = vpow.pop %v2736
        %v2738 = vadd.f32 %v2714, %v2731
        %v2739 = vadd.f32 %v2715, %v2733
        %v2740 = vadd.f32 %v2716, %v2735
        %v2741 = vadd.f32 %v2717, %v2737
        %v2742 = vmul.f32 %v2731, %v1976
        %v2743 = vmul.f32 %v2733, %v1982
        %v2744 = vmul.f32 %v2735, %v1988
        %v2745 = vmul.f32 %v2737, %v1994
        %v2746 = vadd.f32 %v2722, %v2742
        %v2747 = vadd.f32 %v2723, %v2743
        %v2748 = vadd.f32 %v2724, %v2744
        %v2749 = vadd.f32 %v2725, %v2745
        %v2750 = vsub.f32 %v2546, %v2650
        %v2751 = vsub.f32 %v2547, %v2651
        %v2752 = vsub.f32 %v2548, %v2652
        %v2753 = vsub.f32 %v2549, %v2653
        %v2754 = vmul.f32 %v2750, 1.442695
        %v2755 = vpow.pop %v2754
        %v2756 = vmul.f32 %v2751, 1.442695
        %v2757 = vpow.pop %v2756
        %v2758 = vmul.f32 %v2752, 1.442695
        %v2759 = vpow.pop %v2758
        %v2760 = vmul.f32 %v2753, 1.442695
        %v2761 = vpow.pop %v2760
        %v2762 = vadd.f32 %v2738, %v2755
        %v2763 = vadd.f32 %v2739, %v2757
        %v2764 = vadd.f32 %v2740, %v2759
        %v2765 = vadd.f32 %v2741, %v2761
        %v2766 = vmul.f32 %v2755, %v2063
        %v2767 = vmul.f32 %v2757, %v2069
        %v2768 = vmul.f32 %v2759, %v2075
        %v2769 = vmul.f32 %v2761, %v2081
        %v2770 = vadd.f32 %v2746, %v2766
        %v2771 = vadd.f32 %v2747, %v2767
        %v2772 = vadd.f32 %v2748, %v2768
        %v2773 = vadd.f32 %v2749, %v2769
        %v2774 = vsub.f32 %v2550, %v2650
        %v2775 = vsub.f32 %v2551, %v2651
        %v2776 = vsub.f32 %v2552, %v2652
        %v2777 = vsub.f32 %v2553, %v2653
        %v2778 = vmul.f32 %v2774, 1.442695
        %v2779 = vpow.pop %v2778
        %v2780 = vmul.f32 %v2775, 1.442695
        %v2781 = vpow.pop %v2780
        %v2782 = vmul.f32 %v2776, 1.442695
        %v2783 = vpow.pop %v2782
        %v2784 = vmul.f32 %v2777, 1.442695
        %v2785 = vpow.pop %v2784
        %v2786 = vadd.f32 %v2762, %v2779
        %v2787 = vadd.f32 %v2763, %v2781
        %v2788 = vadd.f32 %v2764, %v2783
        %v2789 = vadd.f32 %v2765, %v2785
        %v2790 = vmul.f32 %v2779, %v2065
        %v2791 = vmul.f32 %v2781, %v2071
        %v2792 = vmul.f32 %v2783, %v2077
        %v2793 = vmul.f32 %v2785, %v2083
        %v2794 = vadd.f32 %v2770, %v2790
        %v2795 = vadd.f32 %v2771, %v2791
        %v2796 = vadd.f32 %v2772, %v2792
        %v2797 = vadd.f32 %v2773, %v2793
        %v2798 = vsub.f32 %v2554, %v2650
        %v2799 = vsub.f32 %v2555, %v2651
        %v2800 = vsub.f32 %v2556, %v2652
        %v2801 = vsub.f32 %v2557, %v2653
        %v2802 = vmul.f32 %v2798, 1.442695
        %v2803 = vpow.pop %v2802
        %v2804 = vmul.f32 %v2799, 1.442695
        %v2805 = vpow.pop %v2804
        %v2806 = vmul.f32 %v2800, 1.442695
        %v2807 = vpow.pop %v2806
        %v2808 = vmul.f32 %v2801, 1.442695
        %v2809 = vpow.pop %v2808
        %v2810 = vadd.f32 %v2786, %v2803
        %v2811 = vadd.f32 %v2787, %v2805
        %v2812 = vadd.f32 %v2788, %v2807
        %v2813 = vadd.f32 %v2789, %v2809
        %v2814 = vmul.f32 %v2803, %v2152
        %v2815 = vmul.f32 %v2805, %v2158
        %v2816 = vmul.f32 %v2807, %v2164
        %v2817 = vmul.f32 %v2809, %v2170
        %v2818 = vadd.f32 %v2794, %v2814
        %v2819 = vadd.f32 %v2795, %v2815
        %v2820 = vadd.f32 %v2796, %v2816
        %v2821 = vadd.f32 %v2797, %v2817
        %v2822 = vsub.f32 %v2558, %v2650
        %v2823 = vsub.f32 %v2559, %v2651
        %v2824 = vsub.f32 %v2560, %v2652
        %v2825 = vsub.f32 %v2561, %v2653
        %v2826 = vmul.f32 %v2822, 1.442695
        %v2827 = vpow.pop %v2826
        %v2828 = vmul.f32 %v2823, 1.442695
        %v2829 = vpow.pop %v2828
        %v2830 = vmul.f32 %v2824, 1.442695
        %v2831 = vpow.pop %v2830
        %v2832 = vmul.f32 %v2825, 1.442695
        %v2833 = vpow.pop %v2832
        %v2834 = vadd.f32 %v2810, %v2827
        %v2835 = vadd.f32 %v2811, %v2829
        %v2836 = vadd.f32 %v2812, %v2831
        %v2837 = vadd.f32 %v2813, %v2833
        %v2838 = vmul.f32 %v2827, %v2154
        %v2839 = vmul.f32 %v2829, %v2160
        %v2840 = vmul.f32 %v2831, %v2166
        %v2841 = vmul.f32 %v2833, %v2172
        %v2842 = vadd.f32 %v2818, %v2838
        %v2843 = vadd.f32 %v2819, %v2839
        %v2844 = vadd.f32 %v2820, %v2840
        %v2845 = vadd.f32 %v2821, %v2841
        %v2846 = vsub.f32 %v2562, %v2650
        %v2847 = vsub.f32 %v2563, %v2651
        %v2848 = vsub.f32 %v2564, %v2652
        %v2849 = vsub.f32 %v2565, %v2653
        %v2850 = vmul.f32 %v2846, 1.442695
        %v2851 = vpow.pop %v2850
        %v2852 = vmul.f32 %v2847, 1.442695
        %v2853 = vpow.pop %v2852
        %v2854 = vmul.f32 %v2848, 1.442695
        %v2855 = vpow.pop %v2854
        %v2856 = vmul.f32 %v2849, 1.442695
        %v2857 = vpow.pop %v2856
        %v2858 = vadd.f32 %v2834, %v2851
        %v2859 = vadd.f32 %v2835, %v2853
        %v2860 = vadd.f32 %v2836, %v2855
        %v2861 = vadd.f32 %v2837, %v2857
        %v2862 = vmul.f32 %v2851, %v2241
        %v2863 = vmul.f32 %v2853, %v2247
        %v2864 = vmul.f32 %v2855, %v2253
        %v2865 = vmul.f32 %v2857, %v2259
        %v2866 = vadd.f32 %v2842, %v2862
        %v2867 = vadd.f32 %v2843, %v2863
        %v2868 = vadd.f32 %v2844, %v2864
        %v2869 = vadd.f32 %v2845, %v2865
        %v2870 = vsub.f32 %v2566, %v2650
        %v2871 = vsub.f32 %v2567, %v2651
        %v2872 = vsub.f32 %v2568, %v2652
        %v2873 = vsub.f32 %v2569, %v2653
        %v2874 = vmul.f32 %v2870, 1.442695
        %v2875 = vpow.pop %v2874
        %v2876 = vmul.f32 %v2871, 1.442695
        %v2877 = vpow.pop %v2876
        %v2878 = vmul.f32 %v2872, 1.442695
        %v2879 = vpow.pop %v2878
        %v2880 = vmul.f32 %v2873, 1.442695
        %v2881 = vpow.pop %v2880
        %v2882 = vadd.f32 %v2858, %v2875
        %v2883 = vadd.f32 %v2859, %v2877
        %v2884 = vadd.f32 %v2860, %v2879
        %v2885 = vadd.f32 %v2861, %v2881
        %v2886 = vmul.f32 %v2875, %v2243
        %v2887 = vmul.f32 %v2877, %v2249
        %v2888 = vmul.f32 %v2879, %v2255
        %v2889 = vmul.f32 %v2881, %v2261
        %v2890 = vadd.f32 %v2866, %v2886
        %v2891 = vadd.f32 %v2867, %v2887
        %v2892 = vadd.f32 %v2868, %v2888
        %v2893 = vadd.f32 %v2869, %v2889
        %v2894 = vsub.f32 %v2570, %v2650
        %v2895 = vsub.f32 %v2571, %v2651
        %v2896 = vsub.f32 %v2572, %v2652
        %v2897 = vsub.f32 %v2573, %v2653
        %v2898 = vmul.f32 %v2894, 1.442695
        %v2899 = vpow.pop %v2898
        %v2900 = vmul.f32 %v2895, 1.442695
        %v2901 = vpow.pop %v2900
        %v2902 = vmul.f32 %v2896, 1.442695
        %v2903 = vpow.pop %v2902
        %v2904 = vmul.f32 %v2897, 1.442695
        %v2905 = vpow.pop %v2904
        %v2906 = vadd.f32 %v2882, %v2899
        %v2907 = vadd.f32 %v2883, %v2901
        %v2908 = vadd.f32 %v2884, %v2903
        %v2909 = vadd.f32 %v2885, %v2905
        %v2910 = vmul.f32 %v2899, %v2330
        %v2911 = vmul.f32 %v2901, %v2336
        %v2912 = vmul.f32 %v2903, %v2342
        %v2913 = vmul.f32 %v2905, %v2348
        %v2914 = vadd.f32 %v2890, %v2910
        %v2915 = vadd.f32 %v2891, %v2911
        %v2916 = vadd.f32 %v2892, %v2912
        %v2917 = vadd.f32 %v2893, %v2913
        %v2918 = vsub.f32 %v2574, %v2650
        %v2919 = vsub.f32 %v2575, %v2651
        %v2920 = vsub.f32 %v2576, %v2652
        %v2921 = vsub.f32 %v2577, %v2653
        %v2922 = vmul.f32 %v2918, 1.442695
        %v2923 = vpow.pop %v2922
        %v2924 = vmul.f32 %v2919, 1.442695
        %v2925 = vpow.pop %v2924
        %v2926 = vmul.f32 %v2920, 1.442695
        %v2927 = vpow.pop %v2926
        %v2928 = vmul.f32 %v2921, 1.442695
        %v2929 = vpow.pop %v2928
        %v2930 = vadd.f32 %v2906, %v2923
        %v2931 = vadd.f32 %v2907, %v2925
        %v2932 = vadd.f32 %v2908, %v2927
        %v2933 = vadd.f32 %v2909, %v2929
        %v2934 = vmul.f32 %v2923, %v2332
        %v2935 = vmul.f32 %v2925, %v2338
        %v2936 = vmul.f32 %v2927, %v2344
        %v2937 = vmul.f32 %v2929, %v2350
        %v2938 = vadd.f32 %v2914, %v2934
        %v2939 = vadd.f32 %v2915, %v2935
        %v2940 = vadd.f32 %v2916, %v2936
        %v2941 = vadd.f32 %v2917, %v2937
        %v2942 = vsub.f32 %v2578, %v2650
        %v2943 = vsub.f32 %v2579, %v2651
        %v2944 = vsub.f32 %v2580, %v2652
        %v2945 = vsub.f32 %v2581, %v2653
        %v2946 = vmul.f32 %v2942, 1.442695
        %v2947 = vpow.pop %v2946
        %v2948 = vmul.f32 %v2943, 1.442695
        %v2949 = vpow.pop %v2948
        %v2950 = vmul.f32 %v2944, 1.442695
        %v2951 = vpow.pop %v2950
        %v2952 = vmul.f32 %v2945, 1.442695
        %v2953 = vpow.pop %v2952
        %v2954 = vadd.f32 %v2930, %v2947
        %v2955 = vadd.f32 %v2931, %v2949
        %v2956 = vadd.f32 %v2932, %v2951
        %v2957 = vadd.f32 %v2933, %v2953
        %v2958 = vmul.f32 %v2947, %v2419
        %v2959 = vmul.f32 %v2949, %v2425
        %v2960 = vmul.f32 %v2951, %v2431
        %v2961 = vmul.f32 %v2953, %v2437
        %v2962 = vadd.f32 %v2938, %v2958
        %v2963 = vadd.f32 %v2939, %v2959
        %v2964 = vadd.f32 %v2940, %v2960
        %v2965 = vadd.f32 %v2941, %v2961
        %v2966 = vsub.f32 %v2582, %v2650
        %v2967 = vsub.f32 %v2583, %v2651
        %v2968 = vsub.f32 %v2584, %v2652
        %v2969 = vsub.f32 %v2585, %v2653
        %v2970 = vmul.f32 %v2966, 1.442695
        %v2971 = vpow.pop %v2970
        %v2972 = vmul.f32 %v2967, 1.442695
        %v2973 = vpow.pop %v2972
        %v2974 = vmul.f32 %v2968, 1.442695
        %v2975 = vpow.pop %v2974
        %v2976 = vmul.f32 %v2969, 1.442695
        %v2977 = vpow.pop %v2976
        %v2978 = vadd.f32 %v2954, %v2971
        %v2979 = vadd.f32 %v2955, %v2973
        %v2980 = vadd.f32 %v2956, %v2975
        %v2981 = vadd.f32 %v2957, %v2977
        %v2982 = vmul.f32 %v2971, %v2421
        %v2983 = vmul.f32 %v2973, %v2427
        %v2984 = vmul.f32 %v2975, %v2433
        %v2985 = vmul.f32 %v2977, %v2439
        %v2986 = vadd.f32 %v2962, %v2982
        %v2987 = vadd.f32 %v2963, %v2983
        %v2988 = vadd.f32 %v2964, %v2984
        %v2989 = vadd.f32 %v2965, %v2985
        %v2990 = vsub.f32 %v2586, %v2650
        %v2991 = vsub.f32 %v2587, %v2651
        %v2992 = vsub.f32 %v2588, %v2652
        %v2993 = vsub.f32 %v2589, %v2653
        %v2994 = vmul.f32 %v2990, 1.442695
        %v2995 = vpow.pop %v2994
        %v2996 = vmul.f32 %v2991, 1.442695
        %v2997 = vpow.pop %v2996
        %v2998 = vmul.f32 %v2992, 1.442695
        %v2999 = vpow.pop %v2998
        %v3000 = vmul.f32 %v2993, 1.442695
        %v3001 = vpow.pop %v3000
        %v3002 = vadd.f32 %v2978, %v2995
        %v3003 = vadd.f32 %v2979, %v2997
        %v3004 = vadd.f32 %v2980, %v2999
        %v3005 = vadd.f32 %v2981, %v3001
        %v3006 = vmul.f32 %v2995, %v2508
        %v3007 = vmul.f32 %v2997, %v2514
        %v3008 = vmul.f32 %v2999, %v2520
        %v3009 = vmul.f32 %v3001, %v2526
        %v3010 = vadd.f32 %v2986, %v3006
        %v3011 = vadd.f32 %v2987, %v3007
        %v3012 = vadd.f32 %v2988, %v3008
        %v3013 = vadd.f32 %v2989, %v3009
        %v3014 = vsub.f32 %v2590, %v2650
        %v3015 = vsub.f32 %v2591, %v2651
        %v3016 = vsub.f32 %v2592, %v2652
        %v3017 = vsub.f32 %v2593, %v2653
        %v3018 = vmul.f32 %v3014, 1.442695
        %v3019 = vpow.pop %v3018
        %v3020 = vmul.f32 %v3015, 1.442695
        %v3021 = vpow.pop %v3020
        %v3022 = vmul.f32 %v3016, 1.442695
        %v3023 = vpow.pop %v3022
        %v3024 = vmul.f32 %v3017, 1.442695
        %v3025 = vpow.pop %v3024
        %v3026 = vadd.f32 %v3002, %v3019
        %v3027 = vadd.f32 %v3003, %v3021
        %v3028 = vadd.f32 %v3004, %v3023
        %v3029 = vadd.f32 %v3005, %v3025
        %v3030 = vmul.f32 %v3019, %v2510
        %v3031 = vmul.f32 %v3021, %v2516
        %v3032 = vmul.f32 %v3023, %v2522
        %v3033 = vmul.f32 %v3025, %v2528
        %v3034 = vadd.f32 %v3010, %v3030
        %v3035 = vadd.f32 %v3011, %v3031
        %v3036 = vadd.f32 %v3012, %v3032
        %v3037 = vadd.f32 %v3013, %v3033
        %v3038 = vrcp.pop %v3026
        %v3039 = vrcp.pop %v3027
        %v3040 = vrcp.pop %v3028
        %v3041 = vrcp.pop %v3029
        %v3042 = vmul.f32 %v3034, %v3038
        %v3043 = vmul.f32 %v3035, %v3039
        %v3044 = vmul.f32 %v3036, %v3040
        %v3045 = vmul.f32 %v3037, %v3041
        %v3046 = vlaneseq
        %v3047 = vshrl.u32 %v3046, 7
        %v3048 = vsub.s32 2, %v3047
        %v3049 = vrot.slane %v550, %v3048
        %3050 = vmatprep.subr.mxu0 0.0
        %3051 = vmatpush1.msra.mxu0 %v906
        %3052 = vmatprep.subr.mxu0 0.0
        %3053 = vmatpush1.msra.mxu0 %v907
        %3054 = vmatprep.subr.mxu0 0.0
        %3055 = vmatpush1.msra.mxu0 %v908
        %3056 = vmatprep.subr.mxu0 0.0
        %3057 = vmatpush1.msra.mxu0 %v909
        %3058 = vmatprep.subr.mxu0 0.0
        %3059 = vmatpush1.msra.mxu0 %v910
        %3060 = vmatprep.subr.mxu0 0.0
        %3061 = vmatpush1.msra.mxu0 %v911
        %3062 = vmatprep.subr.mxu0 0.0
        %3063 = vmatpush1.msra.mxu0 %v912
        %3064 = vmatprep.subr.mxu0 0.0
        %3065 = vmatpush1.msra.mxu0 %v913
        %3066 = vmatprep.subr.mxu0 0.0
        %3067 = vmatpush1.msra.mxu0 %v914
        %3068 = vmatprep.subr.mxu0 0.0
        %3069 = vmatpush1.msra.mxu0 %v915
        %3070 = vmatprep.subr.mxu0 0.0
        %3071 = vmatpush1.msra.mxu0 %v916
        %3072 = vmatprep.subr.mxu0 0.0
        %3073 = vmatpush1.msra.mxu0 %v917
        %3074 = vmatprep.subr.mxu0 0.0
        %3075 = vmatpush1.msra.mxu0 %v918
        %3076 = vmatprep.subr.mxu0 0.0
        %3077 = vmatpush1.msra.mxu0 %v919
        %3078 = vmatprep.subr.mxu0 0.0
        %3079 = vmatpush1.msra.mxu0 %v920
        %3080 = vmatprep.subr.mxu0 0.0
        %3081 = vmatpush1.msra.mxu0 %v921
        %3082 = vmatprep.subr.mxu0 0.0
        %3083 = vmatpush1.msra.mxu0 0.0
        %3084 = vmatprep.subr.mxu0 0.0
        %3085 = vmatpush1.msra.mxu0 0.0
        %3086 = vmatprep.subr.mxu0 0.0
        %3087 = vmatpush1.msra.mxu0 0.0
        %3088 = vmatprep.subr.mxu0 0.0
        %3089 = vmatpush1.msra.mxu0 0.0
        %3090 = vmatprep.subr.mxu0 0.0
        %3091 = vmatpush1.msra.mxu0 0.0
        %3092 = vmatprep.subr.mxu0 0.0
        %3093 = vmatpush1.msra.mxu0 0.0
        %3094 = vmatprep.subr.mxu0 0.0
        %3095 = vmatpush1.msra.mxu0 0.0
        %3096 = vmatprep.subr.mxu0 0.0
        %3097 = vmatpush1.msra.mxu0 0.0
        %3098 = vmatprep.subr.mxu0 0.0
        %3099 = vmatpush1.msra.mxu0 0.0
        %3100 = vmatprep.subr.mxu0 0.0
        %3101 = vmatpush1.msra.mxu0 0.0
        %3102 = vmatprep.subr.mxu0 0.0
        %3103 = vmatpush1.msra.mxu0 0.0
        %3104 = vmatprep.subr.mxu0 0.0
        %3105 = vmatpush1.msra.mxu0 0.0
        %3106 = vmatprep.subr.mxu0 0.0
        %3107 = vmatpush1.msra.mxu0 0.0
        %3108 = vmatprep.subr.mxu0 0.0
        %3109 = vmatpush1.msra.mxu0 0.0
        %3110 = vmatprep.subr.mxu0 0.0
        %3111 = vmatpush1.msra.mxu0 0.0
        %3112 = vmatprep.subr.mxu0 0.0
        %3113 = vmatpush1.msra.mxu0 0.0
        %3114 = vmatprep.mubr.f32.mxu0 0.0
        %3115 = vmatmul.mubr.f32.gmra.mrb[0].mxu0 %v3042
        %v3116 = vpop.f32.mrb[0].mxu0
        %v3117 = vadd.f32 %v3049, %v3116
        %v3118 = vpop.f32.mrb[0].mxu0
        %3119 = vmatprep.mubr.f32.mxu0 0.0
        %3120 = vmatmul.mubr.f32.gmra.mrb[0].mxu0 %v3043
        %v3121 = vpop.f32.mrb[0].mxu0
        %v3122 = vadd.f32 %v3049, %v3121
        %v3123 = vpop.f32.mrb[0].mxu0
        %3124 = vmatprep.mubr.f32.mxu0 0.0
        %3125 = vmatmul.mubr.f32.gmra.mrb[0].mxu0 %v3044
        %v3126 = vpop.f32.mrb[0].mxu0
        %v3127 = vadd.f32 %v3049, %v3126
        %v3128 = vpop.f32.mrb[0].mxu0
        %3129 = vmatprep.mubr.f32.mxu0 0.0
        %3130 = vmatmul.mubr.f32.gmra.mrb[0].mxu0 %v3045
        %v3131 = vpop.f32.mrb[0].mxu0
        %v3132 = vadd.f32 %v3049, %v3131
        %v3133 = vpop.f32.mrb[0].mxu0
        %3134 = vdwg.mxu0
        %v3135 = vtanh.pop %v3117
        %v3136 = vtanh.pop %v3122
        %v3137 = vtanh.pop %v3127
        %v3138 = vtanh.pop %v3132
        %v3139 = vld [vmem:[#allocation9] sm:$0xff]
        %v3140 = vld [vmem:[#allocation9 + $0x8] sm:$0xff]
        %v3141 = vld [vmem:[#allocation9 + $0x10] sm:$0xf]
        %v3142 = vld [vmem:[%s8] sm:$0xff]
        %v3143 = vld [vmem:[%s8 + $0x8] sm:$0xff]
        %v3144 = vld [vmem:[%s8 + $0x10] sm:$0xff]
        %v3145 = vld [vmem:[%s8 + $0x18] sm:$0xff]
        %v3146 = vld [vmem:[%s8 + $0x20] sm:$0xff]
        %v3147 = vld [vmem:[%s8 + $0x28] sm:$0xff]
        %v3148 = vld [vmem:[%s8 + $0x30] sm:$0xff]
        %v3149 = vld [vmem:[%s8 + $0x38] sm:$0xff]
        %v3150 = vld [vmem:[%s8 + $0x40] sm:$0xff]
        %v3151 = vld [vmem:[%s8 + $0x48] sm:$0xff]
        %v3152 = vld [vmem:[%s8 + $0x50] sm:$0xff]
        %v3153 = vld [vmem:[%s8 + $0x58] sm:$0xff]
        %v3154 = vld [vmem:[%s8 + $0x60] sm:$0xff]
        %v3155 = vld [vmem:[%s8 + $0x68] sm:$0xff]
        %v3156 = vld [vmem:[%s8 + $0x70] sm:$0xff]
        %v3157 = vld [vmem:[%s8 + $0x78] sm:$0xff]
        %v3158 = vld [vmem:[%s8 + $0x80] sm:$0xff]
        %v3159 = vld [vmem:[%s8 + $0x88] sm:$0xff]
        %v3160 = vld [vmem:[%s8 + $0x90] sm:$0xff]
        %v3161 = vld [vmem:[%s8 + $0x98] sm:$0xff]
        %v3162 = vld [vmem:[%s8 + $0xa0] sm:$0xff]
        %v3163 = vld [vmem:[%s8 + $0xa8] sm:$0xff]
        %v3164 = vld [vmem:[%s8 + $0xb0] sm:$0xff]
        %v3165 = vld [vmem:[%s8 + $0xb8] sm:$0xff]
        %v3166 = vld [vmem:[%s8 + $0xc0] sm:$0xff]
        %v3167 = vld [vmem:[%s8 + $0xc8] sm:$0xff]
        %v3168 = vld [vmem:[%s8 + $0xd0] sm:$0xff]
        %v3169 = vld [vmem:[%s8 + $0xd8] sm:$0xff]
        %v3170 = vld [vmem:[%s8 + $0xe0] sm:$0xff]
        %v3171 = vld [vmem:[%s8 + $0xe8] sm:$0xff]
        %v3172 = vld [vmem:[%s8 + $0xf0] sm:$0xff]
        %v3173 = vld [vmem:[%s8 + $0xf8] sm:$0xff]
        %v3174 = vld [vmem:[%s8 + $0x100] sm:$0xf]
        %v3175 = vld [vmem:[%s8 + $0x108] sm:$0xf]
        %v3176 = vld [vmem:[%s8 + $0x110] sm:$0xf]
        %v3177 = vld [vmem:[%s8 + $0x118] sm:$0xf]
        %v3178 = vld [vmem:[%s8 + $0x120] sm:$0xf]
        %v3179 = vld [vmem:[%s8 + $0x128] sm:$0xf]
        %v3180 = vld [vmem:[%s8 + $0x130] sm:$0xf]
        %v3181 = vld [vmem:[%s8 + $0x138] sm:$0xf]
        %v3182 = vld [vmem:[%s8 + $0x140] sm:$0xf]
        %v3183 = vld [vmem:[%s8 + $0x148] sm:$0xf]
        %v3184 = vld [vmem:[%s8 + $0x150] sm:$0xf]
        %v3185 = vld [vmem:[%s8 + $0x158] sm:$0xf]
        %v3186 = vld [vmem:[%s8 + $0x160] sm:$0xf]
        %v3187 = vld [vmem:[%s8 + $0x168] sm:$0xf]
        %v3188 = vld [vmem:[%s8 + $0x170] sm:$0xf]
        %v3189 = vld [vmem:[%s8 + $0x178] sm:$0xf]
        %v3190 = vld [vmem:[#allocation10] sm:$0xff]
        %v3191 = vld [vmem:[#allocation10 + $0x8] sm:$0xff]
        %v3192 = vld [vmem:[#allocation10 + $0x10] sm:$0xff]
        %v3193 = vld [vmem:[#allocation10 + $0x18] sm:$0xff]
        %v3194 = vld [vmem:[#allocation10 + $0x20] sm:$0xff]
        %v3195 = vld [vmem:[#allocation10 + $0x28] sm:$0xff]
        %v3196 = vld [vmem:[#allocation10 + $0x30] sm:$0xff]
        %v3197 = vld [vmem:[#allocation10 + $0x38] sm:$0xff]
        %v3198 = vld [vmem:[#allocation10 + $0x40] sm:$0xff]
        %v3199 = vld [vmem:[#allocation10 + $0x48] sm:$0xff]
        %v3200 = vld [vmem:[#allocation10 + $0x50] sm:$0xff]
        %v3201 = vld [vmem:[#allocation10 + $0x58] sm:$0xff]
        %v3202 = vld [vmem:[#allocation10 + $0x60] sm:$0xff]
        %v3203 = vld [vmem:[#allocation10 + $0x68] sm:$0xff]
        %v3204 = vld [vmem:[#allocation10 + $0x70] sm:$0xff]
        %v3205 = vld [vmem:[#allocation10 + $0x78] sm:$0xff]
        %v3206 = vld [vmem:[#allocation10 + $0x80] sm:$0xff]
        %v3207 = vld [vmem:[#allocation10 + $0x88] sm:$0xff]
        %v3208 = vld [vmem:[#allocation10 + $0x90] sm:$0xff]
        %v3209 = vld [vmem:[#allocation10 + $0x98] sm:$0xff]
        %v3210 = vld [vmem:[#allocation10 + $0xa0] sm:$0xff]
        %v3211 = vld [vmem:[#allocation10 + $0xa8] sm:$0xff]
        %v3212 = vld [vmem:[#allocation10 + $0xb0] sm:$0xff]
        %v3213 = vld [vmem:[#allocation10 + $0xb8] sm:$0xff]
        %v3214 = vld [vmem:[#allocation10 + $0xc0] sm:$0xff]
        %v3215 = vld [vmem:[#allocation10 + $0xc8] sm:$0xff]
        %v3216 = vld [vmem:[#allocation10 + $0xd0] sm:$0xff]
        %v3217 = vld [vmem:[#allocation10 + $0xd8] sm:$0xff]
        %v3218 = vld [vmem:[#allocation10 + $0xe0] sm:$0xff]
        %v3219 = vld [vmem:[#allocation10 + $0xe8] sm:$0xff]
        %v3220 = vld [vmem:[#allocation10 + $0xf0] sm:$0xff]
        %v3221 = vld [vmem:[#allocation10 + $0xf8] sm:$0xff]
        %v3222 = vld [vmem:[#allocation10 + $0x100] sm:$0xf]
        %v3223 = vld [vmem:[#allocation10 + $0x108] sm:$0xf]
        %v3224 = vld [vmem:[#allocation10 + $0x110] sm:$0xf]
        %v3225 = vld [vmem:[#allocation10 + $0x118] sm:$0xf]
        %v3226 = vld [vmem:[#allocation10 + $0x120] sm:$0xf]
        %v3227 = vld [vmem:[#allocation10 + $0x128] sm:$0xf]
        %v3228 = vld [vmem:[#allocation10 + $0x130] sm:$0xf]
        %v3229 = vld [vmem:[#allocation10 + $0x138] sm:$0xf]
        %v3230 = vld [vmem:[#allocation10 + $0x140] sm:$0xf]
        %v3231 = vld [vmem:[#allocation10 + $0x148] sm:$0xf]
        %v3232 = vld [vmem:[#allocation10 + $0x150] sm:$0xf]
        %v3233 = vld [vmem:[#allocation10 + $0x158] sm:$0xf]
        %v3234 = vld [vmem:[#allocation10 + $0x160] sm:$0xf]
        %v3235 = vld [vmem:[#allocation10 + $0x168] sm:$0xf]
        %v3236 = vld [vmem:[#allocation10 + $0x170] sm:$0xf]
        %v3237 = vld [vmem:[#allocation10 + $0x178] sm:$0xf]
        %v3238 = vld [vmem:[%s10] sm:$0xff]
        %v3239 = vld [vmem:[%s10 + $0x8] sm:$0xff]
        %v3240 = vld [vmem:[%s10 + $0x10] sm:$0xff]
        %v3241 = vld [vmem:[%s10 + $0x18] sm:$0xff]
        %v3242 = vld [vmem:[%s10 + $0x20] sm:$0xff]
        %v3243 = vld [vmem:[%s10 + $0x28] sm:$0xff]
        %v3244 = vld [vmem:[%s10 + $0x30] sm:$0xff]
        %v3245 = vld [vmem:[%s10 + $0x38] sm:$0xff]
        %v3246 = vld [vmem:[%s10 + $0x40] sm:$0xff]
        %v3247 = vld [vmem:[%s10 + $0x48] sm:$0xff]
        %v3248 = vld [vmem:[%s10 + $0x50] sm:$0xff]
        %v3249 = vld [vmem:[%s10 + $0x58] sm:$0xff]
        %v3250 = vld [vmem:[%s10 + $0x60] sm:$0xff]
        %v3251 = vld [vmem:[%s10 + $0x68] sm:$0xff]
        %v3252 = vld [vmem:[%s10 + $0x70] sm:$0xff]
        %v3253 = vld [vmem:[%s10 + $0x78] sm:$0xff]
        %v3255 = vsel %vm558, %v3135, 0
        %v3258 = vsel %vm558, %v3136, 0
        %v3261 = vsel %vm558, %v3137, 0
        %v3264 = vsel %vm558, %v3138, 0
        %v3267 = vsel %vm571, %v3141, 0
        %3269 = vmatprep.subr.mxu0 0.0
        %3270 = vmatpush1.msra.mxu0 %v3139
        %3271 = vmatprep.subr.mxu0 0.0
        %3272 = vmatpush1.msra.mxu0 %v3140
        %3273 = vmatprep.subr.mxu0 0.0
        %3274 = vmatpush1.msra.mxu0 %v3267
        %3275 = vmatprep.subr.mxu0 0.0
        %3276 = vmatpush1.msra.mxu0 0.0
        %3277 = vmatprep.subr.mxu0 0.0
        %3278 = vmatpush1.msra.mxu0 0.0
        %3279 = vmatprep.subr.mxu0 0.0
        %3280 = vmatpush1.msra.mxu0 0.0
        %3281 = vmatprep.subr.mxu0 0.0
        %3282 = vmatpush1.msra.mxu0 0.0
        %3283 = vmatprep.subr.mxu0 0.0
        %3284 = vmatpush1.msra.mxu0 0.0
        %3285 = vmatprep.subr.mxu0 0.0
        %3286 = vmatpush1.msra.mxu0 0.0
        %3287 = vmatprep.subr.mxu0 0.0
        %3288 = vmatpush1.msra.mxu0 0.0
        %3289 = vmatprep.subr.mxu0 0.0
        %3290 = vmatpush1.msra.mxu0 0.0
        %3291 = vmatprep.subr.mxu0 0.0
        %3292 = vmatpush1.msra.mxu0 0.0
        %3293 = vmatprep.subr.mxu0 0.0
        %3294 = vmatpush1.msra.mxu0 0.0
        %3295 = vmatprep.subr.mxu0 0.0
        %3296 = vmatpush1.msra.mxu0 0.0
        %3297 = vmatprep.subr.mxu0 0.0
        %3298 = vmatpush1.msra.mxu0 0.0
        %3299 = vmatprep.subr.mxu0 0.0
        %3300 = vmatpush1.msra.mxu0 0.0
        %3301 = vmatprep.subr.mxu0 0.0
        %3302 = vmatpush1.msra.mxu0 0.0
        %3303 = vmatprep.subr.mxu0 0.0
        %3304 = vmatpush1.msra.mxu0 0.0
        %3305 = vmatprep.subr.mxu0 0.0
        %3306 = vmatpush1.msra.mxu0 0.0
        %3307 = vmatprep.subr.mxu0 0.0
        %3308 = vmatpush1.msra.mxu0 0.0
        %3309 = vmatprep.subr.mxu0 0.0
        %3310 = vmatpush1.msra.mxu0 0.0
        %3311 = vmatprep.subr.mxu0 0.0
        %3312 = vmatpush1.msra.mxu0 0.0
        %3313 = vmatprep.subr.mxu0 0.0
        %3314 = vmatpush1.msra.mxu0 0.0
        %3315 = vmatprep.subr.mxu0 0.0
        %3316 = vmatpush1.msra.mxu0 0.0
        %3317 = vmatprep.subr.mxu0 0.0
        %3318 = vmatpush1.msra.mxu0 0.0
        %3319 = vmatprep.subr.mxu0 0.0
        %3320 = vmatpush1.msra.mxu0 0.0
        %3321 = vmatprep.subr.mxu0 0.0
        %3322 = vmatpush1.msra.mxu0 0.0
        %3323 = vmatprep.subr.mxu0 0.0
        %3324 = vmatpush1.msra.mxu0 0.0
        %3325 = vmatprep.subr.mxu0 0.0
        %3326 = vmatpush1.msra.mxu0 0.0
        %3327 = vmatprep.subr.mxu0 0.0
        %3328 = vmatpush1.msra.mxu0 0.0
        %3329 = vmatprep.subr.mxu0 0.0
        %3330 = vmatpush1.msra.mxu0 0.0
        %3331 = vmatprep.subr.mxu0 0.0
        %3332 = vmatpush1.msra.mxu0 0.0
        %3333 = vmatprep.mubr.f32.mxu0 0.0
        %3334 = vmatmul.mubr.f32.gmra.mrb[0].mxu0 %v3255
        %v3335 = vpop.f32.mrb[0].mxu0
        %v3336 = vadd.f32 0.0, %v3335
        %v3337 = vpop.f32.mrb[0].mxu0
        %3338 = vmatprep.mubr.f32.mxu0 0.0
        %3339 = vmatmul.mubr.f32.gmra.mrb[0].mxu0 %v3258
        %v3340 = vpop.f32.mrb[0].mxu0
        %v3341 = vadd.f32 0.0, %v3340
        %v3342 = vpop.f32.mrb[0].mxu0
        %3343 = vmatprep.mubr.f32.mxu0 0.0
        %3344 = vmatmul.mubr.f32.gmra.mrb[0].mxu0 %v3261
        %v3345 = vpop.f32.mrb[0].mxu0
        %v3346 = vadd.f32 0.0, %v3345
        %v3347 = vpop.f32.mrb[0].mxu0
        %3348 = vmatprep.mubr.f32.mxu0 0.0
        %3349 = vmatmul.mubr.f32.gmra.mrb[0].mxu0 %v3264
        %v3350 = vpop.f32.mrb[0].mxu0
        %v3351 = vadd.f32 0.0, %v3350
        %v3352 = vpop.f32.mrb[0].mxu0
        %3353 = vdwg.mxu0
        %v3355 = vsel %vm571, %v3174, 0
        %v3358 = vsel %vm571, %v3175, 0
        %v3361 = vsel %vm571, %v3176, 0
        %v3364 = vsel %vm571, %v3177, 0
        %v3367 = vsel %vm571, %v3178, 0
        %v3370 = vsel %vm571, %v3179, 0
        %v3373 = vsel %vm571, %v3180, 0
        %v3376 = vsel %vm571, %v3181, 0
        %v3379 = vsel %vm571, %v3182, 0
        %v3382 = vsel %vm571, %v3183, 0
        %v3385 = vsel %vm571, %v3184, 0
        %v3388 = vsel %vm571, %v3185, 0
        %v3391 = vsel %vm571, %v3186, 0
        %v3394 = vsel %vm571, %v3187, 0
        %v3397 = vsel %vm571, %v3188, 0
        %v3400 = vsel %vm571, %v3189, 0
        %3402 = vmatprep.subr.mxu0 %v3143
        %3403 = vmatpush1.msra.mxu0 %v3142
        %3404 = vmatprep.subr.mxu0 %v3159
        %3405 = vmatpush1.msra.mxu0 %v3158
        %3406 = vmatprep.subr.mxu0 %v3358
        %3407 = vmatpush1.msra.mxu0 %v3355
        %3408 = vmatprep.subr.mxu0 0.0
        %3409 = vmatpush1.msra.mxu0 0.0
        %3410 = vmatprep.subr.mxu0 0.0
        %3411 = vmatpush1.msra.mxu0 0.0
        %3412 = vmatprep.subr.mxu0 0.0
        %3413 = vmatpush1.msra.mxu0 0.0
        %3414 = vmatprep.subr.mxu0 0.0
        %3415 = vmatpush1.msra.mxu0 0.0
        %3416 = vmatprep.subr.mxu0 0.0
        %3417 = vmatpush1.msra.mxu0 0.0
        %3418 = vmatprep.subr.mxu0 0.0
        %3419 = vmatpush1.msra.mxu0 0.0
        %3420 = vmatprep.subr.mxu0 0.0
        %3421 = vmatpush1.msra.mxu0 0.0
        %3422 = vmatprep.subr.mxu0 0.0
        %3423 = vmatpush1.msra.mxu0 0.0
        %3424 = vmatprep.subr.mxu0 0.0
        %3425 = vmatpush1.msra.mxu0 0.0
        %3426 = vmatprep.subr.mxu0 0.0
        %3427 = vmatpush1.msra.mxu0 0.0
        %3428 = vmatprep.subr.mxu0 0.0
        %3429 = vmatpush1.msra.mxu0 0.0
        %3430 = vmatprep.subr.mxu0 0.0
        %3431 = vmatpush1.msra.mxu0 0.0
        %3432 = vmatprep.subr.mxu0 0.0
        %3433 = vmatpush1.msra.mxu0 0.0
        %3434 = vmatprep.subr.mxu0 0.0
        %3435 = vmatpush1.msra.mxu0 0.0
        %3436 = vmatprep.subr.mxu0 0.0
        %3437 = vmatpush1.msra.mxu0 0.0
        %3438 = vmatprep.subr.mxu0 0.0
        %3439 = vmatpush1.msra.mxu0 0.0
        %3440 = vmatprep.subr.mxu0 0.0
        %3441 = vmatpush1.msra.mxu0 0.0
        %3442 = vmatprep.subr.mxu0 0.0
        %3443 = vmatpush1.msra.mxu0 0.0
        %3444 = vmatprep.subr.mxu0 0.0
        %3445 = vmatpush1.msra.mxu0 0.0
        %3446 = vmatprep.subr.mxu0 0.0
        %3447 = vmatpush1.msra.mxu0 0.0
        %3448 = vmatprep.subr.mxu0 0.0
        %3449 = vmatpush1.msra.mxu0 0.0
        %3450 = vmatprep.subr.mxu0 0.0
        %3451 = vmatpush1.msra.mxu0 0.0
        %3452 = vmatprep.subr.mxu0 0.0
        %3453 = vmatpush1.msra.mxu0 0.0
        %3454 = vmatprep.subr.mxu0 0.0
        %3455 = vmatpush1.msra.mxu0 0.0
        %3456 = vmatprep.subr.mxu0 0.0
        %3457 = vmatpush1.msra.mxu0 0.0
        %3458 = vmatprep.subr.mxu0 0.0
        %3459 = vmatpush1.msra.mxu0 0.0
        %3460 = vmatprep.subr.mxu0 0.0
        %3461 = vmatpush1.msra.mxu0 0.0
        %3462 = vmatprep.subr.mxu0 0.0
        %3463 = vmatpush1.msra.mxu0 0.0
        %3464 = vmatprep.subr.mxu0 0.0
        %3465 = vmatpush1.msra.mxu0 0.0
        %3466 = vmatprep.mubr.f32.mxu0 0.0
        %3467 = vmatmul.mubr.f32.gmra.mrb[0].mxu0 %v3255
        %v3468 = vpop.f32.mrb[0].mxu0
        %v3469 = vadd.f32 0.0, %v3468
        %v3470 = vpop.f32.mrb[0].mxu0
        %v3471 = vadd.f32 0.0, %v3470
        %3472 = vmatprep.mubr.f32.mxu0 0.0
        %3473 = vmatmul.mubr.f32.gmra.mrb[0].mxu0 %v3258
        %v3474 = vpop.f32.mrb[0].mxu0
        %v3475 = vadd.f32 0.0, %v3474
        %v3476 = vpop.f32.mrb[0].mxu0
        %v3477 = vadd.f32 0.0, %v3476
        %3478 = vmatprep.mubr.f32.mxu0 0.0
        %3479 = vmatmul.mubr.f32.gmra.mrb[0].mxu0 %v3261
        %v3480 = vpop.f32.mrb[0].mxu0
        %v3481 = vadd.f32 0.0, %v3480
        %v3482 = vpop.f32.mrb[0].mxu0
        %v3483 = vadd.f32 0.0, %v3482
        %3484 = vmatprep.mubr.f32.mxu0 0.0
        %3485 = vmatmul.mubr.f32.gmra.mrb[0].mxu0 %v3264
        %v3486 = vpop.f32.mrb[0].mxu0
        %v3487 = vadd.f32 0.0, %v3486
        %v3488 = vpop.f32.mrb[0].mxu0
        %v3489 = vadd.f32 0.0, %v3488
        %3490 = vdwg.mxu0
        %3491 = vmatprep.subr.mxu0 %v3145
        %3492 = vmatpush1.msra.mxu0 %v3144
        %3493 = vmatprep.subr.mxu0 %v3161
        %3494 = vmatpush1.msra.mxu0 %v3160
        %3495 = vmatprep.subr.mxu0 %v3364
        %3496 = vmatpush1.msra.mxu0 %v3361
        %3497 = vmatprep.subr.mxu0 0.0
        %3498 = vmatpush1.msra.mxu0 0.0
        %3499 = vmatprep.subr.mxu0 0.0
        %3500 = vmatpush1.msra.mxu0 0.0
        %3501 = vmatprep.subr.mxu0 0.0
        %3502 = vmatpush1.msra.mxu0 0.0
        %3503 = vmatprep.subr.mxu0 0.0
        %3504 = vmatpush1.msra.mxu0 0.0
        %3505 = vmatprep.subr.mxu0 0.0
        %3506 = vmatpush1.msra.mxu0 0.0
        %3507 = vmatprep.subr.mxu0 0.0
        %3508 = vmatpush1.msra.mxu0 0.0
        %3509 = vmatprep.subr.mxu0 0.0
        %3510 = vmatpush1.msra.mxu0 0.0
        %3511 = vmatprep.subr.mxu0 0.0
        %3512 = vmatpush1.msra.mxu0 0.0
        %3513 = vmatprep.subr.mxu0 0.0
        %3514 = vmatpush1.msra.mxu0 0.0
        %3515 = vmatprep.subr.mxu0 0.0
        %3516 = vmatpush1.msra.mxu0 0.0
        %3517 = vmatprep.subr.mxu0 0.0
        %3518 = vmatpush1.msra.mxu0 0.0
        %3519 = vmatprep.subr.mxu0 0.0
        %3520 = vmatpush1.msra.mxu0 0.0
        %3521 = vmatprep.subr.mxu0 0.0
        %3522 = vmatpush1.msra.mxu0 0.0
        %3523 = vmatprep.subr.mxu0 0.0
        %3524 = vmatpush1.msra.mxu0 0.0
        %3525 = vmatprep.subr.mxu0 0.0
        %3526 = vmatpush1.msra.mxu0 0.0
        %3527 = vmatprep.subr.mxu0 0.0
        %3528 = vmatpush1.msra.mxu0 0.0
        %3529 = vmatprep.subr.mxu0 0.0
        %3530 = vmatpush1.msra.mxu0 0.0
        %3531 = vmatprep.subr.mxu0 0.0
        %3532 = vmatpush1.msra.mxu0 0.0
        %3533 = vmatprep.subr.mxu0 0.0
        %3534 = vmatpush1.msra.mxu0 0.0
        %3535 = vmatprep.subr.mxu0 0.0
        %3536 = vmatpush1.msra.mxu0 0.0
        %3537 = vmatprep.subr.mxu0 0.0
        %3538 = vmatpush1.msra.mxu0 0.0
        %3539 = vmatprep.subr.mxu0 0.0
        %3540 = vmatpush1.msra.mxu0 0.0
        %3541 = vmatprep.subr.mxu0 0.0
        %3542 = vmatpush1.msra.mxu0 0.0
        %3543 = vmatprep.subr.mxu0 0.0
        %3544 = vmatpush1.msra.mxu0 0.0
        %3545 = vmatprep.subr.mxu0 0.0
        %3546 = vmatpush1.msra.mxu0 0.0
        %3547 = vmatprep.subr.mxu0 0.0
        %3548 = vmatpush1.msra.mxu0 0.0
        %3549 = vmatprep.subr.mxu0 0.0
        %3550 = vmatpush1.msra.mxu0 0.0
        %3551 = vmatprep.subr.mxu0 0.0
        %3552 = vmatpush1.msra.mxu0 0.0
        %3553 = vmatprep.subr.mxu0 0.0
        %3554 = vmatpush1.msra.mxu0 0.0
        %3555 = vmatprep.mubr.f32.mxu0 0.0
        %3556 = vmatmul.mubr.f32.gmra.mrb[0].mxu0 %v3255
        %v3557 = vpop.f32.mrb[0].mxu0
        %v3558 = vadd.f32 0.0, %v3557
        %v3559 = vpop.f32.mrb[0].mxu0
        %v3560 = vadd.f32 0.0, %v3559
        %3561 = vmatprep.mubr.f32.mxu0 0.0
        %3562 = vmatmul.mubr.f32.gmra.mrb[0].mxu0 %v3258
        %v3563 = vpop.f32.mrb[0].mxu0
        %v3564 = vadd.f32 0.0, %v3563
        %v3565 = vpop.f32.mrb[0].mxu0
        %v3566 = vadd.f32 0.0, %v3565
        %3567 = vmatprep.mubr.f32.mxu0 0.0
        %3568 = vmatmul.mubr.f32.gmra.mrb[0].mxu0 %v3261
        %v3569 = vpop.f32.mrb[0].mxu0
        %v3570 = vadd.f32 0.0, %v3569
        %v3571 = vpop.f32.mrb[0].mxu0
        %v3572 = vadd.f32 0.0, %v3571
        %3573 = vmatprep.mubr.f32.mxu0 0.0
        %3574 = vmatmul.mubr.f32.gmra.mrb[0].mxu0 %v3264
        %v3575 = vpop.f32.mrb[0].mxu0
        %v3576 = vadd.f32 0.0, %v3575
        %v3577 = vpop.f32.mrb[0].mxu0
        %v3578 = vadd.f32 0.0, %v3577
        %3579 = vdwg.mxu0
        %3580 = vmatprep.subr.mxu0 %v3147
        %3581 = vmatpush1.msra.mxu0 %v3146
        %3582 = vmatprep.subr.mxu0 %v3163
        %3583 = vmatpush1.msra.mxu0 %v3162
        %3584 = vmatprep.subr.mxu0 %v3370
        %3585 = vmatpush1.msra.mxu0 %v3367
        %3586 = vmatprep.subr.mxu0 0.0
        %3587 = vmatpush1.msra.mxu0 0.0
        %3588 = vmatprep.subr.mxu0 0.0
        %3589 = vmatpush1.msra.mxu0 0.0
        %3590 = vmatprep.subr.mxu0 0.0
        %3591 = vmatpush1.msra.mxu0 0.0
        %3592 = vmatprep.subr.mxu0 0.0
        %3593 = vmatpush1.msra.mxu0 0.0
        %3594 = vmatprep.subr.mxu0 0.0
        %3595 = vmatpush1.msra.mxu0 0.0
        %3596 = vmatprep.subr.mxu0 0.0
        %3597 = vmatpush1.msra.mxu0 0.0
        %3598 = vmatprep.subr.mxu0 0.0
        %3599 = vmatpush1.msra.mxu0 0.0
        %3600 = vmatprep.subr.mxu0 0.0
        %3601 = vmatpush1.msra.mxu0 0.0
        %3602 = vmatprep.subr.mxu0 0.0
        %3603 = vmatpush1.msra.mxu0 0.0
        %3604 = vmatprep.subr.mxu0 0.0
        %3605 = vmatpush1.msra.mxu0 0.0
        %3606 = vmatprep.subr.mxu0 0.0
        %3607 = vmatpush1.msra.mxu0 0.0
        %3608 = vmatprep.subr.mxu0 0.0
        %3609 = vmatpush1.msra.mxu0 0.0
        %3610 = vmatprep.subr.mxu0 0.0
        %3611 = vmatpush1.msra.mxu0 0.0
        %3612 = vmatprep.subr.mxu0 0.0
        %3613 = vmatpush1.msra.mxu0 0.0
        %3614 = vmatprep.subr.mxu0 0.0
        %3615 = vmatpush1.msra.mxu0 0.0
        %3616 = vmatprep.subr.mxu0 0.0
        %3617 = vmatpush1.msra.mxu0 0.0
        %3618 = vmatprep.subr.mxu0 0.0
        %3619 = vmatpush1.msra.mxu0 0.0
        %3620 = vmatprep.subr.mxu0 0.0
        %3621 = vmatpush1.msra.mxu0 0.0
        %3622 = vmatprep.subr.mxu0 0.0
        %3623 = vmatpush1.msra.mxu0 0.0
        %3624 = vmatprep.subr.mxu0 0.0
        %3625 = vmatpush1.msra.mxu0 0.0
        %3626 = vmatprep.subr.mxu0 0.0
        %3627 = vmatpush1.msra.mxu0 0.0
        %3628 = vmatprep.subr.mxu0 0.0
        %3629 = vmatpush1.msra.mxu0 0.0
        %3630 = vmatprep.subr.mxu0 0.0
        %3631 = vmatpush1.msra.mxu0 0.0
        %3632 = vmatprep.subr.mxu0 0.0
        %3633 = vmatpush1.msra.mxu0 0.0
        %3634 = vmatprep.subr.mxu0 0.0
        %3635 = vmatpush1.msra.mxu0 0.0
        %3636 = vmatprep.subr.mxu0 0.0
        %3637 = vmatpush1.msra.mxu0 0.0
        %3638 = vmatprep.subr.mxu0 0.0
        %3639 = vmatpush1.msra.mxu0 0.0
        %3640 = vmatprep.subr.mxu0 0.0
        %3641 = vmatpush1.msra.mxu0 0.0
        %3642 = vmatprep.subr.mxu0 0.0
        %3643 = vmatpush1.msra.mxu0 0.0
        %3644 = vmatprep.mubr.f32.mxu0 0.0
        %3645 = vmatmul.mubr.f32.gmra.mrb[0].mxu0 %v3255
        %v3646 = vpop.f32.mrb[0].mxu0
        %v3647 = vadd.f32 0.0, %v3646
        %v3648 = vpop.f32.mrb[0].mxu0
        %v3649 = vadd.f32 0.0, %v3648
        %3650 = vmatprep.mubr.f32.mxu0 0.0
        %3651 = vmatmul.mubr.f32.gmra.mrb[0].mxu0 %v3258
        %v3652 = vpop.f32.mrb[0].mxu0
        %v3653 = vadd.f32 0.0, %v3652
        %v3654 = vpop.f32.mrb[0].mxu0
        %v3655 = vadd.f32 0.0, %v3654
        %3656 = vmatprep.mubr.f32.mxu0 0.0
        %3657 = vmatmul.mubr.f32.gmra.mrb[0].mxu0 %v3261
        %v3658 = vpop.f32.mrb[0].mxu0
        %v3659 = vadd.f32 0.0, %v3658
        %v3660 = vpop.f32.mrb[0].mxu0
        %v3661 = vadd.f32 0.0, %v3660
        %3662 = vmatprep.mubr.f32.mxu0 0.0
        %3663 = vmatmul.mubr.f32.gmra.mrb[0].mxu0 %v3264
        %v3664 = vpop.f32.mrb[0].mxu0
        %v3665 = vadd.f32 0.0, %v3664
        %v3666 = vpop.f32.mrb[0].mxu0
        %v3667 = vadd.f32 0.0, %v3666
        %3668 = vdwg.mxu0
        %3669 = vmatprep.subr.mxu0 %v3149
        %3670 = vmatpush1.msra.mxu0 %v3148
        %3671 = vmatprep.subr.mxu0 %v3165
        %3672 = vmatpush1.msra.mxu0 %v3164
        %3673 = vmatprep.subr.mxu0 %v3376
        %3674 = vmatpush1.msra.mxu0 %v3373
        %3675 = vmatprep.subr.mxu0 0.0
        %3676 = vmatpush1.msra.mxu0 0.0
        %3677 = vmatprep.subr.mxu0 0.0
        %3678 = vmatpush1.msra.mxu0 0.0
        %3679 = vmatprep.subr.mxu0 0.0
        %3680 = vmatpush1.msra.mxu0 0.0
        %3681 = vmatprep.subr.mxu0 0.0
        %3682 = vmatpush1.msra.mxu0 0.0
        %3683 = vmatprep.subr.mxu0 0.0
        %3684 = vmatpush1.msra.mxu0 0.0
        %3685 = vmatprep.subr.mxu0 0.0
        %3686 = vmatpush1.msra.mxu0 0.0
        %3687 = vmatprep.subr.mxu0 0.0
        %3688 = vmatpush1.msra.mxu0 0.0
        %3689 = vmatprep.subr.mxu0 0.0
        %3690 = vmatpush1.msra.mxu0 0.0
        %3691 = vmatprep.subr.mxu0 0.0
        %3692 = vmatpush1.msra.mxu0 0.0
        %3693 = vmatprep.subr.mxu0 0.0
        %3694 = vmatpush1.msra.mxu0 0.0
        %3695 = vmatprep.subr.mxu0 0.0
        %3696 = vmatpush1.msra.mxu0 0.0
        %3697 = vmatprep.subr.mxu0 0.0
        %3698 = vmatpush1.msra.mxu0 0.0
        %3699 = vmatprep.subr.mxu0 0.0
        %3700 = vmatpush1.msra.mxu0 0.0
        %3701 = vmatprep.subr.mxu0 0.0
        %3702 = vmatpush1.msra.mxu0 0.0
        %3703 = vmatprep.subr.mxu0 0.0
        %3704 = vmatpush1.msra.mxu0 0.0
        %3705 = vmatprep.subr.mxu0 0.0
        %3706 = vmatpush1.msra.mxu0 0.0
        %3707 = vmatprep.subr.mxu0 0.0
        %3708 = vmatpush1.msra.mxu0 0.0
        %3709 = vmatprep.subr.mxu0 0.0
        %3710 = vmatpush1.msra.mxu0 0.0
        %3711 = vmatprep.subr.mxu0 0.0
        %3712 = vmatpush1.msra.mxu0 0.0
        %3713 = vmatprep.subr.mxu0 0.0
        %3714 = vmatpush1.msra.mxu0 0.0
        %3715 = vmatprep.subr.mxu0 0.0
        %3716 = vmatpush1.msra.mxu0 0.0
        %3717 = vmatprep.subr.mxu0 0.0
        %3718 = vmatpush1.msra.mxu0 0.0
        %3719 = vmatprep.subr.mxu0 0.0
        %3720 = vmatpush1.msra.mxu0 0.0
        %3721 = vmatprep.subr.mxu0 0.0
        %3722 = vmatpush1.msra.mxu0 0.0
        %3723 = vmatprep.subr.mxu0 0.0
        %3724 = vmatpush1.msra.mxu0 0.0
        %3725 = vmatprep.subr.mxu0 0.0
        %3726 = vmatpush1.msra.mxu0 0.0
        %3727 = vmatprep.subr.mxu0 0.0
        %3728 = vmatpush1.msra.mxu0 0.0
        %3729 = vmatprep.subr.mxu0 0.0
        %3730 = vmatpush1.msra.mxu0 0.0
        %3731 = vmatprep.subr.mxu0 0.0
        %3732 = vmatpush1.msra.mxu0 0.0
        %3733 = vmatprep.mubr.f32.mxu0 0.0
        %3734 = vmatmul.mubr.f32.gmra.mrb[0].mxu0 %v3255
        %v3735 = vpop.f32.mrb[0].mxu0
        %v3736 = vadd.f32 0.0, %v3735
        %v3737 = vpop.f32.mrb[0].mxu0
        %v3738 = vadd.f32 0.0, %v3737
        %3739 = vmatprep.mubr.f32.mxu0 0.0
        %3740 = vmatmul.mubr.f32.gmra.mrb[0].mxu0 %v3258
        %v3741 = vpop.f32.mrb[0].mxu0
        %v3742 = vadd.f32 0.0, %v3741
        %v3743 = vpop.f32.mrb[0].mxu0
        %v3744 = vadd.f32 0.0, %v3743
        %3745 = vmatprep.mubr.f32.mxu0 0.0
        %3746 = vmatmul.mubr.f32.gmra.mrb[0].mxu0 %v3261
        %v3747 = vpop.f32.mrb[0].mxu0
        %v3748 = vadd.f32 0.0, %v3747
        %v3749 = vpop.f32.mrb[0].mxu0
        %v3750 = vadd.f32 0.0, %v3749
        %3751 = vmatprep.mubr.f32.mxu0 0.0
        %3752 = vmatmul.mubr.f32.gmra.mrb[0].mxu0 %v3264
        %v3753 = vpop.f32.mrb[0].mxu0
        %v3754 = vadd.f32 0.0, %v3753
        %v3755 = vpop.f32.mrb[0].mxu0
        %v3756 = vadd.f32 0.0, %v3755
        %3757 = vdwg.mxu0
        %3758 = vmatprep.subr.mxu0 %v3151
        %3759 = vmatpush1.msra.mxu0 %v3150
        %3760 = vmatprep.subr.mxu0 %v3167
        %3761 = vmatpush1.msra.mxu0 %v3166
        %3762 = vmatprep.subr.mxu0 %v3382
        %3763 = vmatpush1.msra.mxu0 %v3379
        %3764 = vmatprep.subr.mxu0 0.0
        %3765 = vmatpush1.msra.mxu0 0.0
        %3766 = vmatprep.subr.mxu0 0.0
        %3767 = vmatpush1.msra.mxu0 0.0
        %3768 = vmatprep.subr.mxu0 0.0
        %3769 = vmatpush1.msra.mxu0 0.0
        %3770 = vmatprep.subr.mxu0 0.0
        %3771 = vmatpush1.msra.mxu0 0.0
        %3772 = vmatprep.subr.mxu0 0.0
        %3773 = vmatpush1.msra.mxu0 0.0
        %3774 = vmatprep.subr.mxu0 0.0
        %3775 = vmatpush1.msra.mxu0 0.0
        %3776 = vmatprep.subr.mxu0 0.0
        %3777 = vmatpush1.msra.mxu0 0.0
        %3778 = vmatprep.subr.mxu0 0.0
        %3779 = vmatpush1.msra.mxu0 0.0
        %3780 = vmatprep.subr.mxu0 0.0
        %3781 = vmatpush1.msra.mxu0 0.0
        %3782 = vmatprep.subr.mxu0 0.0
        %3783 = vmatpush1.msra.mxu0 0.0
        %3784 = vmatprep.subr.mxu0 0.0
        %3785 = vmatpush1.msra.mxu0 0.0
        %3786 = vmatprep.subr.mxu0 0.0
        %3787 = vmatpush1.msra.mxu0 0.0
        %3788 = vmatprep.subr.mxu0 0.0
        %3789 = vmatpush1.msra.mxu0 0.0
        %3790 = vmatprep.subr.mxu0 0.0
        %3791 = vmatpush1.msra.mxu0 0.0
        %3792 = vmatprep.subr.mxu0 0.0
        %3793 = vmatpush1.msra.mxu0 0.0
        %3794 = vmatprep.subr.mxu0 0.0
        %3795 = vmatpush1.msra.mxu0 0.0
        %3796 = vmatprep.subr.mxu0 0.0
        %3797 = vmatpush1.msra.mxu0 0.0
        %3798 = vmatprep.subr.mxu0 0.0
        %3799 = vmatpush1.msra.mxu0 0.0
        %3800 = vmatprep.subr.mxu0 0.0
        %3801 = vmatpush1.msra.mxu0 0.0
        %3802 = vmatprep.subr.mxu0 0.0
        %3803 = vmatpush1.msra.mxu0 0.0
        %3804 = vmatprep.subr.mxu0 0.0
        %3805 = vmatpush1.msra.mxu0 0.0
        %3806 = vmatprep.subr.mxu0 0.0
        %3807 = vmatpush1.msra.mxu0 0.0
        %3808 = vmatprep.subr.mxu0 0.0
        %3809 = vmatpush1.msra.mxu0 0.0
        %3810 = vmatprep.subr.mxu0 0.0
        %3811 = vmatpush1.msra.mxu0 0.0
        %3812 = vmatprep.subr.mxu0 0.0
        %3813 = vmatpush1.msra.mxu0 0.0
        %3814 = vmatprep.subr.mxu0 0.0
        %3815 = vmatpush1.msra.mxu0 0.0
        %3816 = vmatprep.subr.mxu0 0.0
        %3817 = vmatpush1.msra.mxu0 0.0
        %3818 = vmatprep.subr.mxu0 0.0
        %3819 = vmatpush1.msra.mxu0 0.0
        %3820 = vmatprep.subr.mxu0 0.0
        %3821 = vmatpush1.msra.mxu0 0.0
        %3822 = vmatprep.mubr.f32.mxu0 0.0
        %3823 = vmatmul.mubr.f32.gmra.mrb[0].mxu0 %v3255
        %v3824 = vpop.f32.mrb[0].mxu0
        %v3825 = vadd.f32 0.0, %v3824
        %v3826 = vpop.f32.mrb[0].mxu0
        %v3827 = vadd.f32 0.0, %v3826
        %3828 = vmatprep.mubr.f32.mxu0 0.0
        %3829 = vmatmul.mubr.f32.gmra.mrb[0].mxu0 %v3258
        %v3830 = vpop.f32.mrb[0].mxu0
        %v3831 = vadd.f32 0.0, %v3830
        %v3832 = vpop.f32.mrb[0].mxu0
        %v3833 = vadd.f32 0.0, %v3832
        %3834 = vmatprep.mubr.f32.mxu0 0.0
        %3835 = vmatmul.mubr.f32.gmra.mrb[0].mxu0 %v3261
        %v3836 = vpop.f32.mrb[0].mxu0
        %v3837 = vadd.f32 0.0, %v3836
        %v3838 = vpop.f32.mrb[0].mxu0
        %v3839 = vadd.f32 0.0, %v3838
        %3840 = vmatprep.mubr.f32.mxu0 0.0
        %3841 = vmatmul.mubr.f32.gmra.mrb[0].mxu0 %v3264
        %v3842 = vpop.f32.mrb[0].mxu0
        %v3843 = vadd.f32 0.0, %v3842
        %v3844 = vpop.f32.mrb[0].mxu0
        %v3845 = vadd.f32 0.0, %v3844
        %3846 = vdwg.mxu0
        %3847 = vmatprep.subr.mxu0 %v3153
        %3848 = vmatpush1.msra.mxu0 %v3152
        %3849 = vmatprep.subr.mxu0 %v3169
        %3850 = vmatpush1.msra.mxu0 %v3168
        %3851 = vmatprep.subr.mxu0 %v3388
        %3852 = vmatpush1.msra.mxu0 %v3385
        %3853 = vmatprep.subr.mxu0 0.0
        %3854 = vmatpush1.msra.mxu0 0.0
        %3855 = vmatprep.subr.mxu0 0.0
        %3856 = vmatpush1.msra.mxu0 0.0
        %3857 = vmatprep.subr.mxu0 0.0
        %3858 = vmatpush1.msra.mxu0 0.0
        %3859 = vmatprep.subr.mxu0 0.0
        %3860 = vmatpush1.msra.mxu0 0.0
        %3861 = vmatprep.subr.mxu0 0.0
        %3862 = vmatpush1.msra.mxu0 0.0
        %3863 = vmatprep.subr.mxu0 0.0
        %3864 = vmatpush1.msra.mxu0 0.0
        %3865 = vmatprep.subr.mxu0 0.0
        %3866 = vmatpush1.msra.mxu0 0.0
        %3867 = vmatprep.subr.mxu0 0.0
        %3868 = vmatpush1.msra.mxu0 0.0
        %3869 = vmatprep.subr.mxu0 0.0
        %3870 = vmatpush1.msra.mxu0 0.0
        %3871 = vmatprep.subr.mxu0 0.0
        %3872 = vmatpush1.msra.mxu0 0.0
        %3873 = vmatprep.subr.mxu0 0.0
        %3874 = vmatpush1.msra.mxu0 0.0
        %3875 = vmatprep.subr.mxu0 0.0
        %3876 = vmatpush1.msra.mxu0 0.0
        %3877 = vmatprep.subr.mxu0 0.0
        %3878 = vmatpush1.msra.mxu0 0.0
        %3879 = vmatprep.subr.mxu0 0.0
        %3880 = vmatpush1.msra.mxu0 0.0
        %3881 = vmatprep.subr.mxu0 0.0
        %3882 = vmatpush1.msra.mxu0 0.0
        %3883 = vmatprep.subr.mxu0 0.0
        %3884 = vmatpush1.msra.mxu0 0.0
        %3885 = vmatprep.subr.mxu0 0.0
        %3886 = vmatpush1.msra.mxu0 0.0
        %3887 = vmatprep.subr.mxu0 0.0
        %3888 = vmatpush1.msra.mxu0 0.0
        %3889 = vmatprep.subr.mxu0 0.0
        %3890 = vmatpush1.msra.mxu0 0.0
        %3891 = vmatprep.subr.mxu0 0.0
        %3892 = vmatpush1.msra.mxu0 0.0
        %3893 = vmatprep.subr.mxu0 0.0
        %3894 = vmatpush1.msra.mxu0 0.0
        %3895 = vmatprep.subr.mxu0 0.0
        %3896 = vmatpush1.msra.mxu0 0.0
        %3897 = vmatprep.subr.mxu0 0.0
        %3898 = vmatpush1.msra.mxu0 0.0
        %3899 = vmatprep.subr.mxu0 0.0
        %3900 = vmatpush1.msra.mxu0 0.0
        %3901 = vmatprep.subr.mxu0 0.0
        %3902 = vmatpush1.msra.mxu0 0.0
        %3903 = vmatprep.subr.mxu0 0.0
        %3904 = vmatpush1.msra.mxu0 0.0
        %3905 = vmatprep.subr.mxu0 0.0
        %3906 = vmatpush1.msra.mxu0 0.0
        %3907 = vmatprep.subr.mxu0 0.0
        %3908 = vmatpush1.msra.mxu0 0.0
        %3909 = vmatprep.subr.mxu0 0.0
        %3910 = vmatpush1.msra.mxu0 0.0
        %3911 = vmatprep.mubr.f32.mxu0 0.0
        %3912 = vmatmul.mubr.f32.gmra.mrb[0].mxu0 %v3255
        %v3913 = vpop.f32.mrb[0].mxu0
        %v3914 = vadd.f32 0.0, %v3913
        %v3915 = vpop.f32.mrb[0].mxu0
        %v3916 = vadd.f32 0.0, %v3915
        %3917 = vmatprep.mubr.f32.mxu0 0.0
        %3918 = vmatmul.mubr.f32.gmra.mrb[0].mxu0 %v3258
        %v3919 = vpop.f32.mrb[0].mxu0
        %v3920 = vadd.f32 0.0, %v3919
        %v3921 = vpop.f32.mrb[0].mxu0
        %v3922 = vadd.f32 0.0, %v3921
        %3923 = vmatprep.mubr.f32.mxu0 0.0
        %3924 = vmatmul.mubr.f32.gmra.mrb[0].mxu0 %v3261
        %v3925 = vpop.f32.mrb[0].mxu0
        %v3926 = vadd.f32 0.0, %v3925
        %v3927 = vpop.f32.mrb[0].mxu0
        %v3928 = vadd.f32 0.0, %v3927
        %3929 = vmatprep.mubr.f32.mxu0 0.0
        %3930 = vmatmul.mubr.f32.gmra.mrb[0].mxu0 %v3264
        %v3931 = vpop.f32.mrb[0].mxu0
        %v3932 = vadd.f32 0.0, %v3931
        %v3933 = vpop.f32.mrb[0].mxu0
        %v3934 = vadd.f32 0.0, %v3933
        %3935 = vdwg.mxu0
        %3936 = vmatprep.subr.mxu0 %v3155
        %3937 = vmatpush1.msra.mxu0 %v3154
        %3938 = vmatprep.subr.mxu0 %v3171
        %3939 = vmatpush1.msra.mxu0 %v3170
        %3940 = vmatprep.subr.mxu0 %v3394
        %3941 = vmatpush1.msra.mxu0 %v3391
        %3942 = vmatprep.subr.mxu0 0.0
        %3943 = vmatpush1.msra.mxu0 0.0
        %3944 = vmatprep.subr.mxu0 0.0
        %3945 = vmatpush1.msra.mxu0 0.0
        %3946 = vmatprep.subr.mxu0 0.0
        %3947 = vmatpush1.msra.mxu0 0.0
        %3948 = vmatprep.subr.mxu0 0.0
        %3949 = vmatpush1.msra.mxu0 0.0
        %3950 = vmatprep.subr.mxu0 0.0
        %3951 = vmatpush1.msra.mxu0 0.0
        %3952 = vmatprep.subr.mxu0 0.0
        %3953 = vmatpush1.msra.mxu0 0.0
        %3954 = vmatprep.subr.mxu0 0.0
        %3955 = vmatpush1.msra.mxu0 0.0
        %3956 = vmatprep.subr.mxu0 0.0
        %3957 = vmatpush1.msra.mxu0 0.0
        %3958 = vmatprep.subr.mxu0 0.0
        %3959 = vmatpush1.msra.mxu0 0.0
        %3960 = vmatprep.subr.mxu0 0.0
        %3961 = vmatpush1.msra.mxu0 0.0
        %3962 = vmatprep.subr.mxu0 0.0
        %3963 = vmatpush1.msra.mxu0 0.0
        %3964 = vmatprep.subr.mxu0 0.0
        %3965 = vmatpush1.msra.mxu0 0.0
        %3966 = vmatprep.subr.mxu0 0.0
        %3967 = vmatpush1.msra.mxu0 0.0
        %3968 = vmatprep.subr.mxu0 0.0
        %3969 = vmatpush1.msra.mxu0 0.0
        %3970 = vmatprep.subr.mxu0 0.0
        %3971 = vmatpush1.msra.mxu0 0.0
        %3972 = vmatprep.subr.mxu0 0.0
        %3973 = vmatpush1.msra.mxu0 0.0
        %3974 = vmatprep.subr.mxu0 0.0
        %3975 = vmatpush1.msra.mxu0 0.0
        %3976 = vmatprep.subr.mxu0 0.0
        %3977 = vmatpush1.msra.mxu0 0.0
        %3978 = vmatprep.subr.mxu0 0.0
        %3979 = vmatpush1.msra.mxu0 0.0
        %3980 = vmatprep.subr.mxu0 0.0
        %3981 = vmatpush1.msra.mxu0 0.0
        %3982 = vmatprep.subr.mxu0 0.0
        %3983 = vmatpush1.msra.mxu0 0.0
        %3984 = vmatprep.subr.mxu0 0.0
        %3985 = vmatpush1.msra.mxu0 0.0
        %3986 = vmatprep.subr.mxu0 0.0
        %3987 = vmatpush1.msra.mxu0 0.0
        %3988 = vmatprep.subr.mxu0 0.0
        %3989 = vmatpush1.msra.mxu0 0.0
        %3990 = vmatprep.subr.mxu0 0.0
        %3991 = vmatpush1.msra.mxu0 0.0
        %3992 = vmatprep.subr.mxu0 0.0
        %3993 = vmatpush1.msra.mxu0 0.0
        %3994 = vmatprep.subr.mxu0 0.0
        %3995 = vmatpush1.msra.mxu0 0.0
        %3996 = vmatprep.subr.mxu0 0.0
        %3997 = vmatpush1.msra.mxu0 0.0
        %3998 = vmatprep.subr.mxu0 0.0
        %3999 = vmatpush1.msra.mxu0 0.0
        %4000 = vmatprep.mubr.f32.mxu0 0.0
        %4001 = vmatmul.mubr.f32.gmra.mrb[0].mxu0 %v3255
        %v4002 = vpop.f32.mrb[0].mxu0
        %v4003 = vadd.f32 0.0, %v4002
        %v4004 = vpop.f32.mrb[0].mxu0
        %v4005 = vadd.f32 0.0, %v4004
        %4006 = vmatprep.mubr.f32.mxu0 0.0
        %4007 = vmatmul.mubr.f32.gmra.mrb[0].mxu0 %v3258
        %v4008 = vpop.f32.mrb[0].mxu0
        %v4009 = vadd.f32 0.0, %v4008
        %v4010 = vpop.f32.mrb[0].mxu0
        %v4011 = vadd.f32 0.0, %v4010
        %4012 = vmatprep.mubr.f32.mxu0 0.0
        %4013 = vmatmul.mubr.f32.gmra.mrb[0].mxu0 %v3261
        %v4014 = vpop.f32.mrb[0].mxu0
        %v4015 = vadd.f32 0.0, %v4014
        %v4016 = vpop.f32.mrb[0].mxu0
        %v4017 = vadd.f32 0.0, %v4016
        %4018 = vmatprep.mubr.f32.mxu0 0.0
        %4019 = vmatmul.mubr.f32.gmra.mrb[0].mxu0 %v3264
        %v4020 = vpop.f32.mrb[0].mxu0
        %v4021 = vadd.f32 0.0, %v4020
        %v4022 = vpop.f32.mrb[0].mxu0
        %v4023 = vadd.f32 0.0, %v4022
        %4024 = vdwg.mxu0
        %4025 = vmatprep.subr.mxu0 %v3157
        %4026 = vmatpush1.msra.mxu0 %v3156
        %4027 = vmatprep.subr.mxu0 %v3173
        %4028 = vmatpush1.msra.mxu0 %v3172
        %4029 = vmatprep.subr.mxu0 %v3400
        %4030 = vmatpush1.msra.mxu0 %v3397
        %4031 = vmatprep.subr.mxu0 0.0
        %4032 = vmatpush1.msra.mxu0 0.0
        %4033 = vmatprep.subr.mxu0 0.0
        %4034 = vmatpush1.msra.mxu0 0.0
        %4035 = vmatprep.subr.mxu0 0.0
        %4036 = vmatpush1.msra.mxu0 0.0
        %4037 = vmatprep.subr.mxu0 0.0
        %4038 = vmatpush1.msra.mxu0 0.0
        %4039 = vmatprep.subr.mxu0 0.0
        %4040 = vmatpush1.msra.mxu0 0.0
        %4041 = vmatprep.subr.mxu0 0.0
        %4042 = vmatpush1.msra.mxu0 0.0
        %4043 = vmatprep.subr.mxu0 0.0
        %4044 = vmatpush1.msra.mxu0 0.0
        %4045 = vmatprep.subr.mxu0 0.0
        %4046 = vmatpush1.msra.mxu0 0.0
        %4047 = vmatprep.subr.mxu0 0.0
        %4048 = vmatpush1.msra.mxu0 0.0
        %4049 = vmatprep.subr.mxu0 0.0
        %4050 = vmatpush1.msra.mxu0 0.0
        %4051 = vmatprep.subr.mxu0 0.0
        %4052 = vmatpush1.msra.mxu0 0.0
        %4053 = vmatprep.subr.mxu0 0.0
        %4054 = vmatpush1.msra.mxu0 0.0
        %4055 = vmatprep.subr.mxu0 0.0
        %4056 = vmatpush1.msra.mxu0 0.0
        %4057 = vmatprep.subr.mxu0 0.0
        %4058 = vmatpush1.msra.mxu0 0.0
        %4059 = vmatprep.subr.mxu0 0.0
        %4060 = vmatpush1.msra.mxu0 0.0
        %4061 = vmatprep.subr.mxu0 0.0
        %4062 = vmatpush1.msra.mxu0 0.0
        %4063 = vmatprep.subr.mxu0 0.0
        %4064 = vmatpush1.msra.mxu0 0.0
        %4065 = vmatprep.subr.mxu0 0.0
        %4066 = vmatpush1.msra.mxu0 0.0
        %4067 = vmatprep.subr.mxu0 0.0
        %4068 = vmatpush1.msra.mxu0 0.0
        %4069 = vmatprep.subr.mxu0 0.0
        %4070 = vmatpush1.msra.mxu0 0.0
        %4071 = vmatprep.subr.mxu0 0.0
        %4072 = vmatpush1.msra.mxu0 0.0
        %4073 = vmatprep.subr.mxu0 0.0
        %4074 = vmatpush1.msra.mxu0 0.0
        %4075 = vmatprep.subr.mxu0 0.0
        %4076 = vmatpush1.msra.mxu0 0.0
        %4077 = vmatprep.subr.mxu0 0.0
        %4078 = vmatpush1.msra.mxu0 0.0
        %4079 = vmatprep.subr.mxu0 0.0
        %4080 = vmatpush1.msra.mxu0 0.0
        %4081 = vmatprep.subr.mxu0 0.0
        %4082 = vmatpush1.msra.mxu0 0.0
        %4083 = vmatprep.subr.mxu0 0.0
        %4084 = vmatpush1.msra.mxu0 0.0
        %4085 = vmatprep.subr.mxu0 0.0
        %4086 = vmatpush1.msra.mxu0 0.0
        %4087 = vmatprep.subr.mxu0 0.0
        %4088 = vmatpush1.msra.mxu0 0.0
        %4089 = vmatprep.mubr.f32.mxu0 0.0
        %4090 = vmatmul.mubr.f32.gmra.mrb[0].mxu0 %v3255
        %v4091 = vpop.f32.mrb[0].mxu0
        %v4092 = vadd.f32 0.0, %v4091
        %v4093 = vpop.f32.mrb[0].mxu0
        %v4094 = vadd.f32 0.0, %v4093
        %4095 = vmatprep.mubr.f32.mxu0 0.0
        %4096 = vmatmul.mubr.f32.gmra.mrb[0].mxu0 %v3258
        %v4097 = vpop.f32.mrb[0].mxu0
        %v4098 = vadd.f32 0.0, %v4097
        %v4099 = vpop.f32.mrb[0].mxu0
        %v4100 = vadd.f32 0.0, %v4099
        %4101 = vmatprep.mubr.f32.mxu0 0.0
        %4102 = vmatmul.mubr.f32.gmra.mrb[0].mxu0 %v3261
        %v4103 = vpop.f32.mrb[0].mxu0
        %v4104 = vadd.f32 0.0, %v4103
        %v4105 = vpop.f32.mrb[0].mxu0
        %v4106 = vadd.f32 0.0, %v4105
        %4107 = vmatprep.mubr.f32.mxu0 0.0
        %4108 = vmatmul.mubr.f32.gmra.mrb[0].mxu0 %v3264
        %v4109 = vpop.f32.mrb[0].mxu0
        %v4110 = vadd.f32 0.0, %v4109
        %v4111 = vpop.f32.mrb[0].mxu0
        %v4112 = vadd.f32 0.0, %v4111
        %4113 = vdwg.mxu0
        %v4115 = vsel %vm571, %v3222, 0
        %v4118 = vsel %vm571, %v3223, 0
        %v4121 = vsel %vm571, %v3224, 0
        %v4124 = vsel %vm571, %v3225, 0
        %v4127 = vsel %vm571, %v3226, 0
        %v4130 = vsel %vm571, %v3227, 0
        %v4133 = vsel %vm571, %v3228, 0
        %v4136 = vsel %vm571, %v3229, 0
        %v4139 = vsel %vm571, %v3230, 0
        %v4142 = vsel %vm571, %v3231, 0
        %v4145 = vsel %vm571, %v3232, 0
        %v4148 = vsel %vm571, %v3233, 0
        %v4151 = vsel %vm571, %v3234, 0
        %v4154 = vsel %vm571, %v3235, 0
        %v4157 = vsel %vm571, %v3236, 0
        %v4160 = vsel %vm571, %v3237, 0
        %4162 = vmatprep.subr.mxu0 %v3191
        %4163 = vmatpush1.msra.mxu0 %v3190
        %4164 = vmatprep.subr.mxu0 %v3207
        %4165 = vmatpush1.msra.mxu0 %v3206
        %4166 = vmatprep.subr.mxu0 %v4118
        %4167 = vmatpush1.msra.mxu0 %v4115
        %4168 = vmatprep.subr.mxu0 0.0
        %4169 = vmatpush1.msra.mxu0 0.0
        %4170 = vmatprep.subr.mxu0 0.0
        %4171 = vmatpush1.msra.mxu0 0.0
        %4172 = vmatprep.subr.mxu0 0.0
        %4173 = vmatpush1.msra.mxu0 0.0
        %4174 = vmatprep.subr.mxu0 0.0
        %4175 = vmatpush1.msra.mxu0 0.0
        %4176 = vmatprep.subr.mxu0 0.0
        %4177 = vmatpush1.msra.mxu0 0.0
        %4178 = vmatprep.subr.mxu0 0.0
        %4179 = vmatpush1.msra.mxu0 0.0
        %4180 = vmatprep.subr.mxu0 0.0
        %4181 = vmatpush1.msra.mxu0 0.0
        %4182 = vmatprep.subr.mxu0 0.0
        %4183 = vmatpush1.msra.mxu0 0.0
        %4184 = vmatprep.subr.mxu0 0.0
        %4185 = vmatpush1.msra.mxu0 0.0
        %4186 = vmatprep.subr.mxu0 0.0
        %4187 = vmatpush1.msra.mxu0 0.0
        %4188 = vmatprep.subr.mxu0 0.0
        %4189 = vmatpush1.msra.mxu0 0.0
        %4190 = vmatprep.subr.mxu0 0.0
        %4191 = vmatpush1.msra.mxu0 0.0
        %4192 = vmatprep.subr.mxu0 0.0
        %4193 = vmatpush1.msra.mxu0 0.0
        %4194 = vmatprep.subr.mxu0 0.0
        %4195 = vmatpush1.msra.mxu0 0.0
        %4196 = vmatprep.subr.mxu0 0.0
        %4197 = vmatpush1.msra.mxu0 0.0
        %4198 = vmatprep.subr.mxu0 0.0
        %4199 = vmatpush1.msra.mxu0 0.0
        %4200 = vmatprep.subr.mxu0 0.0
        %4201 = vmatpush1.msra.mxu0 0.0
        %4202 = vmatprep.subr.mxu0 0.0
        %4203 = vmatpush1.msra.mxu0 0.0
        %4204 = vmatprep.subr.mxu0 0.0
        %4205 = vmatpush1.msra.mxu0 0.0
        %4206 = vmatprep.subr.mxu0 0.0
        %4207 = vmatpush1.msra.mxu0 0.0
        %4208 = vmatprep.subr.mxu0 0.0
        %4209 = vmatpush1.msra.mxu0 0.0
        %4210 = vmatprep.subr.mxu0 0.0
        %4211 = vmatpush1.msra.mxu0 0.0
        %4212 = vmatprep.subr.mxu0 0.0
        %4213 = vmatpush1.msra.mxu0 0.0
        %4214 = vmatprep.subr.mxu0 0.0
        %4215 = vmatpush1.msra.mxu0 0.0
        %4216 = vmatprep.subr.mxu0 0.0
        %4217 = vmatpush1.msra.mxu0 0.0
        %4218 = vmatprep.subr.mxu0 0.0
        %4219 = vmatpush1.msra.mxu0 0.0
        %4220 = vmatprep.subr.mxu0 0.0
        %4221 = vmatpush1.msra.mxu0 0.0
        %4222 = vmatprep.subr.mxu0 0.0
        %4223 = vmatpush1.msra.mxu0 0.0
        %4224 = vmatprep.subr.mxu0 0.0
        %4225 = vmatpush1.msra.mxu0 0.0
        %4226 = vmatprep.mubr.f32.mxu0 0.0
        %4227 = vmatmul.mubr.f32.gmra.mrb[0].mxu0 %v3255
        %v4228 = vpop.f32.mrb[0].mxu0
        %v4229 = vadd.f32 0.0, %v4228
        %v4230 = vpop.f32.mrb[0].mxu0
        %v4231 = vadd.f32 0.0, %v4230
        %4232 = vmatprep.mubr.f32.mxu0 0.0
        %4233 = vmatmul.mubr.f32.gmra.mrb[0].mxu0 %v3258
        %v4234 = vpop.f32.mrb[0].mxu0
        %v4235 = vadd.f32 0.0, %v4234
        %v4236 = vpop.f32.mrb[0].mxu0
        %v4237 = vadd.f32 0.0, %v4236
        %4238 = vmatprep.mubr.f32.mxu0 0.0
        %4239 = vmatmul.mubr.f32.gmra.mrb[0].mxu0 %v3261
        %v4240 = vpop.f32.mrb[0].mxu0
        %v4241 = vadd.f32 0.0, %v4240
        %v4242 = vpop.f32.mrb[0].mxu0
        %v4243 = vadd.f32 0.0, %v4242
        %4244 = vmatprep.mubr.f32.mxu0 0.0
        %4245 = vmatmul.mubr.f32.gmra.mrb[0].mxu0 %v3264
        %v4246 = vpop.f32.mrb[0].mxu0
        %v4247 = vadd.f32 0.0, %v4246
        %v4248 = vpop.f32.mrb[0].mxu0
        %v4249 = vadd.f32 0.0, %v4248
        %4250 = vdwg.mxu0
        %4251 = vmatprep.subr.mxu0 %v3193
        %4252 = vmatpush1.msra.mxu0 %v3192
        %4253 = vmatprep.subr.mxu0 %v3209
        %4254 = vmatpush1.msra.mxu0 %v3208
        %4255 = vmatprep.subr.mxu0 %v4124
        %4256 = vmatpush1.msra.mxu0 %v4121
        %4257 = vmatprep.subr.mxu0 0.0
        %4258 = vmatpush1.msra.mxu0 0.0
        %4259 = vmatprep.subr.mxu0 0.0
        %4260 = vmatpush1.msra.mxu0 0.0
        %4261 = vmatprep.subr.mxu0 0.0
        %4262 = vmatpush1.msra.mxu0 0.0
        %4263 = vmatprep.subr.mxu0 0.0
        %4264 = vmatpush1.msra.mxu0 0.0
        %4265 = vmatprep.subr.mxu0 0.0
        %4266 = vmatpush1.msra.mxu0 0.0
        %4267 = vmatprep.subr.mxu0 0.0
        %4268 = vmatpush1.msra.mxu0 0.0
        %4269 = vmatprep.subr.mxu0 0.0
        %4270 = vmatpush1.msra.mxu0 0.0
        %4271 = vmatprep.subr.mxu0 0.0
        %4272 = vmatpush1.msra.mxu0 0.0
        %4273 = vmatprep.subr.mxu0 0.0
        %4274 = vmatpush1.msra.mxu0 0.0
        %4275 = vmatprep.subr.mxu0 0.0
        %4276 = vmatpush1.msra.mxu0 0.0
        %4277 = vmatprep.subr.mxu0 0.0
        %4278 = vmatpush1.msra.mxu0 0.0
        %4279 = vmatprep.subr.mxu0 0.0
        %4280 = vmatpush1.msra.mxu0 0.0
        %4281 = vmatprep.subr.mxu0 0.0
        %4282 = vmatpush1.msra.mxu0 0.0
        %4283 = vmatprep.subr.mxu0 0.0
        %4284 = vmatpush1.msra.mxu0 0.0
        %4285 = vmatprep.subr.mxu0 0.0
        %4286 = vmatpush1.msra.mxu0 0.0
        %4287 = vmatprep.subr.mxu0 0.0
        %4288 = vmatpush1.msra.mxu0 0.0
        %4289 = vmatprep.subr.mxu0 0.0
        %4290 = vmatpush1.msra.mxu0 0.0
        %4291 = vmatprep.subr.mxu0 0.0
        %4292 = vmatpush1.msra.mxu0 0.0
        %4293 = vmatprep.subr.mxu0 0.0
        %4294 = vmatpush1.msra.mxu0 0.0
        %4295 = vmatprep.subr.mxu0 0.0
        %4296 = vmatpush1.msra.mxu0 0.0
        %4297 = vmatprep.subr.mxu0 0.0
        %4298 = vmatpush1.msra.mxu0 0.0
        %4299 = vmatprep.subr.mxu0 0.0
        %4300 = vmatpush1.msra.mxu0 0.0
        %4301 = vmatprep.subr.mxu0 0.0
        %4302 = vmatpush1.msra.mxu0 0.0
        %4303 = vmatprep.subr.mxu0 0.0
        %4304 = vmatpush1.msra.mxu0 0.0
        %4305 = vmatprep.subr.mxu0 0.0
        %4306 = vmatpush1.msra.mxu0 0.0
        %4307 = vmatprep.subr.mxu0 0.0
        %4308 = vmatpush1.msra.mxu0 0.0
        %4309 = vmatprep.subr.mxu0 0.0
        %4310 = vmatpush1.msra.mxu0 0.0
        %4311 = vmatprep.subr.mxu0 0.0
        %4312 = vmatpush1.msra.mxu0 0.0
        %4313 = vmatprep.subr.mxu0 0.0
        %4314 = vmatpush1.msra.mxu0 0.0
        %4315 = vmatprep.mubr.f32.mxu0 0.0
        %4316 = vmatmul.mubr.f32.gmra.mrb[0].mxu0 %v3255
        %v4317 = vpop.f32.mrb[0].mxu0
        %v4318 = vadd.f32 0.0, %v4317
        %v4319 = vpop.f32.mrb[0].mxu0
        %v4320 = vadd.f32 0.0, %v4319
        %4321 = vmatprep.mubr.f32.mxu0 0.0
        %4322 = vmatmul.mubr.f32.gmra.mrb[0].mxu0 %v3258
        %v4323 = vpop.f32.mrb[0].mxu0
        %v4324 = vadd.f32 0.0, %v4323
        %v4325 = vpop.f32.mrb[0].mxu0
        %v4326 = vadd.f32 0.0, %v4325
        %4327 = vmatprep.mubr.f32.mxu0 0.0
        %4328 = vmatmul.mubr.f32.gmra.mrb[0].mxu0 %v3261
        %v4329 = vpop.f32.mrb[0].mxu0
        %v4330 = vadd.f32 0.0, %v4329
        %v4331 = vpop.f32.mrb[0].mxu0
        %v4332 = vadd.f32 0.0, %v4331
        %4333 = vmatprep.mubr.f32.mxu0 0.0
        %4334 = vmatmul.mubr.f32.gmra.mrb[0].mxu0 %v3264
        %v4335 = vpop.f32.mrb[0].mxu0
        %v4336 = vadd.f32 0.0, %v4335
        %v4337 = vpop.f32.mrb[0].mxu0
        %v4338 = vadd.f32 0.0, %v4337
        %4339 = vdwg.mxu0
        %4340 = vmatprep.subr.mxu0 %v3195
        %4341 = vmatpush1.msra.mxu0 %v3194
        %4342 = vmatprep.subr.mxu0 %v3211
        %4343 = vmatpush1.msra.mxu0 %v3210
        %4344 = vmatprep.subr.mxu0 %v4130
        %4345 = vmatpush1.msra.mxu0 %v4127
        %4346 = vmatprep.subr.mxu0 0.0
        %4347 = vmatpush1.msra.mxu0 0.0
        %4348 = vmatprep.subr.mxu0 0.0
        %4349 = vmatpush1.msra.mxu0 0.0
        %4350 = vmatprep.subr.mxu0 0.0
        %4351 = vmatpush1.msra.mxu0 0.0
        %4352 = vmatprep.subr.mxu0 0.0
        %4353 = vmatpush1.msra.mxu0 0.0
        %4354 = vmatprep.subr.mxu0 0.0
        %4355 = vmatpush1.msra.mxu0 0.0
        %4356 = vmatprep.subr.mxu0 0.0
        %4357 = vmatpush1.msra.mxu0 0.0
        %4358 = vmatprep.subr.mxu0 0.0
        %4359 = vmatpush1.msra.mxu0 0.0
        %4360 = vmatprep.subr.mxu0 0.0
        %4361 = vmatpush1.msra.mxu0 0.0
        %4362 = vmatprep.subr.mxu0 0.0
        %4363 = vmatpush1.msra.mxu0 0.0
        %4364 = vmatprep.subr.mxu0 0.0
        %4365 = vmatpush1.msra.mxu0 0.0
        %4366 = vmatprep.subr.mxu0 0.0
        %4367 = vmatpush1.msra.mxu0 0.0
        %4368 = vmatprep.subr.mxu0 0.0
        %4369 = vmatpush1.msra.mxu0 0.0
        %4370 = vmatprep.subr.mxu0 0.0
        %4371 = vmatpush1.msra.mxu0 0.0
        %4372 = vmatprep.subr.mxu0 0.0
        %4373 = vmatpush1.msra.mxu0 0.0
        %4374 = vmatprep.subr.mxu0 0.0
        %4375 = vmatpush1.msra.mxu0 0.0
        %4376 = vmatprep.subr.mxu0 0.0
        %4377 = vmatpush1.msra.mxu0 0.0
        %4378 = vmatprep.subr.mxu0 0.0
        %4379 = vmatpush1.msra.mxu0 0.0
        %4380 = vmatprep.subr.mxu0 0.0
        %4381 = vmatpush1.msra.mxu0 0.0
        %4382 = vmatprep.subr.mxu0 0.0
        %4383 = vmatpush1.msra.mxu0 0.0
        %4384 = vmatprep.subr.mxu0 0.0
        %4385 = vmatpush1.msra.mxu0 0.0
        %4386 = vmatprep.subr.mxu0 0.0
        %4387 = vmatpush1.msra.mxu0 0.0
        %4388 = vmatprep.subr.mxu0 0.0
        %4389 = vmatpush1.msra.mxu0 0.0
        %4390 = vmatprep.subr.mxu0 0.0
        %4391 = vmatpush1.msra.mxu0 0.0
        %4392 = vmatprep.subr.mxu0 0.0
        %4393 = vmatpush1.msra.mxu0 0.0
        %4394 = vmatprep.subr.mxu0 0.0
        %4395 = vmatpush1.msra.mxu0 0.0
        %4396 = vmatprep.subr.mxu0 0.0
        %4397 = vmatpush1.msra.mxu0 0.0
        %4398 = vmatprep.subr.mxu0 0.0
        %4399 = vmatpush1.msra.mxu0 0.0
        %4400 = vmatprep.subr.mxu0 0.0
        %4401 = vmatpush1.msra.mxu0 0.0
        %4402 = vmatprep.subr.mxu0 0.0
        %4403 = vmatpush1.msra.mxu0 0.0
        %4404 = vmatprep.mubr.f32.mxu0 0.0
        %4405 = vmatmul.mubr.f32.gmra.mrb[0].mxu0 %v3255
        %v4406 = vpop.f32.mrb[0].mxu0
        %v4407 = vadd.f32 0.0, %v4406
        %v4408 = vpop.f32.mrb[0].mxu0
        %v4409 = vadd.f32 0.0, %v4408
        %4410 = vmatprep.mubr.f32.mxu0 0.0
        %4411 = vmatmul.mubr.f32.gmra.mrb[0].mxu0 %v3258
        %v4412 = vpop.f32.mrb[0].mxu0
        %v4413 = vadd.f32 0.0, %v4412
        %v4414 = vpop.f32.mrb[0].mxu0
        %v4415 = vadd.f32 0.0, %v4414
        %4416 = vmatprep.mubr.f32.mxu0 0.0
        %4417 = vmatmul.mubr.f32.gmra.mrb[0].mxu0 %v3261
        %v4418 = vpop.f32.mrb[0].mxu0
        %v4419 = vadd.f32 0.0, %v4418
        %v4420 = vpop.f32.mrb[0].mxu0
        %v4421 = vadd.f32 0.0, %v4420
        %4422 = vmatprep.mubr.f32.mxu0 0.0
        %4423 = vmatmul.mubr.f32.gmra.mrb[0].mxu0 %v3264
        %v4424 = vpop.f32.mrb[0].mxu0
        %v4425 = vadd.f32 0.0, %v4424
        %v4426 = vpop.f32.mrb[0].mxu0
        %v4427 = vadd.f32 0.0, %v4426
        %4428 = vdwg.mxu0
        %4429 = vmatprep.subr.mxu0 %v3197
        %4430 = vmatpush1.msra.mxu0 %v3196
        %4431 = vmatprep.subr.mxu0 %v3213
        %4432 = vmatpush1.msra.mxu0 %v3212
        %4433 = vmatprep.subr.mxu0 %v4136
        %4434 = vmatpush1.msra.mxu0 %v4133
        %4435 = vmatprep.subr.mxu0 0.0
        %4436 = vmatpush1.msra.mxu0 0.0
        %4437 = vmatprep.subr.mxu0 0.0
        %4438 = vmatpush1.msra.mxu0 0.0
        %4439 = vmatprep.subr.mxu0 0.0
        %4440 = vmatpush1.msra.mxu0 0.0
        %4441 = vmatprep.subr.mxu0 0.0
        %4442 = vmatpush1.msra.mxu0 0.0
        %4443 = vmatprep.subr.mxu0 0.0
        %4444 = vmatpush1.msra.mxu0 0.0
        %4445 = vmatprep.subr.mxu0 0.0
        %4446 = vmatpush1.msra.mxu0 0.0
        %4447 = vmatprep.subr.mxu0 0.0
        %4448 = vmatpush1.msra.mxu0 0.0
        %4449 = vmatprep.subr.mxu0 0.0
        %4450 = vmatpush1.msra.mxu0 0.0
        %4451 = vmatprep.subr.mxu0 0.0
        %4452 = vmatpush1.msra.mxu0 0.0
        %4453 = vmatprep.subr.mxu0 0.0
        %4454 = vmatpush1.msra.mxu0 0.0
        %4455 = vmatprep.subr.mxu0 0.0
        %4456 = vmatpush1.msra.mxu0 0.0
        %4457 = vmatprep.subr.mxu0 0.0
        %4458 = vmatpush1.msra.mxu0 0.0
        %4459 = vmatprep.subr.mxu0 0.0
        %4460 = vmatpush1.msra.mxu0 0.0
        %4461 = vmatprep.subr.mxu0 0.0
        %4462 = vmatpush1.msra.mxu0 0.0
        %4463 = vmatprep.subr.mxu0 0.0
        %4464 = vmatpush1.msra.mxu0 0.0
        %4465 = vmatprep.subr.mxu0 0.0
        %4466 = vmatpush1.msra.mxu0 0.0
        %4467 = vmatprep.subr.mxu0 0.0
        %4468 = vmatpush1.msra.mxu0 0.0
        %4469 = vmatprep.subr.mxu0 0.0
        %4470 = vmatpush1.msra.mxu0 0.0
        %4471 = vmatprep.subr.mxu0 0.0
        %4472 = vmatpush1.msra.mxu0 0.0
        %4473 = vmatprep.subr.mxu0 0.0
        %4474 = vmatpush1.msra.mxu0 0.0
        %4475 = vmatprep.subr.mxu0 0.0
        %4476 = vmatpush1.msra.mxu0 0.0
        %4477 = vmatprep.subr.mxu0 0.0
        %4478 = vmatpush1.msra.mxu0 0.0
        %4479 = vmatprep.subr.mxu0 0.0
        %4480 = vmatpush1.msra.mxu0 0.0
        %4481 = vmatprep.subr.mxu0 0.0
        %4482 = vmatpush1.msra.mxu0 0.0
        %4483 = vmatprep.subr.mxu0 0.0
        %4484 = vmatpush1.msra.mxu0 0.0
        %4485 = vmatprep.subr.mxu0 0.0
        %4486 = vmatpush1.msra.mxu0 0.0
        %4487 = vmatprep.subr.mxu0 0.0
        %4488 = vmatpush1.msra.mxu0 0.0
        %4489 = vmatprep.subr.mxu0 0.0
        %4490 = vmatpush1.msra.mxu0 0.0
        %4491 = vmatprep.subr.mxu0 0.0
        %4492 = vmatpush1.msra.mxu0 0.0
        %4493 = vmatprep.mubr.f32.mxu0 0.0
        %4494 = vmatmul.mubr.f32.gmra.mrb[0].mxu0 %v3255
        %v4495 = vpop.f32.mrb[0].mxu0
        %v4496 = vadd.f32 0.0, %v4495
        %v4497 = vpop.f32.mrb[0].mxu0
        %v4498 = vadd.f32 0.0, %v4497
        %4499 = vmatprep.mubr.f32.mxu0 0.0
        %4500 = vmatmul.mubr.f32.gmra.mrb[0].mxu0 %v3258
        %v4501 = vpop.f32.mrb[0].mxu0
        %v4502 = vadd.f32 0.0, %v4501
        %v4503 = vpop.f32.mrb[0].mxu0
        %v4504 = vadd.f32 0.0, %v4503
        %4505 = vmatprep.mubr.f32.mxu0 0.0
        %4506 = vmatmul.mubr.f32.gmra.mrb[0].mxu0 %v3261
        %v4507 = vpop.f32.mrb[0].mxu0
        %v4508 = vadd.f32 0.0, %v4507
        %v4509 = vpop.f32.mrb[0].mxu0
        %v4510 = vadd.f32 0.0, %v4509
        %4511 = vmatprep.mubr.f32.mxu0 0.0
        %4512 = vmatmul.mubr.f32.gmra.mrb[0].mxu0 %v3264
        %v4513 = vpop.f32.mrb[0].mxu0
        %v4514 = vadd.f32 0.0, %v4513
        %v4515 = vpop.f32.mrb[0].mxu0
        %v4516 = vadd.f32 0.0, %v4515
        %4517 = vdwg.mxu0
        %4518 = vmatprep.subr.mxu0 %v3199
        %4519 = vmatpush1.msra.mxu0 %v3198
        %4520 = vmatprep.subr.mxu0 %v3215
        %4521 = vmatpush1.msra.mxu0 %v3214
        %4522 = vmatprep.subr.mxu0 %v4142
        %4523 = vmatpush1.msra.mxu0 %v4139
        %4524 = vmatprep.subr.mxu0 0.0
        %4525 = vmatpush1.msra.mxu0 0.0
        %4526 = vmatprep.subr.mxu0 0.0
        %4527 = vmatpush1.msra.mxu0 0.0
        %4528 = vmatprep.subr.mxu0 0.0
        %4529 = vmatpush1.msra.mxu0 0.0
        %4530 = vmatprep.subr.mxu0 0.0
        %4531 = vmatpush1.msra.mxu0 0.0
        %4532 = vmatprep.subr.mxu0 0.0
        %4533 = vmatpush1.msra.mxu0 0.0
        %4534 = vmatprep.subr.mxu0 0.0
        %4535 = vmatpush1.msra.mxu0 0.0
        %4536 = vmatprep.subr.mxu0 0.0
        %4537 = vmatpush1.msra.mxu0 0.0
        %4538 = vmatprep.subr.mxu0 0.0
        %4539 = vmatpush1.msra.mxu0 0.0
        %4540 = vmatprep.subr.mxu0 0.0
        %4541 = vmatpush1.msra.mxu0 0.0
        %4542 = vmatprep.subr.mxu0 0.0
        %4543 = vmatpush1.msra.mxu0 0.0
        %4544 = vmatprep.subr.mxu0 0.0
        %4545 = vmatpush1.msra.mxu0 0.0
        %4546 = vmatprep.subr.mxu0 0.0
        %4547 = vmatpush1.msra.mxu0 0.0
        %4548 = vmatprep.subr.mxu0 0.0
        %4549 = vmatpush1.msra.mxu0 0.0
        %4550 = vmatprep.subr.mxu0 0.0
        %4551 = vmatpush1.msra.mxu0 0.0
        %4552 = vmatprep.subr.mxu0 0.0
        %4553 = vmatpush1.msra.mxu0 0.0
        %4554 = vmatprep.subr.mxu0 0.0
        %4555 = vmatpush1.msra.mxu0 0.0
        %4556 = vmatprep.subr.mxu0 0.0
        %4557 = vmatpush1.msra.mxu0 0.0
        %4558 = vmatprep.subr.mxu0 0.0
        %4559 = vmatpush1.msra.mxu0 0.0
        %4560 = vmatprep.subr.mxu0 0.0
        %4561 = vmatpush1.msra.mxu0 0.0
        %4562 = vmatprep.subr.mxu0 0.0
        %4563 = vmatpush1.msra.mxu0 0.0
        %4564 = vmatprep.subr.mxu0 0.0
        %4565 = vmatpush1.msra.mxu0 0.0
        %4566 = vmatprep.subr.mxu0 0.0
        %4567 = vmatpush1.msra.mxu0 0.0
        %4568 = vmatprep.subr.mxu0 0.0
        %4569 = vmatpush1.msra.mxu0 0.0
        %4570 = vmatprep.subr.mxu0 0.0
        %4571 = vmatpush1.msra.mxu0 0.0
        %4572 = vmatprep.subr.mxu0 0.0
        %4573 = vmatpush1.msra.mxu0 0.0
        %4574 = vmatprep.subr.mxu0 0.0
        %4575 = vmatpush1.msra.mxu0 0.0
        %4576 = vmatprep.subr.mxu0 0.0
        %4577 = vmatpush1.msra.mxu0 0.0
        %4578 = vmatprep.subr.mxu0 0.0
        %4579 = vmatpush1.msra.mxu0 0.0
        %4580 = vmatprep.subr.mxu0 0.0
        %4581 = vmatpush1.msra.mxu0 0.0
        %4582 = vmatprep.mubr.f32.mxu0 0.0
        %4583 = vmatmul.mubr.f32.gmra.mrb[0].mxu0 %v3255
        %v4584 = vpop.f32.mrb[0].mxu0
        %v4585 = vadd.f32 0.0, %v4584
        %v4586 = vpop.f32.mrb[0].mxu0
        %v4587 = vadd.f32 0.0, %v4586
        %4588 = vmatprep.mubr.f32.mxu0 0.0
        %4589 = vmatmul.mubr.f32.gmra.mrb[0].mxu0 %v3258
        %v4590 = vpop.f32.mrb[0].mxu0
        %v4591 = vadd.f32 0.0, %v4590
        %v4592 = vpop.f32.mrb[0].mxu0
        %v4593 = vadd.f32 0.0, %v4592
        %4594 = vmatprep.mubr.f32.mxu0 0.0
        %4595 = vmatmul.mubr.f32.gmra.mrb[0].mxu0 %v3261
        %v4596 = vpop.f32.mrb[0].mxu0
        %v4597 = vadd.f32 0.0, %v4596
        %v4598 = vpop.f32.mrb[0].mxu0
        %v4599 = vadd.f32 0.0, %v4598
        %4600 = vmatprep.mubr.f32.mxu0 0.0
        %4601 = vmatmul.mubr.f32.gmra.mrb[0].mxu0 %v3264
        %v4602 = vpop.f32.mrb[0].mxu0
        %v4603 = vadd.f32 0.0, %v4602
        %v4604 = vpop.f32.mrb[0].mxu0
        %v4605 = vadd.f32 0.0, %v4604
        %4606 = vdwg.mxu0
        %4607 = vmatprep.subr.mxu0 %v3201
        %4608 = vmatpush1.msra.mxu0 %v3200
        %4609 = vmatprep.subr.mxu0 %v3217
        %4610 = vmatpush1.msra.mxu0 %v3216
        %4611 = vmatprep.subr.mxu0 %v4148
        %4612 = vmatpush1.msra.mxu0 %v4145
        %4613 = vmatprep.subr.mxu0 0.0
        %4614 = vmatpush1.msra.mxu0 0.0
        %4615 = vmatprep.subr.mxu0 0.0
        %4616 = vmatpush1.msra.mxu0 0.0
        %4617 = vmatprep.subr.mxu0 0.0
        %4618 = vmatpush1.msra.mxu0 0.0
        %4619 = vmatprep.subr.mxu0 0.0
        %4620 = vmatpush1.msra.mxu0 0.0
        %4621 = vmatprep.subr.mxu0 0.0
        %4622 = vmatpush1.msra.mxu0 0.0
        %4623 = vmatprep.subr.mxu0 0.0
        %4624 = vmatpush1.msra.mxu0 0.0
        %4625 = vmatprep.subr.mxu0 0.0
        %4626 = vmatpush1.msra.mxu0 0.0
        %4627 = vmatprep.subr.mxu0 0.0
        %4628 = vmatpush1.msra.mxu0 0.0
        %4629 = vmatprep.subr.mxu0 0.0
        %4630 = vmatpush1.msra.mxu0 0.0
        %4631 = vmatprep.subr.mxu0 0.0
        %4632 = vmatpush1.msra.mxu0 0.0
        %4633 = vmatprep.subr.mxu0 0.0
        %4634 = vmatpush1.msra.mxu0 0.0
        %4635 = vmatprep.subr.mxu0 0.0
        %4636 = vmatpush1.msra.mxu0 0.0
        %4637 = vmatprep.subr.mxu0 0.0
        %4638 = vmatpush1.msra.mxu0 0.0
        %4639 = vmatprep.subr.mxu0 0.0
        %4640 = vmatpush1.msra.mxu0 0.0
        %4641 = vmatprep.subr.mxu0 0.0
        %4642 = vmatpush1.msra.mxu0 0.0
        %4643 = vmatprep.subr.mxu0 0.0
        %4644 = vmatpush1.msra.mxu0 0.0
        %4645 = vmatprep.subr.mxu0 0.0
        %4646 = vmatpush1.msra.mxu0 0.0
        %4647 = vmatprep.subr.mxu0 0.0
        %4648 = vmatpush1.msra.mxu0 0.0
        %4649 = vmatprep.subr.mxu0 0.0
        %4650 = vmatpush1.msra.mxu0 0.0
        %4651 = vmatprep.subr.mxu0 0.0
        %4652 = vmatpush1.msra.mxu0 0.0
        %4653 = vmatprep.subr.mxu0 0.0
        %4654 = vmatpush1.msra.mxu0 0.0
        %4655 = vmatprep.subr.mxu0 0.0
        %4656 = vmatpush1.msra.mxu0 0.0
        %4657 = vmatprep.subr.mxu0 0.0
        %4658 = vmatpush1.msra.mxu0 0.0
        %4659 = vmatprep.subr.mxu0 0.0
        %4660 = vmatpush1.msra.mxu0 0.0
        %4661 = vmatprep.subr.mxu0 0.0
        %4662 = vmatpush1.msra.mxu0 0.0
        %4663 = vmatprep.subr.mxu0 0.0
        %4664 = vmatpush1.msra.mxu0 0.0
        %4665 = vmatprep.subr.mxu0 0.0
        %4666 = vmatpush1.msra.mxu0 0.0
        %4667 = vmatprep.subr.mxu0 0.0
        %4668 = vmatpush1.msra.mxu0 0.0
        %4669 = vmatprep.subr.mxu0 0.0
        %4670 = vmatpush1.msra.mxu0 0.0
        %4671 = vmatprep.mubr.f32.mxu0 0.0
        %4672 = vmatmul.mubr.f32.gmra.mrb[0].mxu0 %v3255
        %v4673 = vpop.f32.mrb[0].mxu0
        %v4674 = vadd.f32 0.0, %v4673
        %v4675 = vpop.f32.mrb[0].mxu0
        %v4676 = vadd.f32 0.0, %v4675
        %4677 = vmatprep.mubr.f32.mxu0 0.0
        %4678 = vmatmul.mubr.f32.gmra.mrb[0].mxu0 %v3258
        %v4679 = vpop.f32.mrb[0].mxu0
        %v4680 = vadd.f32 0.0, %v4679
        %v4681 = vpop.f32.mrb[0].mxu0
        %v4682 = vadd.f32 0.0, %v4681
        %4683 = vmatprep.mubr.f32.mxu0 0.0
        %4684 = vmatmul.mubr.f32.gmra.mrb[0].mxu0 %v3261
        %v4685 = vpop.f32.mrb[0].mxu0
        %v4686 = vadd.f32 0.0, %v4685
        %v4687 = vpop.f32.mrb[0].mxu0
        %v4688 = vadd.f32 0.0, %v4687
        %4689 = vmatprep.mubr.f32.mxu0 0.0
        %4690 = vmatmul.mubr.f32.gmra.mrb[0].mxu0 %v3264
        %v4691 = vpop.f32.mrb[0].mxu0
        %v4692 = vadd.f32 0.0, %v4691
        %v4693 = vpop.f32.mrb[0].mxu0
        %v4694 = vadd.f32 0.0, %v4693
        %4695 = vdwg.mxu0
        %4696 = vmatprep.subr.mxu0 %v3203
        %4697 = vmatpush1.msra.mxu0 %v3202
        %4698 = vmatprep.subr.mxu0 %v3219
        %4699 = vmatpush1.msra.mxu0 %v3218
        %4700 = vmatprep.subr.mxu0 %v4154
        %4701 = vmatpush1.msra.mxu0 %v4151
        %4702 = vmatprep.subr.mxu0 0.0
        %4703 = vmatpush1.msra.mxu0 0.0
        %4704 = vmatprep.subr.mxu0 0.0
        %4705 = vmatpush1.msra.mxu0 0.0
        %4706 = vmatprep.subr.mxu0 0.0
        %4707 = vmatpush1.msra.mxu0 0.0
        %4708 = vmatprep.subr.mxu0 0.0
        %4709 = vmatpush1.msra.mxu0 0.0
        %4710 = vmatprep.subr.mxu0 0.0
        %4711 = vmatpush1.msra.mxu0 0.0
        %4712 = vmatprep.subr.mxu0 0.0
        %4713 = vmatpush1.msra.mxu0 0.0
        %4714 = vmatprep.subr.mxu0 0.0
        %4715 = vmatpush1.msra.mxu0 0.0
        %4716 = vmatprep.subr.mxu0 0.0
        %4717 = vmatpush1.msra.mxu0 0.0
        %4718 = vmatprep.subr.mxu0 0.0
        %4719 = vmatpush1.msra.mxu0 0.0
        %4720 = vmatprep.subr.mxu0 0.0
        %4721 = vmatpush1.msra.mxu0 0.0
        %4722 = vmatprep.subr.mxu0 0.0
        %4723 = vmatpush1.msra.mxu0 0.0
        %4724 = vmatprep.subr.mxu0 0.0
        %4725 = vmatpush1.msra.mxu0 0.0
        %4726 = vmatprep.subr.mxu0 0.0
        %4727 = vmatpush1.msra.mxu0 0.0
        %4728 = vmatprep.subr.mxu0 0.0
        %4729 = vmatpush1.msra.mxu0 0.0
        %4730 = vmatprep.subr.mxu0 0.0
        %4731 = vmatpush1.msra.mxu0 0.0
        %4732 = vmatprep.subr.mxu0 0.0
        %4733 = vmatpush1.msra.mxu0 0.0
        %4734 = vmatprep.subr.mxu0 0.0
        %4735 = vmatpush1.msra.mxu0 0.0
        %4736 = vmatprep.subr.mxu0 0.0
        %4737 = vmatpush1.msra.mxu0 0.0
        %4738 = vmatprep.subr.mxu0 0.0
        %4739 = vmatpush1.msra.mxu0 0.0
        %4740 = vmatprep.subr.mxu0 0.0
        %4741 = vmatpush1.msra.mxu0 0.0
        %4742 = vmatprep.subr.mxu0 0.0
        %4743 = vmatpush1.msra.mxu0 0.0
        %4744 = vmatprep.subr.mxu0 0.0
        %4745 = vmatpush1.msra.mxu0 0.0
        %4746 = vmatprep.subr.mxu0 0.0
        %4747 = vmatpush1.msra.mxu0 0.0
        %4748 = vmatprep.subr.mxu0 0.0
        %4749 = vmatpush1.msra.mxu0 0.0
        %4750 = vmatprep.subr.mxu0 0.0
        %4751 = vmatpush1.msra.mxu0 0.0
        %4752 = vmatprep.subr.mxu0 0.0
        %4753 = vmatpush1.msra.mxu0 0.0
        %4754 = vmatprep.subr.mxu0 0.0
        %4755 = vmatpush1.msra.mxu0 0.0
        %4756 = vmatprep.subr.mxu0 0.0
        %4757 = vmatpush1.msra.mxu0 0.0
        %4758 = vmatprep.subr.mxu0 0.0
        %4759 = vmatpush1.msra.mxu0 0.0
        %4760 = vmatprep.mubr.f32.mxu0 0.0
        %4761 = vmatmul.mubr.f32.gmra.mrb[0].mxu0 %v3255
        %v4762 = vpop.f32.mrb[0].mxu0
        %v4763 = vadd.f32 0.0, %v4762
        %v4764 = vpop.f32.mrb[0].mxu0
        %v4765 = vadd.f32 0.0, %v4764
        %4766 = vmatprep.mubr.f32.mxu0 0.0
        %4767 = vmatmul.mubr.f32.gmra.mrb[0].mxu0 %v3258
        %v4768 = vpop.f32.mrb[0].mxu0
        %v4769 = vadd.f32 0.0, %v4768
        %v4770 = vpop.f32.mrb[0].mxu0
        %v4771 = vadd.f32 0.0, %v4770
        %4772 = vmatprep.mubr.f32.mxu0 0.0
        %4773 = vmatmul.mubr.f32.gmra.mrb[0].mxu0 %v3261
        %v4774 = vpop.f32.mrb[0].mxu0
        %v4775 = vadd.f32 0.0, %v4774
        %v4776 = vpop.f32.mrb[0].mxu0
        %v4777 = vadd.f32 0.0, %v4776
        %4778 = vmatprep.mubr.f32.mxu0 0.0
        %4779 = vmatmul.mubr.f32.gmra.mrb[0].mxu0 %v3264
        %v4780 = vpop.f32.mrb[0].mxu0
        %v4781 = vadd.f32 0.0, %v4780
        %v4782 = vpop.f32.mrb[0].mxu0
        %v4783 = vadd.f32 0.0, %v4782
        %4784 = vdwg.mxu0
        %4785 = vmatprep.subr.mxu0 %v3205
        %4786 = vmatpush1.msra.mxu0 %v3204
        %4787 = vmatprep.subr.mxu0 %v3221
        %4788 = vmatpush1.msra.mxu0 %v3220
        %4789 = vmatprep.subr.mxu0 %v4160
        %4790 = vmatpush1.msra.mxu0 %v4157
        %4791 = vmatprep.subr.mxu0 0.0
        %4792 = vmatpush1.msra.mxu0 0.0
        %4793 = vmatprep.subr.mxu0 0.0
        %4794 = vmatpush1.msra.mxu0 0.0
        %4795 = vmatprep.subr.mxu0 0.0
        %4796 = vmatpush1.msra.mxu0 0.0
        %4797 = vmatprep.subr.mxu0 0.0
        %4798 = vmatpush1.msra.mxu0 0.0
        %4799 = vmatprep.subr.mxu0 0.0
        %4800 = vmatpush1.msra.mxu0 0.0
        %4801 = vmatprep.subr.mxu0 0.0
        %4802 = vmatpush1.msra.mxu0 0.0
        %4803 = vmatprep.subr.mxu0 0.0
        %4804 = vmatpush1.msra.mxu0 0.0
        %4805 = vmatprep.subr.mxu0 0.0
        %4806 = vmatpush1.msra.mxu0 0.0
        %4807 = vmatprep.subr.mxu0 0.0
        %4808 = vmatpush1.msra.mxu0 0.0
        %4809 = vmatprep.subr.mxu0 0.0
        %4810 = vmatpush1.msra.mxu0 0.0
        %4811 = vmatprep.subr.mxu0 0.0
        %4812 = vmatpush1.msra.mxu0 0.0
        %4813 = vmatprep.subr.mxu0 0.0
        %4814 = vmatpush1.msra.mxu0 0.0
        %4815 = vmatprep.subr.mxu0 0.0
        %4816 = vmatpush1.msra.mxu0 0.0
        %4817 = vmatprep.subr.mxu0 0.0
        %4818 = vmatpush1.msra.mxu0 0.0
        %4819 = vmatprep.subr.mxu0 0.0
        %4820 = vmatpush1.msra.mxu0 0.0
        %4821 = vmatprep.subr.mxu0 0.0
        %4822 = vmatpush1.msra.mxu0 0.0
        %4823 = vmatprep.subr.mxu0 0.0
        %4824 = vmatpush1.msra.mxu0 0.0
        %4825 = vmatprep.subr.mxu0 0.0
        %4826 = vmatpush1.msra.mxu0 0.0
        %4827 = vmatprep.subr.mxu0 0.0
        %4828 = vmatpush1.msra.mxu0 0.0
        %4829 = vmatprep.subr.mxu0 0.0
        %4830 = vmatpush1.msra.mxu0 0.0
        %4831 = vmatprep.subr.mxu0 0.0
        %4832 = vmatpush1.msra.mxu0 0.0
        %4833 = vmatprep.subr.mxu0 0.0
        %4834 = vmatpush1.msra.mxu0 0.0
        %4835 = vmatprep.subr.mxu0 0.0
        %4836 = vmatpush1.msra.mxu0 0.0
        %4837 = vmatprep.subr.mxu0 0.0
        %4838 = vmatpush1.msra.mxu0 0.0
        %4839 = vmatprep.subr.mxu0 0.0
        %4840 = vmatpush1.msra.mxu0 0.0
        %4841 = vmatprep.subr.mxu0 0.0
        %4842 = vmatpush1.msra.mxu0 0.0
        %4843 = vmatprep.subr.mxu0 0.0
        %4844 = vmatpush1.msra.mxu0 0.0
        %4845 = vmatprep.subr.mxu0 0.0
        %4846 = vmatpush1.msra.mxu0 0.0
        %4847 = vmatprep.subr.mxu0 0.0
        %4848 = vmatpush1.msra.mxu0 0.0
        %4849 = vmatprep.mubr.f32.mxu0 0.0
        %4850 = vmatmul.mubr.f32.gmra.mrb[0].mxu0 %v3255
        %v4851 = vpop.f32.mrb[0].mxu0
        %v4852 = vadd.f32 0.0, %v4851
        %v4853 = vpop.f32.mrb[0].mxu0
        %v4854 = vadd.f32 0.0, %v4853
        %4855 = vmatprep.mubr.f32.mxu0 0.0
        %4856 = vmatmul.mubr.f32.gmra.mrb[0].mxu0 %v3258
        %v4857 = vpop.f32.mrb[0].mxu0
        %v4858 = vadd.f32 0.0, %v4857
        %v4859 = vpop.f32.mrb[0].mxu0
        %v4860 = vadd.f32 0.0, %v4859
        %4861 = vmatprep.mubr.f32.mxu0 0.0
        %4862 = vmatmul.mubr.f32.gmra.mrb[0].mxu0 %v3261
        %v4863 = vpop.f32.mrb[0].mxu0
        %v4864 = vadd.f32 0.0, %v4863
        %v4865 = vpop.f32.mrb[0].mxu0
        %v4866 = vadd.f32 0.0, %v4865
        %4867 = vmatprep.mubr.f32.mxu0 0.0
        %4868 = vmatmul.mubr.f32.gmra.mrb[0].mxu0 %v3264
        %v4869 = vpop.f32.mrb[0].mxu0
        %v4870 = vadd.f32 0.0, %v4869
        %v4871 = vpop.f32.mrb[0].mxu0
        %v4872 = vadd.f32 0.0, %v4871
        %4873 = vdwg.mxu0
        %v4874 = vmul.f32 %v3336, %v3469
        %v4875 = vmul.f32 %v3341, %v3475
        %v4876 = vmul.f32 %v3346, %v3481
        %v4877 = vmul.f32 %v3351, %v3487
        %v4878 = vmul.f32 %v3336, %v3471
        %v4879 = vmul.f32 %v3341, %v3477
        %v4880 = vmul.f32 %v3346, %v3483
        %v4881 = vmul.f32 %v3351, %v3489
        %v4882 = vmul.f32 %v3336, %v3558
        %v4883 = vmul.f32 %v3341, %v3564
        %v4884 = vmul.f32 %v3346, %v3570
        %v4885 = vmul.f32 %v3351, %v3576
        %v4886 = vmul.f32 %v3336, %v3560
        %v4887 = vmul.f32 %v3341, %v3566
        %v4888 = vmul.f32 %v3346, %v3572
        %v4889 = vmul.f32 %v3351, %v3578
        %v4890 = vmul.f32 %v3336, %v3647
        %v4891 = vmul.f32 %v3341, %v3653
        %v4892 = vmul.f32 %v3346, %v3659
        %v4893 = vmul.f32 %v3351, %v3665
        %v4894 = vmul.f32 %v3336, %v3649
        %v4895 = vmul.f32 %v3341, %v3655
        %v4896 = vmul.f32 %v3346, %v3661
        %v4897 = vmul.f32 %v3351, %v3667
        %v4898 = vmul.f32 %v3336, %v3736
        %v4899 = vmul.f32 %v3341, %v3742
        %v4900 = vmul.f32 %v3346, %v3748
        %v4901 = vmul.f32 %v3351, %v3754
        %v4902 = vmul.f32 %v3336, %v3738
        %v4903 = vmul.f32 %v3341, %v3744
        %v4904 = vmul.f32 %v3346, %v3750
        %v4905 = vmul.f32 %v3351, %v3756
        %v4906 = vmul.f32 %v3336, %v3825
        %v4907 = vmul.f32 %v3341, %v3831
        %v4908 = vmul.f32 %v3346, %v3837
        %v4909 = vmul.f32 %v3351, %v3843
        %v4910 = vmul.f32 %v3336, %v3827
        %v4911 = vmul.f32 %v3341, %v3833
        %v4912 = vmul.f32 %v3346, %v3839
        %v4913 = vmul.f32 %v3351, %v3845
        %v4914 = vmul.f32 %v3336, %v3914
        %v4915 = vmul.f32 %v3341, %v3920
        %v4916 = vmul.f32 %v3346, %v3926
        %v4917 = vmul.f32 %v3351, %v3932
        %v4918 = vmul.f32 %v3336, %v3916
        %v4919 = vmul.f32 %v3341, %v3922
        %v4920 = vmul.f32 %v3346, %v3928
        %v4921 = vmul.f32 %v3351, %v3934
        %v4922 = vmul.f32 %v3336, %v4003
        %v4923 = vmul.f32 %v3341, %v4009
        %v4924 = vmul.f32 %v3346, %v4015
        %v4925 = vmul.f32 %v3351, %v4021
        %v4926 = vmul.f32 %v3336, %v4005
        %v4927 = vmul.f32 %v3341, %v4011
        %v4928 = vmul.f32 %v3346, %v4017
        %v4929 = vmul.f32 %v3351, %v4023
        %v4930 = vmul.f32 %v3336, %v4092
        %v4931 = vmul.f32 %v3341, %v4098
        %v4932 = vmul.f32 %v3346, %v4104
        %v4933 = vmul.f32 %v3351, %v4110
        %v4934 = vmul.f32 %v3336, %v4094
        %v4935 = vmul.f32 %v3341, %v4100
        %v4936 = vmul.f32 %v3346, %v4106
        %v4937 = vmul.f32 %v3351, %v4112
        %v4938 = vmax.f32 %v4874, %v4878
        %v4939 = vmax.f32 %v4875, %v4879
        %v4940 = vmax.f32 %v4876, %v4880
        %v4941 = vmax.f32 %v4877, %v4881
        %v4942 = vmax.f32 %v4938, %v4882
        %v4943 = vmax.f32 %v4939, %v4883
        %v4944 = vmax.f32 %v4940, %v4884
        %v4945 = vmax.f32 %v4941, %v4885
        %v4946 = vmax.f32 %v4942, %v4886
        %v4947 = vmax.f32 %v4943, %v4887
        %v4948 = vmax.f32 %v4944, %v4888
        %v4949 = vmax.f32 %v4945, %v4889
        %v4950 = vmax.f32 %v4946, %v4890
        %v4951 = vmax.f32 %v4947, %v4891
        %v4952 = vmax.f32 %v4948, %v4892
        %v4953 = vmax.f32 %v4949, %v4893
        %v4954 = vmax.f32 %v4950, %v4894
        %v4955 = vmax.f32 %v4951, %v4895
        %v4956 = vmax.f32 %v4952, %v4896
        %v4957 = vmax.f32 %v4953, %v4897
        %v4958 = vmax.f32 %v4954, %v4898
        %v4959 = vmax.f32 %v4955, %v4899
        %v4960 = vmax.f32 %v4956, %v4900
        %v4961 = vmax.f32 %v4957, %v4901
        %v4962 = vmax.f32 %v4958, %v4902
        %v4963 = vmax.f32 %v4959, %v4903
        %v4964 = vmax.f32 %v4960, %v4904
        %v4965 = vmax.f32 %v4961, %v4905
        %v4966 = vmax.f32 %v4962, %v4906
        %v4967 = vmax.f32 %v4963, %v4907
        %v4968 = vmax.f32 %v4964, %v4908
        %v4969 = vmax.f32 %v4965, %v4909
        %v4970 = vmax.f32 %v4966, %v4910
        %v4971 = vmax.f32 %v4967, %v4911
        %v4972 = vmax.f32 %v4968, %v4912
        %v4973 = vmax.f32 %v4969, %v4913
        %v4974 = vmax.f32 %v4970, %v4914
        %v4975 = vmax.f32 %v4971, %v4915
        %v4976 = vmax.f32 %v4972, %v4916
        %v4977 = vmax.f32 %v4973, %v4917
        %v4978 = vmax.f32 %v4974, %v4918
        %v4979 = vmax.f32 %v4975, %v4919
        %v4980 = vmax.f32 %v4976, %v4920
        %v4981 = vmax.f32 %v4977, %v4921
        %v4982 = vmax.f32 %v4978, %v4922
        %v4983 = vmax.f32 %v4979, %v4923
        %v4984 = vmax.f32 %v4980, %v4924
        %v4985 = vmax.f32 %v4981, %v4925
        %v4986 = vmax.f32 %v4982, %v4926
        %v4987 = vmax.f32 %v4983, %v4927
        %v4988 = vmax.f32 %v4984, %v4928
        %v4989 = vmax.f32 %v4985, %v4929
        %v4990 = vmax.f32 %v4986, %v4930
        %v4991 = vmax.f32 %v4987, %v4931
        %v4992 = vmax.f32 %v4988, %v4932
        %v4993 = vmax.f32 %v4989, %v4933
        %v4994 = vmax.f32 %v4990, %v4934
        %v4995 = vmax.f32 %v4991, %v4935
        %v4996 = vmax.f32 %v4992, %v4936
        %v4997 = vmax.f32 %v4993, %v4937
        %v4998 = vsub.f32 %v4874, %v4994
        %v4999 = vsub.f32 %v4875, %v4995
        %v5000 = vsub.f32 %v4876, %v4996
        %v5001 = vsub.f32 %v4877, %v4997
        %v5002 = vmul.f32 %v4998, 1.442695
        %v5003 = vpow.pop %v5002
        %v5004 = vmul.f32 %v4999, 1.442695
        %v5005 = vpow.pop %v5004
        %v5006 = vmul.f32 %v5000, 1.442695
        %v5007 = vpow.pop %v5006
        %v5008 = vmul.f32 %v5001, 1.442695
        %v5009 = vpow.pop %v5008
        %v5010 = vadd.f32 %v5003, 0.0
        %v5011 = vadd.f32 %v5005, 0.0
        %v5012 = vadd.f32 %v5007, 0.0
        %v5013 = vadd.f32 %v5009, 0.0
        %v5014 = vmul.f32 %v5003, %v4229
        %v5015 = vmul.f32 %v5005, %v4235
        %v5016 = vmul.f32 %v5007, %v4241
        %v5017 = vmul.f32 %v5009, %v4247
        %v5018 = vadd.f32 %v5014, 0.0
        %v5019 = vadd.f32 %v5015, 0.0
        %v5020 = vadd.f32 %v5016, 0.0
        %v5021 = vadd.f32 %v5017, 0.0
        %v5022 = vsub.f32 %v4878, %v4994
        %v5023 = vsub.f32 %v4879, %v4995
        %v5024 = vsub.f32 %v4880, %v4996
        %v5025 = vsub.f32 %v4881, %v4997
        %v5026 = vmul.f32 %v5022, 1.442695
        %v5027 = vpow.pop %v5026
        %v5028 = vmul.f32 %v5023, 1.442695
        %v5029 = vpow.pop %v5028
        %v5030 = vmul.f32 %v5024, 1.442695
        %v5031 = vpow.pop %v5030
        %v5032 = vmul.f32 %v5025, 1.442695
        %v5033 = vpow.pop %v5032
        %v5034 = vadd.f32 %v5010, %v5027
        %v5035 = vadd.f32 %v5011, %v5029
        %v5036 = vadd.f32 %v5012, %v5031
        %v5037 = vadd.f32 %v5013, %v5033
        %v5038 = vmul.f32 %v5027, %v4231
        %v5039 = vmul.f32 %v5029, %v4237
        %v5040 = vmul.f32 %v5031, %v4243
        %v5041 = vmul.f32 %v5033, %v4249
        %v5042 = vadd.f32 %v5018, %v5038
        %v5043 = vadd.f32 %v5019, %v5039
        %v5044 = vadd.f32 %v5020, %v5040
        %v5045 = vadd.f32 %v5021, %v5041
        %v5046 = vsub.f32 %v4882, %v4994
        %v5047 = vsub.f32 %v4883, %v4995
        %v5048 = vsub.f32 %v4884, %v4996
        %v5049 = vsub.f32 %v4885, %v4997
        %v5050 = vmul.f32 %v5046, 1.442695
        %v5051 = vpow.pop %v5050
        %v5052 = vmul.f32 %v5047, 1.442695
        %v5053 = vpow.pop %v5052
        %v5054 = vmul.f32 %v5048, 1.442695
        %v5055 = vpow.pop %v5054
        %v5056 = vmul.f32 %v5049, 1.442695
        %v5057 = vpow.pop %v5056
        %v5058 = vadd.f32 %v5034, %v5051
        %v5059 = vadd.f32 %v5035, %v5053
        %v5060 = vadd.f32 %v5036, %v5055
        %v5061 = vadd.f32 %v5037, %v5057
        %v5062 = vmul.f32 %v5051, %v4318
        %v5063 = vmul.f32 %v5053, %v4324
        %v5064 = vmul.f32 %v5055, %v4330
        %v5065 = vmul.f32 %v5057, %v4336
        %v5066 = vadd.f32 %v5042, %v5062
        %v5067 = vadd.f32 %v5043, %v5063
        %v5068 = vadd.f32 %v5044, %v5064
        %v5069 = vadd.f32 %v5045, %v5065
        %v5070 = vsub.f32 %v4886, %v4994
        %v5071 = vsub.f32 %v4887, %v4995
        %v5072 = vsub.f32 %v4888, %v4996
        %v5073 = vsub.f32 %v4889, %v4997
        %v5074 = vmul.f32 %v5070, 1.442695
        %v5075 = vpow.pop %v5074
        %v5076 = vmul.f32 %v5071, 1.442695
        %v5077 = vpow.pop %v5076
        %v5078 = vmul.f32 %v5072, 1.442695
        %v5079 = vpow.pop %v5078
        %v5080 = vmul.f32 %v5073, 1.442695
        %v5081 = vpow.pop %v5080
        %v5082 = vadd.f32 %v5058, %v5075
        %v5083 = vadd.f32 %v5059, %v5077
        %v5084 = vadd.f32 %v5060, %v5079
        %v5085 = vadd.f32 %v5061, %v5081
        %v5086 = vmul.f32 %v5075, %v4320
        %v5087 = vmul.f32 %v5077, %v4326
        %v5088 = vmul.f32 %v5079, %v4332
        %v5089 = vmul.f32 %v5081, %v4338
        %v5090 = vadd.f32 %v5066, %v5086
        %v5091 = vadd.f32 %v5067, %v5087
        %v5092 = vadd.f32 %v5068, %v5088
        %v5093 = vadd.f32 %v5069, %v5089
        %v5094 = vsub.f32 %v4890, %v4994
        %v5095 = vsub.f32 %v4891, %v4995
        %v5096 = vsub.f32 %v4892, %v4996
        %v5097 = vsub.f32 %v4893, %v4997
        %v5098 = vmul.f32 %v5094, 1.442695
        %v5099 = vpow.pop %v5098
        %v5100 = vmul.f32 %v5095, 1.442695
        %v5101 = vpow.pop %v5100
        %v5102 = vmul.f32 %v5096, 1.442695
        %v5103 = vpow.pop %v5102
        %v5104 = vmul.f32 %v5097, 1.442695
        %v5105 = vpow.pop %v5104
        %v5106 = vadd.f32 %v5082, %v5099
        %v5107 = vadd.f32 %v5083, %v5101
        %v5108 = vadd.f32 %v5084, %v5103
        %v5109 = vadd.f32 %v5085, %v5105
        %v5110 = vmul.f32 %v5099, %v4407
        %v5111 = vmul.f32 %v5101, %v4413
        %v5112 = vmul.f32 %v5103, %v4419
        %v5113 = vmul.f32 %v5105, %v4425
        %v5114 = vadd.f32 %v5090, %v5110
        %v5115 = vadd.f32 %v5091, %v5111
        %v5116 = vadd.f32 %v5092, %v5112
        %v5117 = vadd.f32 %v5093, %v5113
        %v5118 = vsub.f32 %v4894, %v4994
        %v5119 = vsub.f32 %v4895, %v4995
        %v5120 = vsub.f32 %v4896, %v4996
        %v5121 = vsub.f32 %v4897, %v4997
        %v5122 = vmul.f32 %v5118, 1.442695
        %v5123 = vpow.pop %v5122
        %v5124 = vmul.f32 %v5119, 1.442695
        %v5125 = vpow.pop %v5124
        %v5126 = vmul.f32 %v5120, 1.442695
        %v5127 = vpow.pop %v5126
        %v5128 = vmul.f32 %v5121, 1.442695
        %v5129 = vpow.pop %v5128
        %v5130 = vadd.f32 %v5106, %v5123
        %v5131 = vadd.f32 %v5107, %v5125
        %v5132 = vadd.f32 %v5108, %v5127
        %v5133 = vadd.f32 %v5109, %v5129
        %v5134 = vmul.f32 %v5123, %v4409
        %v5135 = vmul.f32 %v5125, %v4415
        %v5136 = vmul.f32 %v5127, %v4421
        %v5137 = vmul.f32 %v5129, %v4427
        %v5138 = vadd.f32 %v5114, %v5134
        %v5139 = vadd.f32 %v5115, %v5135
        %v5140 = vadd.f32 %v5116, %v5136
        %v5141 = vadd.f32 %v5117, %v5137
        %v5142 = vsub.f32 %v4898, %v4994
        %v5143 = vsub.f32 %v4899, %v4995
        %v5144 = vsub.f32 %v4900, %v4996
        %v5145 = vsub.f32 %v4901, %v4997
        %v5146 = vmul.f32 %v5142, 1.442695
        %v5147 = vpow.pop %v5146
        %v5148 = vmul.f32 %v5143, 1.442695
        %v5149 = vpow.pop %v5148
        %v5150 = vmul.f32 %v5144, 1.442695
        %v5151 = vpow.pop %v5150
        %v5152 = vmul.f32 %v5145, 1.442695
        %v5153 = vpow.pop %v5152
        %v5154 = vadd.f32 %v5130, %v5147
        %v5155 = vadd.f32 %v5131, %v5149
        %v5156 = vadd.f32 %v5132, %v5151
        %v5157 = vadd.f32 %v5133, %v5153
        %v5158 = vmul.f32 %v5147, %v4496
        %v5159 = vmul.f32 %v5149, %v4502
        %v5160 = vmul.f32 %v5151, %v4508
        %v5161 = vmul.f32 %v5153, %v4514
        %v5162 = vadd.f32 %v5138, %v5158
        %v5163 = vadd.f32 %v5139, %v5159
        %v5164 = vadd.f32 %v5140, %v5160
        %v5165 = vadd.f32 %v5141, %v5161
        %v5166 = vsub.f32 %v4902, %v4994
        %v5167 = vsub.f32 %v4903, %v4995
        %v5168 = vsub.f32 %v4904, %v4996
        %v5169 = vsub.f32 %v4905, %v4997
        %v5170 = vmul.f32 %v5166, 1.442695
        %v5171 = vpow.pop %v5170
        %v5172 = vmul.f32 %v5167, 1.442695
        %v5173 = vpow.pop %v5172
        %v5174 = vmul.f32 %v5168, 1.442695
        %v5175 = vpow.pop %v5174
        %v5176 = vmul.f32 %v5169, 1.442695
        %v5177 = vpow.pop %v5176
        %v5178 = vadd.f32 %v5154, %v5171
        %v5179 = vadd.f32 %v5155, %v5173
        %v5180 = vadd.f32 %v5156, %v5175
        %v5181 = vadd.f32 %v5157, %v5177
        %v5182 = vmul.f32 %v5171, %v4498
        %v5183 = vmul.f32 %v5173, %v4504
        %v5184 = vmul.f32 %v5175, %v4510
        %v5185 = vmul.f32 %v5177, %v4516
        %v5186 = vadd.f32 %v5162, %v5182
        %v5187 = vadd.f32 %v5163, %v5183
        %v5188 = vadd.f32 %v5164, %v5184
        %v5189 = vadd.f32 %v5165, %v5185
        %v5190 = vsub.f32 %v4906, %v4994
        %v5191 = vsub.f32 %v4907, %v4995
        %v5192 = vsub.f32 %v4908, %v4996
        %v5193 = vsub.f32 %v4909, %v4997
        %v5194 = vmul.f32 %v5190, 1.442695
        %v5195 = vpow.pop %v5194
        %v5196 = vmul.f32 %v5191, 1.442695
        %v5197 = vpow.pop %v5196
        %v5198 = vmul.f32 %v5192, 1.442695
        %v5199 = vpow.pop %v5198
        %v5200 = vmul.f32 %v5193, 1.442695
        %v5201 = vpow.pop %v5200
        %v5202 = vadd.f32 %v5178, %v5195
        %v5203 = vadd.f32 %v5179, %v5197
        %v5204 = vadd.f32 %v5180, %v5199
        %v5205 = vadd.f32 %v5181, %v5201
        %v5206 = vmul.f32 %v5195, %v4585
        %v5207 = vmul.f32 %v5197, %v4591
        %v5208 = vmul.f32 %v5199, %v4597
        %v5209 = vmul.f32 %v5201, %v4603
        %v5210 = vadd.f32 %v5186, %v5206
        %v5211 = vadd.f32 %v5187, %v5207
        %v5212 = vadd.f32 %v5188, %v5208
        %v5213 = vadd.f32 %v5189, %v5209
        %v5214 = vsub.f32 %v4910, %v4994
        %v5215 = vsub.f32 %v4911, %v4995
        %v5216 = vsub.f32 %v4912, %v4996
        %v5217 = vsub.f32 %v4913, %v4997
        %v5218 = vmul.f32 %v5214, 1.442695
        %v5219 = vpow.pop %v5218
        %v5220 = vmul.f32 %v5215, 1.442695
        %v5221 = vpow.pop %v5220
        %v5222 = vmul.f32 %v5216, 1.442695
        %v5223 = vpow.pop %v5222
        %v5224 = vmul.f32 %v5217, 1.442695
        %v5225 = vpow.pop %v5224
        %v5226 = vadd.f32 %v5202, %v5219
        %v5227 = vadd.f32 %v5203, %v5221
        %v5228 = vadd.f32 %v5204, %v5223
        %v5229 = vadd.f32 %v5205, %v5225
        %v5230 = vmul.f32 %v5219, %v4587
        %v5231 = vmul.f32 %v5221, %v4593
        %v5232 = vmul.f32 %v5223, %v4599
        %v5233 = vmul.f32 %v5225, %v4605
        %v5234 = vadd.f32 %v5210, %v5230
        %v5235 = vadd.f32 %v5211, %v5231
        %v5236 = vadd.f32 %v5212, %v5232
        %v5237 = vadd.f32 %v5213, %v5233
        %v5238 = vsub.f32 %v4914, %v4994
        %v5239 = vsub.f32 %v4915, %v4995
        %v5240 = vsub.f32 %v4916, %v4996
        %v5241 = vsub.f32 %v4917, %v4997
        %v5242 = vmul.f32 %v5238, 1.442695
        %v5243 = vpow.pop %v5242
        %v5244 = vmul.f32 %v5239, 1.442695
        %v5245 = vpow.pop %v5244
        %v5246 = vmul.f32 %v5240, 1.442695
        %v5247 = vpow.pop %v5246
        %v5248 = vmul.f32 %v5241, 1.442695
        %v5249 = vpow.pop %v5248
        %v5250 = vadd.f32 %v5226, %v5243
        %v5251 = vadd.f32 %v5227, %v5245
        %v5252 = vadd.f32 %v5228, %v5247
        %v5253 = vadd.f32 %v5229, %v5249
        %v5254 = vmul.f32 %v5243, %v4674
        %v5255 = vmul.f32 %v5245, %v4680
        %v5256 = vmul.f32 %v5247, %v4686
        %v5257 = vmul.f32 %v5249, %v4692
        %v5258 = vadd.f32 %v5234, %v5254
        %v5259 = vadd.f32 %v5235, %v5255
        %v5260 = vadd.f32 %v5236, %v5256
        %v5261 = vadd.f32 %v5237, %v5257
        %v5262 = vsub.f32 %v4918, %v4994
        %v5263 = vsub.f32 %v4919, %v4995
        %v5264 = vsub.f32 %v4920, %v4996
        %v5265 = vsub.f32 %v4921, %v4997
        %v5266 = vmul.f32 %v5262, 1.442695
        %v5267 = vpow.pop %v5266
        %v5268 = vmul.f32 %v5263, 1.442695
        %v5269 = vpow.pop %v5268
        %v5270 = vmul.f32 %v5264, 1.442695
        %v5271 = vpow.pop %v5270
        %v5272 = vmul.f32 %v5265, 1.442695
        %v5273 = vpow.pop %v5272
        %v5274 = vadd.f32 %v5250, %v5267
        %v5275 = vadd.f32 %v5251, %v5269
        %v5276 = vadd.f32 %v5252, %v5271
        %v5277 = vadd.f32 %v5253, %v5273
        %v5278 = vmul.f32 %v5267, %v4676
        %v5279 = vmul.f32 %v5269, %v4682
        %v5280 = vmul.f32 %v5271, %v4688
        %v5281 = vmul.f32 %v5273, %v4694
        %v5282 = vadd.f32 %v5258, %v5278
        %v5283 = vadd.f32 %v5259, %v5279
        %v5284 = vadd.f32 %v5260, %v5280
        %v5285 = vadd.f32 %v5261, %v5281
        %v5286 = vsub.f32 %v4922, %v4994
        %v5287 = vsub.f32 %v4923, %v4995
        %v5288 = vsub.f32 %v4924, %v4996
        %v5289 = vsub.f32 %v4925, %v4997
        %v5290 = vmul.f32 %v5286, 1.442695
        %v5291 = vpow.pop %v5290
        %v5292 = vmul.f32 %v5287, 1.442695
        %v5293 = vpow.pop %v5292
        %v5294 = vmul.f32 %v5288, 1.442695
        %v5295 = vpow.pop %v5294
        %v5296 = vmul.f32 %v5289, 1.442695
        %v5297 = vpow.pop %v5296
        %v5298 = vadd.f32 %v5274, %v5291
        %v5299 = vadd.f32 %v5275, %v5293
        %v5300 = vadd.f32 %v5276, %v5295
        %v5301 = vadd.f32 %v5277, %v5297
        %v5302 = vmul.f32 %v5291, %v4763
        %v5303 = vmul.f32 %v5293, %v4769
        %v5304 = vmul.f32 %v5295, %v4775
        %v5305 = vmul.f32 %v5297, %v4781
        %v5306 = vadd.f32 %v5282, %v5302
        %v5307 = vadd.f32 %v5283, %v5303
        %v5308 = vadd.f32 %v5284, %v5304
        %v5309 = vadd.f32 %v5285, %v5305
        %v5310 = vsub.f32 %v4926, %v4994
        %v5311 = vsub.f32 %v4927, %v4995
        %v5312 = vsub.f32 %v4928, %v4996
        %v5313 = vsub.f32 %v4929, %v4997
        %v5314 = vmul.f32 %v5310, 1.442695
        %v5315 = vpow.pop %v5314
        %v5316 = vmul.f32 %v5311, 1.442695
        %v5317 = vpow.pop %v5316
        %v5318 = vmul.f32 %v5312, 1.442695
        %v5319 = vpow.pop %v5318
        %v5320 = vmul.f32 %v5313, 1.442695
        %v5321 = vpow.pop %v5320
        %v5322 = vadd.f32 %v5298, %v5315
        %v5323 = vadd.f32 %v5299, %v5317
        %v5324 = vadd.f32 %v5300, %v5319
        %v5325 = vadd.f32 %v5301, %v5321
        %v5326 = vmul.f32 %v5315, %v4765
        %v5327 = vmul.f32 %v5317, %v4771
        %v5328 = vmul.f32 %v5319, %v4777
        %v5329 = vmul.f32 %v5321, %v4783
        %v5330 = vadd.f32 %v5306, %v5326
        %v5331 = vadd.f32 %v5307, %v5327
        %v5332 = vadd.f32 %v5308, %v5328
        %v5333 = vadd.f32 %v5309, %v5329
        %v5334 = vsub.f32 %v4930, %v4994
        %v5335 = vsub.f32 %v4931, %v4995
        %v5336 = vsub.f32 %v4932, %v4996
        %v5337 = vsub.f32 %v4933, %v4997
        %v5338 = vmul.f32 %v5334, 1.442695
        %v5339 = vpow.pop %v5338
        %v5340 = vmul.f32 %v5335, 1.442695
        %v5341 = vpow.pop %v5340
        %v5342 = vmul.f32 %v5336, 1.442695
        %v5343 = vpow.pop %v5342
        %v5344 = vmul.f32 %v5337, 1.442695
        %v5345 = vpow.pop %v5344
        %v5346 = vadd.f32 %v5322, %v5339
        %v5347 = vadd.f32 %v5323, %v5341
        %v5348 = vadd.f32 %v5324, %v5343
        %v5349 = vadd.f32 %v5325, %v5345
        %v5350 = vmul.f32 %v5339, %v4852
        %v5351 = vmul.f32 %v5341, %v4858
        %v5352 = vmul.f32 %v5343, %v4864
        %v5353 = vmul.f32 %v5345, %v4870
        %v5354 = vadd.f32 %v5330, %v5350
        %v5355 = vadd.f32 %v5331, %v5351
        %v5356 = vadd.f32 %v5332, %v5352
        %v5357 = vadd.f32 %v5333, %v5353
        %v5358 = vsub.f32 %v4934, %v4994
        %v5359 = vsub.f32 %v4935, %v4995
        %v5360 = vsub.f32 %v4936, %v4996
        %v5361 = vsub.f32 %v4937, %v4997
        %v5362 = vmul.f32 %v5358, 1.442695
        %v5363 = vpow.pop %v5362
        %v5364 = vmul.f32 %v5359, 1.442695
        %v5365 = vpow.pop %v5364
        %v5366 = vmul.f32 %v5360, 1.442695
        %v5367 = vpow.pop %v5366
        %v5368 = vmul.f32 %v5361, 1.442695
        %v5369 = vpow.pop %v5368
        %v5370 = vadd.f32 %v5346, %v5363
        %v5371 = vadd.f32 %v5347, %v5365
        %v5372 = vadd.f32 %v5348, %v5367
        %v5373 = vadd.f32 %v5349, %v5369
        %v5374 = vmul.f32 %v5363, %v4854
        %v5375 = vmul.f32 %v5365, %v4860
        %v5376 = vmul.f32 %v5367, %v4866
        %v5377 = vmul.f32 %v5369, %v4872
        %v5378 = vadd.f32 %v5354, %v5374
        %v5379 = vadd.f32 %v5355, %v5375
        %v5380 = vadd.f32 %v5356, %v5376
        %v5381 = vadd.f32 %v5357, %v5377
        %v5382 = vrcp.pop %v5370
        %v5383 = vrcp.pop %v5371
        %v5384 = vrcp.pop %v5372
        %v5385 = vrcp.pop %v5373
        %v5386 = vmul.f32 %v5378, %v5382
        %v5387 = vmul.f32 %v5379, %v5383
        %v5388 = vmul.f32 %v5380, %v5384
        %v5389 = vmul.f32 %v5381, %v5385
        %v5390 = vlaneseq
        %v5391 = vshrl.u32 %v5390, 7
        %v5392 = vsub.s32 3, %v5391
        %v5393 = vrot.slane %v550, %v5392
        %5394 = vmatprep.subr.mxu0 0.0
        %5395 = vmatpush1.msra.mxu0 %v3238
        %5396 = vmatprep.subr.mxu0 0.0
        %5397 = vmatpush1.msra.mxu0 %v3239
        %5398 = vmatprep.subr.mxu0 0.0
        %5399 = vmatpush1.msra.mxu0 %v3240
        %5400 = vmatprep.subr.mxu0 0.0
        %5401 = vmatpush1.msra.mxu0 %v3241
        %5402 = vmatprep.subr.mxu0 0.0
        %5403 = vmatpush1.msra.mxu0 %v3242
        %5404 = vmatprep.subr.mxu0 0.0
        %5405 = vmatpush1.msra.mxu0 %v3243
        %5406 = vmatprep.subr.mxu0 0.0
        %5407 = vmatpush1.msra.mxu0 %v3244
        %5408 = vmatprep.subr.mxu0 0.0
        %5409 = vmatpush1.msra.mxu0 %v3245
        %5410 = vmatprep.subr.mxu0 0.0
        %5411 = vmatpush1.msra.mxu0 %v3246
        %5412 = vmatprep.subr.mxu0 0.0
        %5413 = vmatpush1.msra.mxu0 %v3247
        %5414 = vmatprep.subr.mxu0 0.0
        %5415 = vmatpush1.msra.mxu0 %v3248
        %5416 = vmatprep.subr.mxu0 0.0
        %5417 = vmatpush1.msra.mxu0 %v3249
        %5418 = vmatprep.subr.mxu0 0.0
        %5419 = vmatpush1.msra.mxu0 %v3250
        %5420 = vmatprep.subr.mxu0 0.0
        %5421 = vmatpush1.msra.mxu0 %v3251
        %5422 = vmatprep.subr.mxu0 0.0
        %5423 = vmatpush1.msra.mxu0 %v3252
        %5424 = vmatprep.subr.mxu0 0.0
        %5425 = vmatpush1.msra.mxu0 %v3253
        %5426 = vmatprep.subr.mxu0 0.0
        %5427 = vmatpush1.msra.mxu0 0.0
        %5428 = vmatprep.subr.mxu0 0.0
        %5429 = vmatpush1.msra.mxu0 0.0
        %5430 = vmatprep.subr.mxu0 0.0
        %5431 = vmatpush1.msra.mxu0 0.0
        %5432 = vmatprep.subr.mxu0 0.0
        %5433 = vmatpush1.msra.mxu0 0.0
        %5434 = vmatprep.subr.mxu0 0.0
        %5435 = vmatpush1.msra.mxu0 0.0
        %5436 = vmatprep.subr.mxu0 0.0
        %5437 = vmatpush1.msra.mxu0 0.0
        %5438 = vmatprep.subr.mxu0 0.0
        %5439 = vmatpush1.msra.mxu0 0.0
        %5440 = vmatprep.subr.mxu0 0.0
        %5441 = vmatpush1.msra.mxu0 0.0
        %5442 = vmatprep.subr.mxu0 0.0
        %5443 = vmatpush1.msra.mxu0 0.0
        %5444 = vmatprep.subr.mxu0 0.0
        %5445 = vmatpush1.msra.mxu0 0.0
        %5446 = vmatprep.subr.mxu0 0.0
        %5447 = vmatpush1.msra.mxu0 0.0
        %5448 = vmatprep.subr.mxu0 0.0
        %5449 = vmatpush1.msra.mxu0 0.0
        %5450 = vmatprep.subr.mxu0 0.0
        %5451 = vmatpush1.msra.mxu0 0.0
        %5452 = vmatprep.subr.mxu0 0.0
        %5453 = vmatpush1.msra.mxu0 0.0
        %5454 = vmatprep.subr.mxu0 0.0
        %5455 = vmatpush1.msra.mxu0 0.0
        %5456 = vmatprep.subr.mxu0 0.0
        %5457 = vmatpush1.msra.mxu0 0.0
        %5458 = vmatprep.mubr.f32.mxu0 0.0
        %5459 = vmatmul.mubr.f32.gmra.mrb[0].mxu0 %v5386
        %v5460 = vpop.f32.mrb[0].mxu0
        %v5461 = vadd.f32 %v5393, %v5460
        %v5462 = vpop.f32.mrb[0].mxu0
        %5463 = vmatprep.mubr.f32.mxu0 0.0
        %5464 = vmatmul.mubr.f32.gmra.mrb[0].mxu0 %v5387
        %v5465 = vpop.f32.mrb[0].mxu0
        %v5466 = vadd.f32 %v5393, %v5465
        %v5467 = vpop.f32.mrb[0].mxu0
        %5468 = vmatprep.mubr.f32.mxu0 0.0
        %5469 = vmatmul.mubr.f32.gmra.mrb[0].mxu0 %v5388
        %v5470 = vpop.f32.mrb[0].mxu0
        %v5471 = vadd.f32 %v5393, %v5470
        %v5472 = vpop.f32.mrb[0].mxu0
        %5473 = vmatprep.mubr.f32.mxu0 0.0
        %5474 = vmatmul.mubr.f32.gmra.mrb[0].mxu0 %v5389
        %v5475 = vpop.f32.mrb[0].mxu0
        %v5476 = vadd.f32 %v5393, %v5475
        %v5477 = vpop.f32.mrb[0].mxu0
        %5478 = vdwg.mxu0
        %v5479 = vtanh.pop %v5461
        %v5480 = vtanh.pop %v5466
        %v5481 = vtanh.pop %v5471
        %v5482 = vtanh.pop %v5476
        %v5483 = vld [vmem:[#allocation12] sm:$0xff]
        %v5484 = vld [vmem:[#allocation12 + $0x8] sm:$0xff]
        %v5485 = vld [vmem:[#allocation12 + $0x10] sm:$0xff]
        %v5486 = vld [vmem:[#allocation12 + $0x18] sm:$0xff]
        %v5487 = vlaneseq
        %v5488 = vshrl.u32 %v5487, 7
        %v5489 = vsub.s32 4, %v5488
        %v5490 = vrot.slane %v550, %v5489
        %vm5491 = vcmask 261120
        %v5493 = vsel %vm5491, %v5479, 0
        %v5496 = vsel %vm5491, %v5480, 0
        %v5499 = vsel %vm5491, %v5481, 0
        %v5502 = vsel %vm5491, %v5482, 0
        %5504 = vmatprep.subr.mxu0 0.0
        %5505 = vmatpush1.msra.mxu0 %v5483
        %5506 = vmatprep.subr.mxu0 0.0
        %5507 = vmatpush1.msra.mxu0 %v5484
        %5508 = vmatprep.subr.mxu0 0.0
        %5509 = vmatpush1.msra.mxu0 %v5485
        %5510 = vmatprep.subr.mxu0 0.0
        %5511 = vmatpush1.msra.mxu0 %v5486
        %5512 = vmatprep.subr.mxu0 0.0
        %5513 = vmatpush1.msra.mxu0 0.0
        %5514 = vmatprep.subr.mxu0 0.0
        %5515 = vmatpush1.msra.mxu0 0.0
        %5516 = vmatprep.subr.mxu0 0.0
        %5517 = vmatpush1.msra.mxu0 0.0
        %5518 = vmatprep.subr.mxu0 0.0
        %5519 = vmatpush1.msra.mxu0 0.0
        %5520 = vmatprep.subr.mxu0 0.0
        %5521 = vmatpush1.msra.mxu0 0.0
        %5522 = vmatprep.subr.mxu0 0.0
        %5523 = vmatpush1.msra.mxu0 0.0
        %5524 = vmatprep.subr.mxu0 0.0
        %5525 = vmatpush1.msra.mxu0 0.0
        %5526 = vmatprep.subr.mxu0 0.0
        %5527 = vmatpush1.msra.mxu0 0.0
        %5528 = vmatprep.subr.mxu0 0.0
        %5529 = vmatpush1.msra.mxu0 0.0
        %5530 = vmatprep.subr.mxu0 0.0
        %5531 = vmatpush1.msra.mxu0 0.0
        %5532 = vmatprep.subr.mxu0 0.0
        %5533 = vmatpush1.msra.mxu0 0.0
        %5534 = vmatprep.subr.mxu0 0.0
        %5535 = vmatpush1.msra.mxu0 0.0
        %5536 = vmatprep.subr.mxu0 0.0
        %5537 = vmatpush1.msra.mxu0 0.0
        %5538 = vmatprep.subr.mxu0 0.0
        %5539 = vmatpush1.msra.mxu0 0.0
        %5540 = vmatprep.subr.mxu0 0.0
        %5541 = vmatpush1.msra.mxu0 0.0
        %5542 = vmatprep.subr.mxu0 0.0
        %5543 = vmatpush1.msra.mxu0 0.0
        %5544 = vmatprep.subr.mxu0 0.0
        %5545 = vmatpush1.msra.mxu0 0.0
        %5546 = vmatprep.subr.mxu0 0.0
        %5547 = vmatpush1.msra.mxu0 0.0
        %5548 = vmatprep.subr.mxu0 0.0
        %5549 = vmatpush1.msra.mxu0 0.0
        %5550 = vmatprep.subr.mxu0 0.0
        %5551 = vmatpush1.msra.mxu0 0.0
        %5552 = vmatprep.subr.mxu0 0.0
        %5553 = vmatpush1.msra.mxu0 0.0
        %5554 = vmatprep.subr.mxu0 0.0
        %5555 = vmatpush1.msra.mxu0 0.0
        %5556 = vmatprep.subr.mxu0 0.0
        %5557 = vmatpush1.msra.mxu0 0.0
        %5558 = vmatprep.subr.mxu0 0.0
        %5559 = vmatpush1.msra.mxu0 0.0
        %5560 = vmatprep.subr.mxu0 0.0
        %5561 = vmatpush1.msra.mxu0 0.0
        %5562 = vmatprep.subr.mxu0 0.0
        %5563 = vmatpush1.msra.mxu0 0.0
        %5564 = vmatprep.subr.mxu0 0.0
        %5565 = vmatpush1.msra.mxu0 0.0
        %5566 = vmatprep.subr.mxu0 0.0
        %5567 = vmatpush1.msra.mxu0 0.0
        %5568 = vmatprep.mubr.f32.mxu0 0.0
        %5569 = vmatmul.mubr.f32.gmra.mrb[0].mxu0 %v5493
        %v5570 = vpop.f32.mrb[0].mxu0
        %v5571 = vadd.f32 %v5490, %v5570
        %v5572 = vpop.f32.mrb[0].mxu0
        %5573 = vmatprep.mubr.f32.mxu0 0.0
        %5574 = vmatmul.mubr.f32.gmra.mrb[0].mxu0 %v5496
        %v5575 = vpop.f32.mrb[0].mxu0
        %v5576 = vadd.f32 %v5490, %v5575
        %v5577 = vpop.f32.mrb[0].mxu0
        %5578 = vmatprep.mubr.f32.mxu0 0.0
        %5579 = vmatmul.mubr.f32.gmra.mrb[0].mxu0 %v5499
        %v5580 = vpop.f32.mrb[0].mxu0
        %v5581 = vadd.f32 %v5490, %v5580
        %v5582 = vpop.f32.mrb[0].mxu0
        %5583 = vmatprep.mubr.f32.mxu0 0.0
        %5584 = vmatmul.mubr.f32.gmra.mrb[0].mxu0 %v5502
        %v5585 = vpop.f32.mrb[0].mxu0
        %v5586 = vadd.f32 %v5490, %v5585
        %v5587 = vpop.f32.mrb[0].mxu0
        %5588 = vdwg.mxu0
        %v5589 = vadd.f32 %v756, %v5571
        %v5590 = vadd.f32 %v761, %v5576
        %v5591 = vadd.f32 %v766, %v5581
        %v5592 = vadd.f32 %v771, %v5586
        %5593 = vst.msk [vmem:[%s544] sm:$0xff] %vm5491, %v5589
        %5594 = vst.msk [vmem:[%s544 + $0x8] sm:$0xff] %vm5491, %v5590
        %5595 = vst.msk [vmem:[%s544 + $0x10] sm:$0xff] %vm5491, %v5591
        %5596 = vst.msk [vmem:[%s544 + $0x18] sm:$0xff] %vm5491, %v5592
        %s5597 = smul.u32 4, %s28
        %p5598 = scmp.lt.s32.totalorder %s5597, 7
        %s5599 = scalar_select %p5598, %s5597, 7
        %s5600 = smul.addr %s5599, 8
        %s5601 = scalar_lea.vmem %s13, %s5600
        // Predicated region
        $region101: #{tpu_custom_call.1} parent=71 // pred_check
          %p5602 = pneg %p324
        $region102: #{tpu_custom_call.1} parent=71 // pred_check_branch
          %5604 = sbr.rel (%p5602) target = $region104
        $region103: #{tpu_custom_call.1} parent=71 // pred_region
          %s5605 = smul.u32 4, %s28
        $region104: #{tpu_custom_call.1} parent=71 // pred_fallthru
          _
      $region72: #{tpu_custom_call.1} parent=5 // pred_fallthru
        _
      %p5606 = scmp.le.s32.totalorder 2, %s23
      // Predicated region
      $region105: #{tpu_custom_call.1} parent=5 // pred_check
        %p5607 = pneg %p5606
      $region106: #{tpu_custom_call.1} parent=5 // pred_check_branch
        %5609 = sbr.rel (%p5607) target = $region108
      $region107: #{tpu_custom_call.1} parent=5 // pred_region
        %s5610 = ssub.s32 %s23, 2
        // Predicated region
        $region109: #{tpu_custom_call.1} parent=107 // pred_check
          %p5611 = pneg %p330
        $region110: #{tpu_custom_call.1} parent=107 // pred_check_branch
          %5613 = sbr.rel (%p5611) target = $region112
        $region111: #{tpu_custom_call.1} parent=107 // pred_region
          %s5614 = smul.u32 4, %s29
          %p5615 = scmp.lt.s32.totalorder %s5614, 7
          %s5616 = scalar_select %p5615, %s5614, 7
          %s5617 = smul.addr %s5616, 8
          %s5618 = scalar_lea.vmem %s13, %s5617
        $region112: #{tpu_custom_call.1} parent=107 // pred_fallthru
          _
      $region108: #{tpu_custom_call.1} parent=5 // pred_fallthru
        _
    $region6: #{tpu_custom_call.1} parent=1 // loop_footer
      %s27 = sadd.s32 1, %s23
    $region7: #{tpu_custom_call.1} parent=1 // loop_footer_branch
      %22 = sbr.rel target = $region3
    $region8: #{tpu_custom_call.1} parent=1 // loop_exit
      _
    %5619 = vsyncpa [#allocation3], 1
    %s5620 = scalar_lea.sflag [#allocation3], 1
    %5621 = vsyncpa %s5620, 1
    %5622 = vsyncpa [#allocation5], 1
    %5623 = vsyncpa [#allocation8], 1
    %5624 = vsyncpa [#allocation11], 1

</llo_original>
